<compile_context>
chip_gen: v5e
topology: v5e:2x2
jax: 0.10.0
libtpu: 0.0.40
codegen_flags: <defaults>
</compile_context>

<pallas_src>
import functools

import jax
import jax.numpy as jnp
from jax.experimental import pallas as pl
from jax.experimental.pallas import tpu as pltpu


# ---------------------------------------------------------------------------
# Generation-aware grid split: 2-way only on v7x (2 TCs); on v5e/v6e the grid
# is a serial loop, so a single block avoids per-step pipeline overhead.
# ---------------------------------------------------------------------------

def _detect_grid_split():
    try:
        kind = jax.devices()[0].device_kind.lower()
    except Exception:
        return 1
    return 2 if ("v7" in kind or "7x" in kind) else 1


_GRID_SPLIT = _detect_grid_split()


# ---------------------------------------------------------------------------
# Pallas kernels
# ---------------------------------------------------------------------------

def _tapconv_kernel(x_ref, w_ref, b_ref, o_ref, *, act):
    """Row-tap conv on channel-flattened rows.

    o[b, i, :] = act(bias + sum_{a in {0,1}} x[b, i+a, :] @ W_a)

    The column (W-axis) taps / stride phases / sub-pixel phases are folded into
    the block-Toeplitz W_a (built once at prep time), so no im2col, reshape or
    concat is needed in-kernel.  f32 accumulation, bf16 MXU operands.
    """
    bt, ho, wn = o_ref.shape
    kd = w_ref.shape[0] // 2                      # rows per H-tap block
    wv = w_ref[...]                               # (2*kd, wn)  bf16
    bias = b_ref[...]                             # (1, wn)     f32
    for bi in range(bt):                          # bt in {1, 2}; static unroll
        acc = jnp.zeros((ho, wn), jnp.float32) + bias
        for a in (0, 1):                          # the two row taps
            lhs = x_ref[bi, a:a + ho, :].astype(jnp.bfloat16)
            acc = acc + jnp.dot(lhs, wv[a * kd:(a + 1) * kd, :],
                                preferred_element_type=jnp.float32)
        if act == "relu":
            acc = jnp.maximum(acc, 0.0)
        o_ref[bi] = acc.astype(o_ref.dtype)


def _attention_cat_kernel(g_ref, x_ref, wg_ref, wx_ref, wv_ref, o_ref):
    """Fused attention gate + d6-input assembly.

    gate = sigmoid( relu(g@Wg + x@Wx) . wv )           (f32 VPU/XLU reduction)
    out  = [gate * x | x]                               (bf16, 64 lanes)

    The quaternion channel interleave expected by the original `cat` is folded
    into a one-time permutation of the d6 weight rows, so this layout is final.
    """
    g = g_ref[...].astype(jnp.bfloat16)
    x = x_ref[...].astype(jnp.bfloat16)
    net = (jnp.dot(g, wg_ref[...], preferred_element_type=jnp.float32)
           + jnp.dot(x, wx_ref[...], preferred_element_type=jnp.float32))
    net = jnp.maximum(net, 0.0)
    logit = jnp.sum(net * wv_ref[...], axis=-1, keepdims=True)     # (tm, 1) f32
    gate = jax.nn.sigmoid(logit)
    xf = x.astype(jnp.float32)
    o_ref[...] = jnp.concatenate([gate * xf, xf], axis=-1).astype(o_ref.dtype)


# ---------------------------------------------------------------------------
# Pallas wrappers
# ---------------------------------------------------------------------------

def tapconv_pallas(x2, w_mat, bias_row, ho, act, out_dtype):
    """x2: (B, ho+1, K) flattened padded rows; w_mat: (2*K, wn); out (B, ho, wn)."""
    B, hp, k = x2.shape
    kd2, wn = w_mat.shape
    assert kd2 == 2 * k and hp == ho + 1
    nb = _GRID_SPLIT if B % _GRID_SPLIT == 0 else 1
    bt = B // nb
    return pl.pallas_call(
        functools.partial(_tapconv_kernel, act=act),
        out_shape=jax.ShapeDtypeStruct((B, ho, wn), out_dtype),
        grid=(nb,),
        in_specs=[
            pl.BlockSpec((bt, hp, k), lambda i: (i, 0, 0)),
            pl.BlockSpec((kd2, wn), lambda i: (0, 0)),
            pl.BlockSpec((1, wn), lambda i: (0, 0)),
        ],
        out_specs=pl.BlockSpec((bt, ho, wn), lambda i: (i, 0, 0)),
        compiler_params=pltpu.CompilerParams(
            dimension_semantics=("parallel",)),
    )(x2, w_mat, bias_row)


def conv2d_s2_pallas(x, w_mat, bias_row, act, out_dtype):
    """k=3, stride=2, pad=1 conv; all tap/phase selection lives in w_mat."""
    B, H, W, C = x.shape
    ho, wo = H // 2, W // 2
    xp = jnp.pad(x, ((0, 0), (1, 1), (1, 1), (0, 0)))       # (B, 2ho+2, W+2, C)
    x2 = xp.reshape(B, ho + 1, 2 * (W + 2) * C)              # row pairs (free)
    out = tapconv_pallas(x2, w_mat, bias_row, ho, act, out_dtype)
    return out.reshape(B, ho, wo, -1)


def conv_transpose2x_pallas(x, w_mat, bias_row, act, out_dtype):
    """k=3, stride=2, pad=1, out_pad=1 transposed conv via sub-pixel phases."""
    B, H, W, Cin = x.shape
    cout = w_mat.shape[1] // (4 * W)
    xp = jnp.pad(x, ((0, 0), (0, 1), (0, 1), (0, 0)))        # one zero row/col
    x2 = xp.reshape(B, H + 1, (W + 1) * Cin)                  # free reshape
    o = tapconv_pallas(x2, w_mat, bias_row, H, act, out_dtype)  # (B,H,W*4*cout)
    o = o.reshape(B, H, W, 2, 2, cout)
    return jnp.transpose(o, (0, 1, 3, 2, 4, 5)).reshape(B, 2 * H, 2 * W, cout)


def attention_cat_pallas(g, x, wg, wx, wv_row):
    """One pallas_call: attention gate + emit the permuted d6 input [gate*x|x]."""
    M, C = g.shape
    nm = _GRID_SPLIT if M % (8 * _GRID_SPLIT) == 0 else 1
    tm = M // nm
    return pl.pallas_call(
        _attention_cat_kernel,
        out_shape=jax.ShapeDtypeStruct((M, 2 * C), jnp.bfloat16),
        grid=(nm,),
        in_specs=[
            pl.BlockSpec((tm, C), lambda i: (i, 0)),
            pl.BlockSpec((tm, C), lambda i: (i, 0)),
            pl.BlockSpec((C, C), lambda i: (0, 0)),
            pl.BlockSpec((C, C), lambda i: (0, 0)),
            pl.BlockSpec((1, C), lambda i: (0, 0)),
        ],
        out_specs=pl.BlockSpec((tm, 2 * C), lambda i: (i, 0)),
        compiler_params=pltpu.CompilerParams(
            dimension_semantics=("parallel",)),
    )(g, x, wg, wx, wv_row)


# ---------------------------------------------------------------------------
# One-time weight assembly (quaternion hamilton product + Toeplitz layouts)
# ---------------------------------------------------------------------------

def hamilton_cat(r, i, j, k):
    row_r = jnp.concatenate([r, -i, -j, -k], axis=1)
    row_i = jnp.concatenate([i,  r, -k,  j], axis=1)
    row_j = jnp.concatenate([j,  k,  r, -i], axis=1)
    row_k = jnp.concatenate([k, -j,  i,  r], axis=1)
    return jnp.concatenate([row_r, row_i, row_j, row_k], axis=0)


def _qw(p):
    return hamilton_cat(p["r"], p["i"], p["j"], p["k"])


def conv_toeplitz_weight(w_oihw, wo):
    """k=3,s=2,p=1 conv (OIHW) -> stacked 2 H-tap block-Toeplitz matrices.

    LHS rows are a flattened pair of padded input rows, ordered (pa, w, cin);
    output columns ordered (j, cout).  Shape (2 * 2*wp*cin, wo*cout)."""
    cout, cin, kh, kw = w_oihw.shape
    wp = 2 * wo + 2                                  # padded input width
    blocks = []
    for a in (0, 1):
        m = jnp.zeros((2 * wp * cin, wo * cout), jnp.float32)
        for pa in (0, 1):
            di = 2 * a + pa
            if di >= kh:
                continue
            for j in range(wo):
                for dj in range(kw):
                    w = 2 * j + dj
                    blk = jnp.transpose(w_oihw[:, :, di, dj])      # (cin, cout)
                    r0 = (pa * wp + w) * cin
                    m = m.at[r0:r0 + cin, j * cout:(j + 1) * cout].set(blk)
        blocks.append(m)
    return jnp.concatenate(blocks, axis=0)


def convT_toeplitz_weight(w_iohw, w_in):
    """k=3,s=2,p=1,op=1 transposed conv (torch IOHW) -> 2 H-tap Toeplitz mats.

    LHS rows over the bottom/right zero-padded input, ordered (w, cin); output
    columns ordered (j, pa, pb, cout) (sub-pixel phases).  Shape
    (2 * (w_in+1)*cin, w_in*4*cout)."""
    cin, cout = w_iohw.shape[0], w_iohw.shape[1]
    wf = jnp.transpose(w_iohw, (1, 0, 2, 3))[:, :, ::-1, ::-1]   # forward kernel
    kmap = {(0, 0): 1, (1, 0): 0, (1, 1): 2}        # (phase, tap) -> kernel idx
    wp = w_in + 1
    ncol = 4 * cout
    blocks = []
    for a in (0, 1):
        m = jnp.zeros((wp * cin, w_in * ncol), jnp.float32)
        for pa in (0, 1):
            dy = kmap.get((pa, a))
            if dy is None:
                continue
            for j in range(w_in):
                for tb in (0, 1):
                    for pb in (0, 1):
                        dx = kmap.get((pb, tb))
                        if dx is None:
                            continue
                        blk = jnp.transpose(wf[:, :, dy, dx])     # (cin, cout)
                        r0 = (j + tb) * cin
                        c0 = j * ncol + (pa * 2 + pb) * cout
                        m = m.at[r0:r0 + cin, c0:c0 + cout].set(blk)
        blocks.append(m)
    return jnp.concatenate(blocks, axis=0)


def _d6_input_perm():
    """Maps the fused attention output [gate*x | x] to the quaternion-interleaved
    channel order ([a_r d_r a_i d_i a_j d_j a_k d_k]) the d6 weight expects."""
    perm = [16 * q + c for q in range(4) for c in range(8)]          # attention
    perm += [16 * q + 8 + c for q in range(4) for c in range(8)]     # d5
    return jnp.asarray(perm)


def prepare_weights(params, in_w=16):
    """Assemble all matmul-ready (bf16) weights + f32 bias rows once."""
    bf = lambda t: t.astype(jnp.bfloat16)
    p = params
    att = p["att"]
    w1, w2 = in_w // 2, in_w // 4                    # widths after e1 / e2
    d6_w = _qw(p["d6"])[_d6_input_perm()]            # fold channel interleave

    def brow(b, reps):
        return jnp.tile(b, reps).reshape(1, -1).astype(jnp.float32)

    return {
        "e1_w": bf(conv_toeplitz_weight(_qw(p["e1"]), w1)),
        "e1_b": brow(p["e1"]["b"], w1),
        "e2_w": bf(conv_toeplitz_weight(_qw(p["e2"]), w2)),
        "e2_b": brow(p["e2"]["b"], w2),
        "d5_w": bf(convT_toeplitz_weight(_qw(p["d5"]), w2)),
        "d5_b": brow(jnp.tile(p["d5"]["b"], 4), w2),
        "d6_w": bf(convT_toeplitz_weight(d6_w, w1)),
        "d6_b": brow(jnp.tile(p["d6"]["b"], 4), w1),
        "att_wg": bf(att["convg_w"][:, :, 0, 0].T),              # (32, 32)
        "att_wx": bf(att["convx_w"][:, :, 0, 0].T),              # (32, 32)
        "att_wv": att["conv_w"][:, :, 0, 0].astype(jnp.float32),  # (1, 32) f32
    }


# ---------------------------------------------------------------------------
# Parameters (deterministic synthetic init)
# ---------------------------------------------------------------------------

def init_params(key):
    keys = iter(jax.random.split(key, 64))

    def nrm(shape):
        return 0.1 * jax.random.normal(next(keys), shape, jnp.float32)

    def quat(shape):
        return {c: nrm(shape) for c in ("r", "i", "j", "k")}

    return {
        # QuaternionConv(4, 32, k=3, s=2, p=1): comps (out/4, in/4, 3, 3)
        "e1": dict(quat((8, 1, 3, 3)), b=nrm((32,))),
        # QuaternionConv(32, 40, k=3, s=2, p=1)
        "e2": dict(quat((10, 8, 3, 3)), b=nrm((40,))),
        # QuaternionTransposeConv(40, 32, k=3, s=2, p=1, op=1): (in/4, out/4, 3, 3)
        "d5": dict(quat((10, 8, 3, 3)), b=nrm((32,))),
        # QuaternionTransposeConv(64, 4, k=3, s=2, p=1, op=1)
        "d6": dict(quat((16, 1, 3, 3)), b=nrm((4,))),
        # Attention(32, 32, 32): plain Conv2d 1x1, bias=False
        "att": {
            "convg_w": nrm((32, 32, 1, 1)),
            "convx_w": nrm((32, 32, 1, 1)),
            "conv_w":  nrm((1, 32, 1, 1)),
        },
    }


# ---------------------------------------------------------------------------
# Forward pass (Pallas path; NHWC internally, NCHW at the boundary)
# ---------------------------------------------------------------------------

def forward(prep, x_nchw):
    x = jnp.transpose(x_nchw, (0, 2, 3, 1))                          # NHWC f32
    e1 = conv2d_s2_pallas(x, prep["e1_w"], prep["e1_b"],
                          "relu", jnp.bfloat16)                      # (B,8,8,32)
    e2 = conv2d_s2_pallas(e1, prep["e2_w"], prep["e2_b"],
                          "relu", jnp.bfloat16)                      # (B,4,4,40)
    d5 = conv_transpose2x_pallas(e2, prep["d5_w"], prep["d5_b"],
                                 "relu", jnp.bfloat16)               # (B,8,8,32)
    B, H, W, C = d5.shape
    m = B * H * W
    cat = attention_cat_pallas(e1.reshape(m, C), d5.reshape(m, C),
                               prep["att_wg"], prep["att_wx"],
                               prep["att_wv"]).reshape(B, H, W, 2 * C)
    d6 = conv_transpose2x_pallas(cat, prep["d6_w"], prep["d6_b"],
                                 "relu", jnp.float32)                # (B,16,16,4)
    return jnp.transpose(d6, (0, 3, 1, 2))                           # NCHW f32


# ---------------------------------------------------------------------------
# Pure-lax reference (independent check of the Pallas pipeline)
# ---------------------------------------------------------------------------

def _quat_split(t_nhwc):
    c = t_nhwc.shape[-1] // 4
    return (t_nhwc[..., 0 * c:1 * c], t_nhwc[..., 1 * c:2 * c],
            t_nhwc[..., 2 * c:3 * c], t_nhwc[..., 3 * c:4 * c])


def _conv2d_ref(x, w_oihw, bias, stride, padding):
    out = jax.lax.conv_general_dilated(
        x, jnp.transpose(w_oihw, (2, 3, 1, 0)),
        window_strides=(stride, stride),
        padding=[(padding, padding), (padding, padding)],
        dimension_numbers=("NHWC", "HWIO", "NHWC"),
        precision=jax.lax.Precision.HIGHEST)
    return out + bias


def _conv_transpose2d_ref(x, w_iohw, bias, stride, padding, output_padding):
    kh, kw = w_iohw.shape[2], w_iohw.shape[3]
    w_fwd = jnp.transpose(w_iohw, (1, 0, 2, 3))[:, :, ::-1, ::-1]
    out = jax.lax.conv_general_dilated(
        x, jnp.transpose(w_fwd, (2, 3, 1, 0)),
        window_strides=(1, 1),
        padding=[(kh - 1 - padding, kh - 1 - padding + output_padding),
                 (kw - 1 - padding, kw - 1 - padding + output_padding)],
        lhs_dilation=(stride, stride),
        dimension_numbers=("NHWC", "HWIO", "NHWC"),
        precision=jax.lax.Precision.HIGHEST)
    return out + bias


def forward_ref(params, x_nchw):
    x = jnp.transpose(x_nchw, (0, 2, 3, 1))
    relu = lambda t: jnp.maximum(t, 0.0)
    e1 = relu(_conv2d_ref(x, _qw(params["e1"]), params["e1"]["b"], 2, 1))
    e2 = relu(_conv2d_ref(e1, _qw(params["e2"]), params["e2"]["b"], 2, 1))
    d5 = relu(_conv_transpose2d_ref(e2, _qw(params["d5"]), params["d5"]["b"],
                                    2, 1, 1))
    p = params["att"]
    z32 = jnp.zeros((32,), jnp.float32)
    g1 = _conv2d_ref(e1, p["convg_w"], z32, 1, 0)
    x1 = _conv2d_ref(d5, p["convx_w"], z32, 1, 0)
    net = relu(g1 + x1)
    net = _conv2d_ref(net, p["conv_w"], jnp.zeros((1,), jnp.float32), 1, 0)
    net = jax.nn.sigmoid(net)
    attention = net * d5
    ar, ai, aj, ak = _quat_split(attention)
    dr, di_, dj_, dk = _quat_split(d5)
    cat = jnp.concatenate([ar, dr, ai, di_, aj, dj_, ak, dk], axis=-1)
    d6 = relu(_conv_transpose2d_ref(cat, _qw(params["d6"]), params["d6"]["b"],
                                    2, 1, 1))
    return jnp.transpose(d6, (0, 3, 1, 2))


# ---------------------------------------------------------------------------

if __name__ == "__main__":
    key = jax.random.PRNGKey(0)
    pkey, xkey = jax.random.split(key)
    params = init_params(pkey)
    x = jax.random.normal(xkey, (2, 4, 16, 16), jnp.float32)  # NCHW like PyTorch

    prep = prepare_weights(params, in_w=16)      # one-time weight assembly
    out = jax.block_until_ready(jax.jit(forward)(prep, x))
    assert out.shape == (2, 4, 16, 16), out.shape

    ref = jax.block_until_ready(forward_ref(params, x))
    rel = float(jnp.max(jnp.abs(out - ref)) / (jnp.max(jnp.abs(ref)) + 1e-6))
    assert rel < 3e-2, f"Pallas output mismatch vs lax reference: rel={rel}"

    print("KERNEL_OK")
</pallas_src>

<mosaic_0001>
module attributes {stable_mosaic.version = 11 : i64} {
  func.func @_tapconv_kernel(%arg0: i32, %arg1: memref<2x9x144xf32, #tpu.memory_space<vmem>>, %arg2: memref<288x256xbf16, #tpu.memory_space<vmem>>, %arg3: memref<1x256xf32, #tpu.memory_space<vmem>>, %arg4: memref<2x8x256xbf16, #tpu.memory_space<vmem>>) attributes {dimension_semantics = [#tpu.dimension_semantics<parallel>], iteration_bounds = array<i64: 1>, scalar_prefetch = 0 : i64, scratch_operands = 0 : i64, tpu.core_type = #tpu.core_type<tc>, window_params = [{transform_indices = @transform_0, window_bounds = array<i64: 2, 9, 144>}, {pipeline_mode = #tpu.pipeline_mode<synchronous>, transform_indices = @transform_1, window_bounds = array<i64: 288, 256>}, {pipeline_mode = #tpu.pipeline_mode<synchronous>, transform_indices = @transform_2, window_bounds = array<i64: 1, 256>}, {transform_indices = @transform_3, window_bounds = array<i64: 2, 8, 256>}]} {
    %c0 = arith.constant 0 : index
    %c0_0 = arith.constant 0 : index
    %0 = vector.load %arg2[%c0, %c0_0] : memref<288x256xbf16, #tpu.memory_space<vmem>>, vector<288x256xbf16>
    %c0_1 = arith.constant 0 : index
    %c0_2 = arith.constant 0 : index
    %1 = vector.load %arg3[%c0_1, %c0_2] : memref<1x256xf32, #tpu.memory_space<vmem>>, vector<1x256xf32>
    %cst = arith.constant 0.000000e+00 : f32
    %2 = vector.broadcast %cst : f32 to vector<8x256xf32>
    %3 = vector.broadcast %1 : vector<1x256xf32> to vector<8x256xf32>
    %4 = arith.addf %2, %3 : vector<8x256xf32>
    %c0_3 = arith.constant 0 : index
    %c0_4 = arith.constant 0 : index
    %c0_5 = arith.constant 0 : index
    %5 = vector.load %arg1[%c0_3, %c0_4, %c0_5] : memref<2x9x144xf32, #tpu.memory_space<vmem>>, vector<1x8x144xf32>
    %6 = vector.shape_cast %5 : vector<1x8x144xf32> to vector<8x144xf32>
    %7 = arith.truncf %6 : vector<8x144xf32> to vector<8x144xbf16>
    %8 = vector.extract_strided_slice %0 {offsets = [0, 0], sizes = [144, 256], strides = [1, 1]} : vector<288x256xbf16> to vector<144x256xbf16>
    %cst_6 = arith.constant dense<0.000000e+00> : vector<8x256xf32>
    %9 = tpu.matmul %7, %8, %cst_6 {dimension_numbers = #tpu.dot_dimension_numbers<[1], [0], [0], [1], [0, 0, 1, 1], [], []>} : vector<8x144xbf16>, vector<144x256xbf16>, vector<8x256xf32> -> vector<8x256xf32>
    %10 = arith.addf %4, %9 : vector<8x256xf32>
    %c0_7 = arith.constant 0 : index
    %c1 = arith.constant 1 : index
    %c0_8 = arith.constant 0 : index
    %11 = vector.load %arg1[%c0_7, %c1, %c0_8] : memref<2x9x144xf32, #tpu.memory_space<vmem>>, vector<1x8x144xf32>
    %12 = vector.shape_cast %11 : vector<1x8x144xf32> to vector<8x144xf32>
    %13 = arith.truncf %12 : vector<8x144xf32> to vector<8x144xbf16>
    %14 = vector.extract_strided_slice %0 {offsets = [144, 0], sizes = [144, 256], strides = [1, 1]} : vector<288x256xbf16> to vector<144x256xbf16>
    %cst_9 = arith.constant dense<0.000000e+00> : vector<8x256xf32>
    %15 = tpu.matmul %13, %14, %cst_9 {dimension_numbers = #tpu.dot_dimension_numbers<[1], [0], [0], [1], [0, 0, 1, 1], [], []>} : vector<8x144xbf16>, vector<144x256xbf16>, vector<8x256xf32> -> vector<8x256xf32>
    %16 = arith.addf %10, %15 : vector<8x256xf32>
    %cst_10 = arith.constant 0.000000e+00 : f32
    %17 = vector.broadcast %cst_10 : f32 to vector<8x256xf32>
    %18 = arith.maximumf %16, %17 : vector<8x256xf32>
    %19 = arith.truncf %18 : vector<8x256xf32> to vector<8x256xbf16>
    %c0_11 = arith.constant 0 : index
    %c0_12 = arith.constant 0 : index
    %c0_13 = arith.constant 0 : index
    %20 = vector.load %arg4[%c0_11, %c0_12, %c0_13] : memref<2x8x256xbf16, #tpu.memory_space<vmem>>, vector<1x8x256xbf16>
    %21 = vector.shape_cast %20 : vector<1x8x256xbf16> to vector<8x256xbf16>
    %22 = vector.shape_cast %19 : vector<8x256xbf16> to vector<1x8x256xbf16>
    tpu.vector_store %arg4[%c0_11, %c0_12, %c0_13], %22 {strides = array<i32>} : memref<2x8x256xbf16, #tpu.memory_space<vmem>>, vector<1x8x256xbf16>,
    %cst_14 = arith.constant 0.000000e+00 : f32
    %23 = vector.broadcast %cst_14 : f32 to vector<8x256xf32>
    %24 = vector.broadcast %1 : vector<1x256xf32> to vector<8x256xf32>
    %25 = arith.addf %23, %24 : vector<8x256xf32>
    %c1_15 = arith.constant 1 : index
    %c0_16 = arith.constant 0 : index
    %c0_17 = arith.constant 0 : index
    %26 = vector.load %arg1[%c1_15, %c0_16, %c0_17] : memref<2x9x144xf32, #tpu.memory_space<vmem>>, vector<1x8x144xf32>
    %27 = vector.shape_cast %26 : vector<1x8x144xf32> to vector<8x144xf32>
    %28 = arith.truncf %27 : vector<8x144xf32> to vector<8x144xbf16>
    %29 = vector.extract_strided_slice %0 {offsets = [0, 0], sizes = [144, 256], strides = [1, 1]} : vector<288x256xbf16> to vector<144x256xbf16>
    %cst_18 = arith.constant dense<0.000000e+00> : vector<8x256xf32>
    %30 = tpu.matmul %28, %29, %cst_18 {dimension_numbers = #tpu.dot_dimension_numbers<[1], [0], [0], [1], [0, 0, 1, 1], [], []>} : vector<8x144xbf16>, vector<144x256xbf16>, vector<8x256xf32> -> vector<8x256xf32>
    %31 = arith.addf %25, %30 : vector<8x256xf32>
    %c1_19 = arith.constant 1 : index
    %c1_20 = arith.constant 1 : index
    %c0_21 = arith.constant 0 : index
    %32 = vector.load %arg1[%c1_19, %c1_20, %c0_21] : memref<2x9x144xf32, #tpu.memory_space<vmem>>, vector<1x8x144xf32>
    %33 = vector.shape_cast %32 : vector<1x8x144xf32> to vector<8x144xf32>
    %34 = arith.truncf %33 : vector<8x144xf32> to vector<8x144xbf16>
    %35 = vector.extract_strided_slice %0 {offsets = [144, 0], sizes = [144, 256], strides = [1, 1]} : vector<288x256xbf16> to vector<144x256xbf16>
    %cst_22 = arith.constant dense<0.000000e+00> : vector<8x256xf32>
    %36 = tpu.matmul %34, %35, %cst_22 {dimension_numbers = #tpu.dot_dimension_numbers<[1], [0], [0], [1], [0, 0, 1, 1], [], []>} : vector<8x144xbf16>, vector<144x256xbf16>, vector<8x256xf32> -> vector<8x256xf32>
    %37 = arith.addf %31, %36 : vector<8x256xf32>
    %cst_23 = arith.constant 0.000000e+00 : f32
    %38 = vector.broadcast %cst_23 : f32 to vector<8x256xf32>
    %39 = arith.maximumf %37, %38 : vector<8x256xf32>
    %40 = arith.truncf %39 : vector<8x256xf32> to vector<8x256xbf16>
    %c1_24 = arith.constant 1 : index
    %c0_25 = arith.constant 0 : index
    %c0_26 = arith.constant 0 : index
    %41 = vector.load %arg4[%c1_24, %c0_25, %c0_26] : memref<2x8x256xbf16, #tpu.memory_space<vmem>>, vector<1x8x256xbf16>
    %42 = vector.shape_cast %41 : vector<1x8x256xbf16> to vector<8x256xbf16>
    %43 = vector.shape_cast %40 : vector<8x256xbf16> to vector<1x8x256xbf16>
    tpu.vector_store %arg4[%c1_24, %c0_25, %c0_26], %43 {strides = array<i32>} : memref<2x8x256xbf16, #tpu.memory_space<vmem>>, vector<1x8x256xbf16>,
    return
  }
  func.func @transform_0(%arg0: i32) -> (i32, i32, i32) {
    %c0_i32 = arith.constant 0 : i32
    %c0_i32_0 = arith.constant 0 : i32
    %c0_i32_1 = arith.constant 0 : i32
    return %arg0, %c0_i32, %c0_i32_0 : i32, i32, i32
  }
  func.func @transform_1(%arg0: i32) -> (i32, i32) {
    %c0_i32 = arith.constant 0 : i32
    %c0_i32_0 = arith.constant 0 : i32
    %c0_i32_1 = arith.constant 0 : i32
    return %c0_i32, %c0_i32_0 : i32, i32
  }
  func.func @transform_2(%arg0: i32) -> (i32, i32) {
    %c0_i32 = arith.constant 0 : i32
    %c0_i32_0 = arith.constant 0 : i32
    %c0_i32_1 = arith.constant 0 : i32
    return %c0_i32, %c0_i32_0 : i32, i32
  }
  func.func @transform_3(%arg0: i32) -> (i32, i32, i32) {
    %c0_i32 = arith.constant 0 : i32
    %c0_i32_0 = arith.constant 0 : i32
    %c0_i32_1 = arith.constant 0 : i32
    return %arg0, %c0_i32, %c0_i32_0 : i32, i32, i32
  }
}

module attributes {stable_mosaic.version = 11 : i64} {
  func.func @_tapconv_kernel(%arg0: i32, %arg1: memref<2x5x640xbf16, #tpu.memory_space<vmem>>, %arg2: memref<1280x160xbf16, #tpu.memory_space<vmem>>, %arg3: memref<1x160xf32, #tpu.memory_space<vmem>>, %arg4: memref<2x4x160xbf16, #tpu.memory_space<vmem>>) attributes {dimension_semantics = [#tpu.dimension_semantics<parallel>], iteration_bounds = array<i64: 1>, scalar_prefetch = 0 : i64, scratch_operands = 0 : i64, tpu.core_type = #tpu.core_type<tc>, window_params = [{transform_indices = @transform_0, window_bounds = array<i64: 2, 5, 640>}, {pipeline_mode = #tpu.pipeline_mode<synchronous>, transform_indices = @transform_1, window_bounds = array<i64: 1280, 160>}, {pipeline_mode = #tpu.pipeline_mode<synchronous>, transform_indices = @transform_2, window_bounds = array<i64: 1, 160>}, {transform_indices = @transform_3, window_bounds = array<i64: 2, 4, 160>}]} {
    %c0 = arith.constant 0 : index
    %c0_0 = arith.constant 0 : index
    %0 = vector.load %arg2[%c0, %c0_0] : memref<1280x160xbf16, #tpu.memory_space<vmem>>, vector<1280x160xbf16>
    %c0_1 = arith.constant 0 : index
    %c0_2 = arith.constant 0 : index
    %1 = vector.load %arg3[%c0_1, %c0_2] : memref<1x160xf32, #tpu.memory_space<vmem>>, vector<1x160xf32>
    %cst = arith.constant 0.000000e+00 : f32
    %2 = vector.broadcast %cst : f32 to vector<4x160xf32>
    %3 = vector.broadcast %1 : vector<1x160xf32> to vector<4x160xf32>
    %4 = arith.addf %2, %3 : vector<4x160xf32>
    %c0_3 = arith.constant 0 : index
    %c0_4 = arith.constant 0 : index
    %c0_5 = arith.constant 0 : index
    %5 = vector.load %arg1[%c0_3, %c0_4, %c0_5] : memref<2x5x640xbf16, #tpu.memory_space<vmem>>, vector<1x4x640xbf16>
    %6 = vector.shape_cast %5 : vector<1x4x640xbf16> to vector<4x640xbf16>
    %7 = vector.extract_strided_slice %0 {offsets = [0, 0], sizes = [640, 160], strides = [1, 1]} : vector<1280x160xbf16> to vector<640x160xbf16>
    %cst_6 = arith.constant dense<0.000000e+00> : vector<4x160xf32>
    %8 = tpu.matmul %6, %7, %cst_6 {dimension_numbers = #tpu.dot_dimension_numbers<[1], [0], [0], [1], [0, 0, 1, 1], [], []>} : vector<4x640xbf16>, vector<640x160xbf16>, vector<4x160xf32> -> vector<4x160xf32>
    %9 = arith.addf %4, %8 : vector<4x160xf32>
    %c0_7 = arith.constant 0 : index
    %c1 = arith.constant 1 : index
    %c0_8 = arith.constant 0 : index
    %10 = vector.load %arg1[%c0_7, %c1, %c0_8] : memref<2x5x640xbf16, #tpu.memory_space<vmem>>, vector<1x4x640xbf16>
    %11 = vector.shape_cast %10 : vector<1x4x640xbf16> to vector<4x640xbf16>
    %12 = vector.extract_strided_slice %0 {offsets = [640, 0], sizes = [640, 160], strides = [1, 1]} : vector<1280x160xbf16> to vector<640x160xbf16>
    %cst_9 = arith.constant dense<0.000000e+00> : vector<4x160xf32>
    %13 = tpu.matmul %11, %12, %cst_9 {dimension_numbers = #tpu.dot_dimension_numbers<[1], [0], [0], [1], [0, 0, 1, 1], [], []>} : vector<4x640xbf16>, vector<640x160xbf16>, vector<4x160xf32> -> vector<4x160xf32>
    %14 = arith.addf %9, %13 : vector<4x160xf32>
    %cst_10 = arith.constant 0.000000e+00 : f32
    %15 = vector.broadcast %cst_10 : f32 to vector<4x160xf32>
    %16 = arith.maximumf %14, %15 : vector<4x160xf32>
    %17 = arith.truncf %16 : vector<4x160xf32> to vector<4x160xbf16>
    %c0_11 = arith.constant 0 : index
    %c0_12 = arith.constant 0 : index
    %c0_13 = arith.constant 0 : index
    %18 = vector.load %arg4[%c0_11, %c0_12, %c0_13] : memref<2x4x160xbf16, #tpu.memory_space<vmem>>, vector<1x4x160xbf16>
    %19 = vector.shape_cast %18 : vector<1x4x160xbf16> to vector<4x160xbf16>
    %20 = vector.shape_cast %17 : vector<4x160xbf16> to vector<1x4x160xbf16>
    tpu.vector_store %arg4[%c0_11, %c0_12, %c0_13], %20 {strides = array<i32>} : memref<2x4x160xbf16, #tpu.memory_space<vmem>>, vector<1x4x160xbf16>,
    %cst_14 = arith.constant 0.000000e+00 : f32
    %21 = vector.broadcast %cst_14 : f32 to vector<4x160xf32>
    %22 = vector.broadcast %1 : vector<1x160xf32> to vector<4x160xf32>
    %23 = arith.addf %21, %22 : vector<4x160xf32>
    %c1_15 = arith.constant 1 : index
    %c0_16 = arith.constant 0 : index
    %c0_17 = arith.constant 0 : index
    %24 = vector.load %arg1[%c1_15, %c0_16, %c0_17] : memref<2x5x640xbf16, #tpu.memory_space<vmem>>, vector<1x4x640xbf16>
    %25 = vector.shape_cast %24 : vector<1x4x640xbf16> to vector<4x640xbf16>
    %26 = vector.extract_strided_slice %0 {offsets = [0, 0], sizes = [640, 160], strides = [1, 1]} : vector<1280x160xbf16> to vector<640x160xbf16>
    %cst_18 = arith.constant dense<0.000000e+00> : vector<4x160xf32>
    %27 = tpu.matmul %25, %26, %cst_18 {dimension_numbers = #tpu.dot_dimension_numbers<[1], [0], [0], [1], [0, 0, 1, 1], [], []>} : vector<4x640xbf16>, vector<640x160xbf16>, vector<4x160xf32> -> vector<4x160xf32>
    %28 = arith.addf %23, %27 : vector<4x160xf32>
    %c1_19 = arith.constant 1 : index
    %c1_20 = arith.constant 1 : index
    %c0_21 = arith.constant 0 : index
    %29 = vector.load %arg1[%c1_19, %c1_20, %c0_21] : memref<2x5x640xbf16, #tpu.memory_space<vmem>>, vector<1x4x640xbf16>
    %30 = vector.shape_cast %29 : vector<1x4x640xbf16> to vector<4x640xbf16>
    %31 = vector.extract_strided_slice %0 {offsets = [640, 0], sizes = [640, 160], strides = [1, 1]} : vector<1280x160xbf16> to vector<640x160xbf16>
    %cst_22 = arith.constant dense<0.000000e+00> : vector<4x160xf32>
    %32 = tpu.matmul %30, %31, %cst_22 {dimension_numbers = #tpu.dot_dimension_numbers<[1], [0], [0], [1], [0, 0, 1, 1], [], []>} : vector<4x640xbf16>, vector<640x160xbf16>, vector<4x160xf32> -> vector<4x160xf32>
    %33 = arith.addf %28, %32 : vector<4x160xf32>
    %cst_23 = arith.constant 0.000000e+00 : f32
    %34 = vector.broadcast %cst_23 : f32 to vector<4x160xf32>
    %35 = arith.maximumf %33, %34 : vector<4x160xf32>
    %36 = arith.truncf %35 : vector<4x160xf32> to vector<4x160xbf16>
    %c1_24 = arith.constant 1 : index
    %c0_25 = arith.constant 0 : index
    %c0_26 = arith.constant 0 : index
    %37 = vector.load %arg4[%c1_24, %c0_25, %c0_26] : memref<2x4x160xbf16, #tpu.memory_space<vmem>>, vector<1x4x160xbf16>
    %38 = vector.shape_cast %37 : vector<1x4x160xbf16> to vector<4x160xbf16>
    %39 = vector.shape_cast %36 : vector<4x160xbf16> to vector<1x4x160xbf16>
    tpu.vector_store %arg4[%c1_24, %c0_25, %c0_26], %39 {strides = array<i32>} : memref<2x4x160xbf16, #tpu.memory_space<vmem>>, vector<1x4x160xbf16>,
    return
  }
  func.func @transform_0(%arg0: i32) -> (i32, i32, i32) {
    %c0_i32 = arith.constant 0 : i32
    %c0_i32_0 = arith.constant 0 : i32
    %c0_i32_1 = arith.constant 0 : i32
    return %arg0, %c0_i32, %c0_i32_0 : i32, i32, i32
  }
  func.func @transform_1(%arg0: i32) -> (i32, i32) {
    %c0_i32 = arith.constant 0 : i32
    %c0_i32_0 = arith.constant 0 : i32
    %c0_i32_1 = arith.constant 0 : i32
    return %c0_i32, %c0_i32_0 : i32, i32
  }
  func.func @transform_2(%arg0: i32) -> (i32, i32) {
    %c0_i32 = arith.constant 0 : i32
    %c0_i32_0 = arith.constant 0 : i32
    %c0_i32_1 = arith.constant 0 : i32
    return %c0_i32, %c0_i32_0 : i32, i32
  }
  func.func @transform_3(%arg0: i32) -> (i32, i32, i32) {
    %c0_i32 = arith.constant 0 : i32
    %c0_i32_0 = arith.constant 0 : i32
    %c0_i32_1 = arith.constant 0 : i32
    return %arg0, %c0_i32, %c0_i32_0 : i32, i32, i32
  }
}

module attributes {stable_mosaic.version = 11 : i64} {
  func.func @_tapconv_kernel(%arg0: i32, %arg1: memref<2x5x200xbf16, #tpu.memory_space<vmem>>, %arg2: memref<400x512xbf16, #tpu.memory_space<vmem>>, %arg3: memref<1x512xf32, #tpu.memory_space<vmem>>, %arg4: memref<2x4x512xbf16, #tpu.memory_space<vmem>>) attributes {dimension_semantics = [#tpu.dimension_semantics<parallel>], iteration_bounds = array<i64: 1>, scalar_prefetch = 0 : i64, scratch_operands = 0 : i64, tpu.core_type = #tpu.core_type<tc>, window_params = [{transform_indices = @transform_0, window_bounds = array<i64: 2, 5, 200>}, {pipeline_mode = #tpu.pipeline_mode<synchronous>, transform_indices = @transform_1, window_bounds = array<i64: 400, 512>}, {pipeline_mode = #tpu.pipeline_mode<synchronous>, transform_indices = @transform_2, window_bounds = array<i64: 1, 512>}, {transform_indices = @transform_3, window_bounds = array<i64: 2, 4, 512>}]} {
    %c0 = arith.constant 0 : index
    %c0_0 = arith.constant 0 : index
    %0 = vector.load %arg2[%c0, %c0_0] : memref<400x512xbf16, #tpu.memory_space<vmem>>, vector<400x512xbf16>
    %c0_1 = arith.constant 0 : index
    %c0_2 = arith.constant 0 : index
    %1 = vector.load %arg3[%c0_1, %c0_2] : memref<1x512xf32, #tpu.memory_space<vmem>>, vector<1x512xf32>
    %cst = arith.constant 0.000000e+00 : f32
    %2 = vector.broadcast %cst : f32 to vector<4x512xf32>
    %3 = vector.broadcast %1 : vector<1x512xf32> to vector<4x512xf32>
    %4 = arith.addf %2, %3 : vector<4x512xf32>
    %c0_3 = arith.constant 0 : index
    %c0_4 = arith.constant 0 : index
    %c0_5 = arith.constant 0 : index
    %5 = vector.load %arg1[%c0_3, %c0_4, %c0_5] : memref<2x5x200xbf16, #tpu.memory_space<vmem>>, vector<1x4x200xbf16>
    %6 = vector.shape_cast %5 : vector<1x4x200xbf16> to vector<4x200xbf16>
    %7 = vector.extract_strided_slice %0 {offsets = [0, 0], sizes = [200, 512], strides = [1, 1]} : vector<400x512xbf16> to vector<200x512xbf16>
    %cst_6 = arith.constant dense<0.000000e+00> : vector<4x512xf32>
    %8 = tpu.matmul %6, %7, %cst_6 {dimension_numbers = #tpu.dot_dimension_numbers<[1], [0], [0], [1], [0, 0, 1, 1], [], []>} : vector<4x200xbf16>, vector<200x512xbf16>, vector<4x512xf32> -> vector<4x512xf32>
    %9 = arith.addf %4, %8 : vector<4x512xf32>
    %c0_7 = arith.constant 0 : index
    %c1 = arith.constant 1 : index
    %c0_8 = arith.constant 0 : index
    %10 = vector.load %arg1[%c0_7, %c1, %c0_8] : memref<2x5x200xbf16, #tpu.memory_space<vmem>>, vector<1x4x200xbf16>
    %11 = vector.shape_cast %10 : vector<1x4x200xbf16> to vector<4x200xbf16>
    %12 = vector.extract_strided_slice %0 {offsets = [200, 0], sizes = [200, 512], strides = [1, 1]} : vector<400x512xbf16> to vector<200x512xbf16>
    %cst_9 = arith.constant dense<0.000000e+00> : vector<4x512xf32>
    %13 = tpu.matmul %11, %12, %cst_9 {dimension_numbers = #tpu.dot_dimension_numbers<[1], [0], [0], [1], [0, 0, 1, 1], [], []>} : vector<4x200xbf16>, vector<200x512xbf16>, vector<4x512xf32> -> vector<4x512xf32>
    %14 = arith.addf %9, %13 : vector<4x512xf32>
    %cst_10 = arith.constant 0.000000e+00 : f32
    %15 = vector.broadcast %cst_10 : f32 to vector<4x512xf32>
    %16 = arith.maximumf %14, %15 : vector<4x512xf32>
    %17 = arith.truncf %16 : vector<4x512xf32> to vector<4x512xbf16>
    %c0_11 = arith.constant 0 : index
    %c0_12 = arith.constant 0 : index
    %c0_13 = arith.constant 0 : index
    %18 = vector.load %arg4[%c0_11, %c0_12, %c0_13] : memref<2x4x512xbf16, #tpu.memory_space<vmem>>, vector<1x4x512xbf16>
    %19 = vector.shape_cast %18 : vector<1x4x512xbf16> to vector<4x512xbf16>
    %20 = vector.shape_cast %17 : vector<4x512xbf16> to vector<1x4x512xbf16>
    tpu.vector_store %arg4[%c0_11, %c0_12, %c0_13], %20 {strides = array<i32>} : memref<2x4x512xbf16, #tpu.memory_space<vmem>>, vector<1x4x512xbf16>,
    %cst_14 = arith.constant 0.000000e+00 : f32
    %21 = vector.broadcast %cst_14 : f32 to vector<4x512xf32>
    %22 = vector.broadcast %1 : vector<1x512xf32> to vector<4x512xf32>
    %23 = arith.addf %21, %22 : vector<4x512xf32>
    %c1_15 = arith.constant 1 : index
    %c0_16 = arith.constant 0 : index
    %c0_17 = arith.constant 0 : index
    %24 = vector.load %arg1[%c1_15, %c0_16, %c0_17] : memref<2x5x200xbf16, #tpu.memory_space<vmem>>, vector<1x4x200xbf16>
    %25 = vector.shape_cast %24 : vector<1x4x200xbf16> to vector<4x200xbf16>
    %26 = vector.extract_strided_slice %0 {offsets = [0, 0], sizes = [200, 512], strides = [1, 1]} : vector<400x512xbf16> to vector<200x512xbf16>
    %cst_18 = arith.constant dense<0.000000e+00> : vector<4x512xf32>
    %27 = tpu.matmul %25, %26, %cst_18 {dimension_numbers = #tpu.dot_dimension_numbers<[1], [0], [0], [1], [0, 0, 1, 1], [], []>} : vector<4x200xbf16>, vector<200x512xbf16>, vector<4x512xf32> -> vector<4x512xf32>
    %28 = arith.addf %23, %27 : vector<4x512xf32>
    %c1_19 = arith.constant 1 : index
    %c1_20 = arith.constant 1 : index
    %c0_21 = arith.constant 0 : index
    %29 = vector.load %arg1[%c1_19, %c1_20, %c0_21] : memref<2x5x200xbf16, #tpu.memory_space<vmem>>, vector<1x4x200xbf16>
    %30 = vector.shape_cast %29 : vector<1x4x200xbf16> to vector<4x200xbf16>
    %31 = vector.extract_strided_slice %0 {offsets = [200, 0], sizes = [200, 512], strides = [1, 1]} : vector<400x512xbf16> to vector<200x512xbf16>
    %cst_22 = arith.constant dense<0.000000e+00> : vector<4x512xf32>
    %32 = tpu.matmul %30, %31, %cst_22 {dimension_numbers = #tpu.dot_dimension_numbers<[1], [0], [0], [1], [0, 0, 1, 1], [], []>} : vector<4x200xbf16>, vector<200x512xbf16>, vector<4x512xf32> -> vector<4x512xf32>
    %33 = arith.addf %28, %32 : vector<4x512xf32>
    %cst_23 = arith.constant 0.000000e+00 : f32
    %34 = vector.broadcast %cst_23 : f32 to vector<4x512xf32>
    %35 = arith.maximumf %33, %34 : vector<4x512xf32>
    %36 = arith.truncf %35 : vector<4x512xf32> to vector<4x512xbf16>
    %c1_24 = arith.constant 1 : index
    %c0_25 = arith.constant 0 : index
    %c0_26 = arith.constant 0 : index
    %37 = vector.load %arg4[%c1_24, %c0_25, %c0_26] : memref<2x4x512xbf16, #tpu.memory_space<vmem>>, vector<1x4x512xbf16>
    %38 = vector.shape_cast %37 : vector<1x4x512xbf16> to vector<4x512xbf16>
    %39 = vector.shape_cast %36 : vector<4x512xbf16> to vector<1x4x512xbf16>
    tpu.vector_store %arg4[%c1_24, %c0_25, %c0_26], %39 {strides = array<i32>} : memref<2x4x512xbf16, #tpu.memory_space<vmem>>, vector<1x4x512xbf16>,
    return
  }
  func.func @transform_0(%arg0: i32) -> (i32, i32, i32) {
    %c0_i32 = arith.constant 0 : i32
    %c0_i32_0 = arith.constant 0 : i32
    %c0_i32_1 = arith.constant 0 : i32
    return %arg0, %c0_i32, %c0_i32_0 : i32, i32, i32
  }
  func.func @transform_1(%arg0: i32) -> (i32, i32) {
    %c0_i32 = arith.constant 0 : i32
    %c0_i32_0 = arith.constant 0 : i32
    %c0_i32_1 = arith.constant 0 : i32
    return %c0_i32, %c0_i32_0 : i32, i32
  }
  func.func @transform_2(%arg0: i32) -> (i32, i32) {
    %c0_i32 = arith.constant 0 : i32
    %c0_i32_0 = arith.constant 0 : i32
    %c0_i32_1 = arith.constant 0 : i32
    return %c0_i32, %c0_i32_0 : i32, i32
  }
  func.func @transform_3(%arg0: i32) -> (i32, i32, i32) {
    %c0_i32 = arith.constant 0 : i32
    %c0_i32_0 = arith.constant 0 : i32
    %c0_i32_1 = arith.constant 0 : i32
    return %arg0, %c0_i32, %c0_i32_0 : i32, i32, i32
  }
}

module attributes {stable_mosaic.version = 11 : i64} {
  func.func @_attention_cat_kernel(%arg0: i32, %arg1: memref<128x32xbf16, #tpu.memory_space<vmem>>, %arg2: memref<128x32xbf16, #tpu.memory_space<vmem>>, %arg3: memref<32x32xbf16, #tpu.memory_space<vmem>>, %arg4: memref<32x32xbf16, #tpu.memory_space<vmem>>, %arg5: memref<1x32xf32, #tpu.memory_space<vmem>>, %arg6: memref<128x64xbf16, #tpu.memory_space<vmem>>) attributes {dimension_semantics = [#tpu.dimension_semantics<parallel>], iteration_bounds = array<i64: 1>, scalar_prefetch = 0 : i64, scratch_operands = 0 : i64, tpu.core_type = #tpu.core_type<tc>, window_params = [{transform_indices = @transform_0, window_bounds = array<i64: 128, 32>}, {transform_indices = @transform_1, window_bounds = array<i64: 128, 32>}, {pipeline_mode = #tpu.pipeline_mode<synchronous>, transform_indices = @transform_2, window_bounds = array<i64: 32, 32>}, {pipeline_mode = #tpu.pipeline_mode<synchronous>, transform_indices = @transform_3, window_bounds = array<i64: 32, 32>}, {pipeline_mode = #tpu.pipeline_mode<synchronous>, transform_indices = @transform_4, window_bounds = array<i64: 1, 32>}, {transform_indices = @transform_5, window_bounds = array<i64: 128, 64>}]} {
    %c0 = arith.constant 0 : index
    %c0_0 = arith.constant 0 : index
    %0 = vector.load %arg1[%c0, %c0_0] : memref<128x32xbf16, #tpu.memory_space<vmem>>, vector<128x32xbf16>
    %c0_1 = arith.constant 0 : index
    %c0_2 = arith.constant 0 : index
    %1 = vector.load %arg2[%c0_1, %c0_2] : memref<128x32xbf16, #tpu.memory_space<vmem>>, vector<128x32xbf16>
    %c0_3 = arith.constant 0 : index
    %c0_4 = arith.constant 0 : index
    %2 = vector.load %arg3[%c0_3, %c0_4] : memref<32x32xbf16, #tpu.memory_space<vmem>>, vector<32x32xbf16>
    %cst = arith.constant dense<0.000000e+00> : vector<128x32xf32>
    %3 = tpu.matmul %0, %2, %cst {dimension_numbers = #tpu.dot_dimension_numbers<[1], [0], [0], [1], [0, 0, 1, 1], [], []>} : vector<128x32xbf16>, vector<32x32xbf16>, vector<128x32xf32> -> vector<128x32xf32>
    %c0_5 = arith.constant 0 : index
    %c0_6 = arith.constant 0 : index
    %4 = vector.load %arg4[%c0_5, %c0_6] : memref<32x32xbf16, #tpu.memory_space<vmem>>, vector<32x32xbf16>
    %cst_7 = arith.constant dense<0.000000e+00> : vector<128x32xf32>
    %5 = tpu.matmul %1, %4, %cst_7 {dimension_numbers = #tpu.dot_dimension_numbers<[1], [0], [0], [1], [0, 0, 1, 1], [], []>} : vector<128x32xbf16>, vector<32x32xbf16>, vector<128x32xf32> -> vector<128x32xf32>
    %6 = arith.addf %3, %5 : vector<128x32xf32>
    %cst_8 = arith.constant 0.000000e+00 : f32
    %7 = vector.broadcast %cst_8 : f32 to vector<128x32xf32>
    %8 = arith.maximumf %6, %7 : vector<128x32xf32>
    %c0_9 = arith.constant 0 : index
    %c0_10 = arith.constant 0 : index
    %9 = vector.load %arg5[%c0_9, %c0_10] : memref<1x32xf32, #tpu.memory_space<vmem>>, vector<1x32xf32>
    %10 = vector.broadcast %9 : vector<1x32xf32> to vector<128x32xf32>
    %11 = arith.mulf %8, %10 : vector<128x32xf32>
    %cst_11 = arith.constant dense<0.000000e+00> : vector<128xf32>
    %12 = vector.multi_reduction <add>, %11, %cst_11 [1] : vector<128x32xf32> to vector<128xf32>
    %13 = vector.shape_cast %12 : vector<128xf32> to vector<128x1xf32>
    %14 = arith.negf %13 : vector<128x1xf32>
    %15 = math.exp %14 : vector<128x1xf32>
    %cst_12 = arith.constant 1.000000e+00 : f32
    %16 = vector.broadcast %cst_12 : f32 to vector<128x1xf32>
    %17 = arith.addf %16, %15 : vector<128x1xf32>
    %18 = arith.divf %16, %17 : vector<128x1xf32>
    %19 = arith.extf %1 : vector<128x32xbf16> to vector<128x32xf32>
    %20 = vector.broadcast %18 : vector<128x1xf32> to vector<128x32xf32>
    %21 = arith.mulf %20, %19 : vector<128x32xf32>
    %22 = tpu.concatenate %21, %19 in 1 : vector<128x32xf32>, vector<128x32xf32> -> vector<128x64xf32>
    %23 = arith.truncf %22 : vector<128x64xf32> to vector<128x64xbf16>
    %c0_13 = arith.constant 0 : index
    %c0_14 = arith.constant 0 : index
    %24 = vector.load %arg6[%c0_13, %c0_14] : memref<128x64xbf16, #tpu.memory_space<vmem>>, vector<128x64xbf16>
    tpu.vector_store %arg6[%c0_13, %c0_14], %23 {strides = array<i32>} : memref<128x64xbf16, #tpu.memory_space<vmem>>, vector<128x64xbf16>,
    return
  }
  func.func @transform_0(%arg0: i32) -> (i32, i32) {
    %c0_i32 = arith.constant 0 : i32
    %c0_i32_0 = arith.constant 0 : i32
    return %arg0, %c0_i32 : i32, i32
  }
  func.func @transform_1(%arg0: i32) -> (i32, i32) {
    %c0_i32 = arith.constant 0 : i32
    %c0_i32_0 = arith.constant 0 : i32
    return %arg0, %c0_i32 : i32, i32
  }
  func.func @transform_2(%arg0: i32) -> (i32, i32) {
    %c0_i32 = arith.constant 0 : i32
    %c0_i32_0 = arith.constant 0 : i32
    %c0_i32_1 = arith.constant 0 : i32
    return %c0_i32, %c0_i32_0 : i32, i32
  }
  func.func @transform_3(%arg0: i32) -> (i32, i32) {
    %c0_i32 = arith.constant 0 : i32
    %c0_i32_0 = arith.constant 0 : i32
    %c0_i32_1 = arith.constant 0 : i32
    return %c0_i32, %c0_i32_0 : i32, i32
  }
  func.func @transform_4(%arg0: i32) -> (i32, i32) {
    %c0_i32 = arith.constant 0 : i32
    %c0_i32_0 = arith.constant 0 : i32
    %c0_i32_1 = arith.constant 0 : i32
    return %c0_i32, %c0_i32_0 : i32, i32
  }
  func.func @transform_5(%arg0: i32) -> (i32, i32) {
    %c0_i32 = arith.constant 0 : i32
    %c0_i32_0 = arith.constant 0 : i32
    return %arg0, %c0_i32 : i32, i32
  }
}

module attributes {stable_mosaic.version = 11 : i64} {
  func.func @_tapconv_kernel(%arg0: i32, %arg1: memref<2x9x576xbf16, #tpu.memory_space<vmem>>, %arg2: memref<1152x128xbf16, #tpu.memory_space<vmem>>, %arg3: memref<1x128xf32, #tpu.memory_space<vmem>>, %arg4: memref<2x8x128xf32, #tpu.memory_space<vmem>>) attributes {dimension_semantics = [#tpu.dimension_semantics<parallel>], iteration_bounds = array<i64: 1>, scalar_prefetch = 0 : i64, scratch_operands = 0 : i64, tpu.core_type = #tpu.core_type<tc>, window_params = [{transform_indices = @transform_0, window_bounds = array<i64: 2, 9, 576>}, {pipeline_mode = #tpu.pipeline_mode<synchronous>, transform_indices = @transform_1, window_bounds = array<i64: 1152, 128>}, {pipeline_mode = #tpu.pipeline_mode<synchronous>, transform_indices = @transform_2, window_bounds = array<i64: 1, 128>}, {transform_indices = @transform_3, window_bounds = array<i64: 2, 8, 128>}]} {
    %c0 = arith.constant 0 : index
    %c0_0 = arith.constant 0 : index
    %0 = vector.load %arg2[%c0, %c0_0] : memref<1152x128xbf16, #tpu.memory_space<vmem>>, vector<1152x128xbf16>
    %c0_1 = arith.constant 0 : index
    %c0_2 = arith.constant 0 : index
    %1 = vector.load %arg3[%c0_1, %c0_2] : memref<1x128xf32, #tpu.memory_space<vmem>>, vector<1x128xf32>
    %cst = arith.constant 0.000000e+00 : f32
    %2 = vector.broadcast %cst : f32 to vector<8x128xf32>
    %3 = vector.broadcast %1 : vector<1x128xf32> to vector<8x128xf32>
    %4 = arith.addf %2, %3 : vector<8x128xf32>
    %c0_3 = arith.constant 0 : index
    %c0_4 = arith.constant 0 : index
    %c0_5 = arith.constant 0 : index
    %5 = vector.load %arg1[%c0_3, %c0_4, %c0_5] : memref<2x9x576xbf16, #tpu.memory_space<vmem>>, vector<1x8x576xbf16>
    %6 = vector.shape_cast %5 : vector<1x8x576xbf16> to vector<8x576xbf16>
    %7 = vector.extract_strided_slice %0 {offsets = [0, 0], sizes = [576, 128], strides = [1, 1]} : vector<1152x128xbf16> to vector<576x128xbf16>
    %cst_6 = arith.constant dense<0.000000e+00> : vector<8x128xf32>
    %8 = tpu.matmul %6, %7, %cst_6 {dimension_numbers = #tpu.dot_dimension_numbers<[1], [0], [0], [1], [0, 0, 1, 1], [], []>} : vector<8x576xbf16>, vector<576x128xbf16>, vector<8x128xf32> -> vector<8x128xf32>
    %9 = arith.addf %4, %8 : vector<8x128xf32>
    %c0_7 = arith.constant 0 : index
    %c1 = arith.constant 1 : index
    %c0_8 = arith.constant 0 : index
    %10 = vector.load %arg1[%c0_7, %c1, %c0_8] : memref<2x9x576xbf16, #tpu.memory_space<vmem>>, vector<1x8x576xbf16>
    %11 = vector.shape_cast %10 : vector<1x8x576xbf16> to vector<8x576xbf16>
    %12 = vector.extract_strided_slice %0 {offsets = [576, 0], sizes = [576, 128], strides = [1, 1]} : vector<1152x128xbf16> to vector<576x128xbf16>
    %cst_9 = arith.constant dense<0.000000e+00> : vector<8x128xf32>
    %13 = tpu.matmul %11, %12, %cst_9 {dimension_numbers = #tpu.dot_dimension_numbers<[1], [0], [0], [1], [0, 0, 1, 1], [], []>} : vector<8x576xbf16>, vector<576x128xbf16>, vector<8x128xf32> -> vector<8x128xf32>
    %14 = arith.addf %9, %13 : vector<8x128xf32>
    %cst_10 = arith.constant 0.000000e+00 : f32
    %15 = vector.broadcast %cst_10 : f32 to vector<8x128xf32>
    %16 = arith.maximumf %14, %15 : vector<8x128xf32>
    %c0_11 = arith.constant 0 : index
    %c0_12 = arith.constant 0 : index
    %c0_13 = arith.constant 0 : index
    %17 = vector.load %arg4[%c0_11, %c0_12, %c0_13] : memref<2x8x128xf32, #tpu.memory_space<vmem>>, vector<1x8x128xf32>
    %18 = vector.shape_cast %17 : vector<1x8x128xf32> to vector<8x128xf32>
    %19 = vector.shape_cast %16 : vector<8x128xf32> to vector<1x8x128xf32>
    tpu.vector_store %arg4[%c0_11, %c0_12, %c0_13], %19 {strides = array<i32>} : memref<2x8x128xf32, #tpu.memory_space<vmem>>, vector<1x8x128xf32>,
    %cst_14 = arith.constant 0.000000e+00 : f32
    %20 = vector.broadcast %cst_14 : f32 to vector<8x128xf32>
    %21 = vector.broadcast %1 : vector<1x128xf32> to vector<8x128xf32>
    %22 = arith.addf %20, %21 : vector<8x128xf32>
    %c1_15 = arith.constant 1 : index
    %c0_16 = arith.constant 0 : index
    %c0_17 = arith.constant 0 : index
    %23 = vector.load %arg1[%c1_15, %c0_16, %c0_17] : memref<2x9x576xbf16, #tpu.memory_space<vmem>>, vector<1x8x576xbf16>
    %24 = vector.shape_cast %23 : vector<1x8x576xbf16> to vector<8x576xbf16>
    %25 = vector.extract_strided_slice %0 {offsets = [0, 0], sizes = [576, 128], strides = [1, 1]} : vector<1152x128xbf16> to vector<576x128xbf16>
    %cst_18 = arith.constant dense<0.000000e+00> : vector<8x128xf32>
    %26 = tpu.matmul %24, %25, %cst_18 {dimension_numbers = #tpu.dot_dimension_numbers<[1], [0], [0], [1], [0, 0, 1, 1], [], []>} : vector<8x576xbf16>, vector<576x128xbf16>, vector<8x128xf32> -> vector<8x128xf32>
    %27 = arith.addf %22, %26 : vector<8x128xf32>
    %c1_19 = arith.constant 1 : index
    %c1_20 = arith.constant 1 : index
    %c0_21 = arith.constant 0 : index
    %28 = vector.load %arg1[%c1_19, %c1_20, %c0_21] : memref<2x9x576xbf16, #tpu.memory_space<vmem>>, vector<1x8x576xbf16>
    %29 = vector.shape_cast %28 : vector<1x8x576xbf16> to vector<8x576xbf16>
    %30 = vector.extract_strided_slice %0 {offsets = [576, 0], sizes = [576, 128], strides = [1, 1]} : vector<1152x128xbf16> to vector<576x128xbf16>
    %cst_22 = arith.constant dense<0.000000e+00> : vector<8x128xf32>
    %31 = tpu.matmul %29, %30, %cst_22 {dimension_numbers = #tpu.dot_dimension_numbers<[1], [0], [0], [1], [0, 0, 1, 1], [], []>} : vector<8x576xbf16>, vector<576x128xbf16>, vector<8x128xf32> -> vector<8x128xf32>
    %32 = arith.addf %27, %31 : vector<8x128xf32>
    %cst_23 = arith.constant 0.000000e+00 : f32
    %33 = vector.broadcast %cst_23 : f32 to vector<8x128xf32>
    %34 = arith.maximumf %32, %33 : vector<8x128xf32>
    %c1_24 = arith.constant 1 : index
    %c0_25 = arith.constant 0 : index
    %c0_26 = arith.constant 0 : index
    %35 = vector.load %arg4[%c1_24, %c0_25, %c0_26] : memref<2x8x128xf32, #tpu.memory_space<vmem>>, vector<1x8x128xf32>
    %36 = vector.shape_cast %35 : vector<1x8x128xf32> to vector<8x128xf32>
    %37 = vector.shape_cast %34 : vector<8x128xf32> to vector<1x8x128xf32>
    tpu.vector_store %arg4[%c1_24, %c0_25, %c0_26], %37 {strides = array<i32>} : memref<2x8x128xf32, #tpu.memory_space<vmem>>, vector<1x8x128xf32>,
    return
  }
  func.func @transform_0(%arg0: i32) -> (i32, i32, i32) {
    %c0_i32 = arith.constant 0 : i32
    %c0_i32_0 = arith.constant 0 : i32
    %c0_i32_1 = arith.constant 0 : i32
    return %arg0, %c0_i32, %c0_i32_0 : i32, i32, i32
  }
  func.func @transform_1(%arg0: i32) -> (i32, i32) {
    %c0_i32 = arith.constant 0 : i32
    %c0_i32_0 = arith.constant 0 : i32
    %c0_i32_1 = arith.constant 0 : i32
    return %c0_i32, %c0_i32_0 : i32, i32
  }
  func.func @transform_2(%arg0: i32) -> (i32, i32) {
    %c0_i32 = arith.constant 0 : i32
    %c0_i32_0 = arith.constant 0 : i32
    %c0_i32_1 = arith.constant 0 : i32
    return %c0_i32, %c0_i32_0 : i32, i32
  }
  func.func @transform_3(%arg0: i32) -> (i32, i32, i32) {
    %c0_i32 = arith.constant 0 : i32
    %c0_i32_0 = arith.constant 0 : i32
    %c0_i32_1 = arith.constant 0 : i32
    return %arg0, %c0_i32, %c0_i32_0 : i32, i32, i32
  }
}

</mosaic_0001>

<llo_original>
// kernel: forward.5
$region0: #{forward.5}
  #allocation0 [shape = 'u32[]', space=smem, size = 0x4, offset = 0x4, fixed_abs, tag = 'smem constant byte address 0x4 - core index']
  #allocation1 [shape = 'u32[72,128]{1,0:T(1,128)}', space=vmem, size = 0x9000, scoped, tag = 'internal scratch']
  %s0 = inlined_call_operand.vmem [shape: f32[2,9,144], index: 0, kind: input, shape index: {}]
  %s1 = inlined_call_operand.vmem [shape: bf16[288,256], index: 1, kind: input, shape index: {}]
  %s2 = inlined_call_operand.vmem [shape: f32[1,256], index: 2, kind: input, shape index: {}]
  %s3 = inlined_call_operand.vmem [shape: bf16[2,8,256], index: 3, kind: output, shape index: {}]
  %s4 = sld [smem:[#allocation0]]
  $region22: #{forward.5} parent=0
    _
  %s6 = ssub.s32 1, %s4
  %s7 = scalar_select 0, %s6, %s4
  // Predicated region
  $region2: #{forward.5} parent=0 // pred_check
    _
  $region3: #{forward.5} parent=0 // pred_check_branch
    %9 = sbr.rel (0) target = $region5
  $region4: #{forward.5} parent=0 // pred_region
    _
  $region5: #{forward.5} parent=0 // pred_fallthru
    _
  // Predicated region
  $region6: #{forward.5} parent=0 // pred_check
    _
  $region7: #{forward.5} parent=0 // pred_check_branch
    %11 = sbr.rel (0) target = $region9
  $region8: #{forward.5} parent=0 // pred_region
    _
  $region9: #{forward.5} parent=0 // pred_fallthru
    _
  // Predicated region
  $region10: #{forward.5} parent=0 // pred_check
    _
  $region11: #{forward.5} parent=0 // pred_check_branch
    %13 = sbr.rel (0) target = $region13
  $region12: #{forward.5} parent=0 // pred_region
    _
  $region13: #{forward.5} parent=0 // pred_fallthru
    _
  %v15 = vld [vmem:[%s1] sm:$0xff]
  %v16 = vld [vmem:[%s1 + $0x8] sm:$0xff]
  %v17 = vld [vmem:[%s1 + $0x10] sm:$0xff]
  %v18 = vld [vmem:[%s1 + $0x18] sm:$0xff]
  %v19 = vld [vmem:[%s1 + $0x20] sm:$0xff]
  %v20 = vld [vmem:[%s1 + $0x28] sm:$0xff]
  %v21 = vld [vmem:[%s1 + $0x30] sm:$0xff]
  %v22 = vld [vmem:[%s1 + $0x38] sm:$0xff]
  %v23 = vld [vmem:[%s1 + $0x40] sm:$0xff]
  %v24 = vld [vmem:[%s1 + $0x48] sm:$0xff]
  %v25 = vld [vmem:[%s1 + $0x50] sm:$0xff]
  %v26 = vld [vmem:[%s1 + $0x58] sm:$0xff]
  %v27 = vld [vmem:[%s1 + $0x60] sm:$0xff]
  %v28 = vld [vmem:[%s1 + $0x68] sm:$0xff]
  %v29 = vld [vmem:[%s1 + $0x70] sm:$0xff]
  %v30 = vld [vmem:[%s1 + $0x78] sm:$0xff]
  %v31 = vld [vmem:[%s1 + $0x80] sm:$0xff]
  %v32 = vld [vmem:[%s1 + $0x88] sm:$0xff]
  %v33 = vld [vmem:[%s1 + $0x90] sm:$0xff]
  %v34 = vld [vmem:[%s1 + $0x98] sm:$0xff]
  %v35 = vld [vmem:[%s1 + $0xa0] sm:$0xff]
  %v36 = vld [vmem:[%s1 + $0xa8] sm:$0xff]
  %v37 = vld [vmem:[%s1 + $0xb0] sm:$0xff]
  %v38 = vld [vmem:[%s1 + $0xb8] sm:$0xff]
  %v39 = vld [vmem:[%s1 + $0xc0] sm:$0xff]
  %v40 = vld [vmem:[%s1 + $0xc8] sm:$0xff]
  %v41 = vld [vmem:[%s1 + $0xd0] sm:$0xff]
  %v42 = vld [vmem:[%s1 + $0xd8] sm:$0xff]
  %v43 = vld [vmem:[%s1 + $0xe0] sm:$0xff]
  %v44 = vld [vmem:[%s1 + $0xe8] sm:$0xff]
  %v45 = vld [vmem:[%s1 + $0xf0] sm:$0xff]
  %v46 = vld [vmem:[%s1 + $0xf8] sm:$0xff]
  %v47 = vld [vmem:[%s1 + $0x100] sm:$0xff]
  %v48 = vld [vmem:[%s1 + $0x108] sm:$0xff]
  %v49 = vld [vmem:[%s1 + $0x110] sm:$0xff]
  %v50 = vld [vmem:[%s1 + $0x118] sm:$0xff]
  %v51 = vld [vmem:[%s2] sm:$0x3]
  %v53 = vperm.slane %v51, 0
  %v54 = vperm.slane %v51, 1
  %v57 = vadd.f32 %v53, 0.0
  %v58 = vadd.f32 %v54, 0.0
  %v59 = vld [vmem:[%s0] sm:$0xff]
  %v60 = vld [vmem:[%s0 + $0x8] sm:$0xff]
  %v61 = vpack.c.bf16 %v59, %v59
  %v62 = vpack.c.bf16 %v60, %v60
  %v81 = vunpack.c.l.b16 %v15
  %v82 = vunpack.c.h.b16 %v15
  %v83 = vunpack.c.l.b16 %v16
  %v84 = vunpack.c.h.b16 %v16
  %v85 = vunpack.c.l.b16 %v17
  %v86 = vunpack.c.h.b16 %v17
  %v87 = vunpack.c.l.b16 %v18
  %v88 = vunpack.c.h.b16 %v18
  %v89 = vunpack.c.l.b16 %v19
  %v90 = vunpack.c.h.b16 %v19
  %v91 = vunpack.c.l.b16 %v20
  %v92 = vunpack.c.h.b16 %v20
  %v93 = vunpack.c.l.b16 %v21
  %v94 = vunpack.c.h.b16 %v21
  %v95 = vunpack.c.l.b16 %v22
  %v96 = vunpack.c.h.b16 %v22
  %v97 = vunpack.c.l.b16 %v23
  %v98 = vunpack.c.h.b16 %v23
  %v99 = vunpack.c.l.b16 %v24
  %v100 = vunpack.c.h.b16 %v24
  %v101 = vunpack.c.l.b16 %v25
  %v102 = vunpack.c.h.b16 %v25
  %v103 = vunpack.c.l.b16 %v26
  %v104 = vunpack.c.h.b16 %v26
  %v105 = vunpack.c.l.b16 %v27
  %v106 = vunpack.c.h.b16 %v27
  %v107 = vunpack.c.l.b16 %v28
  %v108 = vunpack.c.h.b16 %v28
  %v109 = vunpack.c.l.b16 %v29
  %v110 = vunpack.c.h.b16 %v29
  %v111 = vunpack.c.l.b16 %v30
  %v112 = vunpack.c.h.b16 %v30
  %v113 = vunpack.c.l.b16 %v31
  %v114 = vunpack.c.h.b16 %v31
  %v115 = vunpack.c.l.b16 %v32
  %v116 = vunpack.c.h.b16 %v32
  %v117 = vpack.c.b16 %v83, %v81
  %v118 = vpack.c.b16 %v84, %v82
  %v119 = vpack.c.b16 %v87, %v85
  %v120 = vpack.c.b16 %v88, %v86
  %v121 = vpack.c.b16 %v91, %v89
  %v122 = vpack.c.b16 %v92, %v90
  %v123 = vpack.c.b16 %v95, %v93
  %v124 = vpack.c.b16 %v96, %v94
  %v125 = vpack.c.b16 %v99, %v97
  %v126 = vpack.c.b16 %v100, %v98
  %v127 = vpack.c.b16 %v103, %v101
  %v128 = vpack.c.b16 %v104, %v102
  %v129 = vpack.c.b16 %v107, %v105
  %v130 = vpack.c.b16 %v108, %v106
  %v131 = vpack.c.b16 %v111, %v109
  %v132 = vpack.c.b16 %v112, %v110
  %v133 = vpack.c.b16 %v115, %v113
  %v134 = vpack.c.b16 %v116, %v114
  %vm153 = vcmask 130048
  %v155 = vsel %vm153, %v62, 0
  %157 = vmatpush.bf16.msra.mxu0 %v131
  %158 = vmatpush.bf16.msra.mxu0 %v129
  %159 = vmatpush.bf16.msra.mxu0 %v127
  %160 = vmatpush.bf16.msra.mxu0 %v125
  %161 = vmatpush.bf16.msra.mxu0 %v123
  %162 = vmatpush.bf16.msra.mxu0 %v121
  %163 = vmatpush.bf16.msra.mxu0 %v119
  %164 = vmatpush.bf16.msra.mxu0 %v117
  %165 = vmatmul.bf16.gmra.mxu0 %v61
  %v166 = vpop.f32.mrf.mxu0
  %v167 = vadd.f32 0.0, %v166
  %v168 = vpop.f32.mrf.mxu0
  %169 = vdwg.mxu0
  %170 = vmatpush.bf16.msra.mxu0 0
  %171 = vmatpush.bf16.msra.mxu0 0
  %172 = vmatpush.bf16.msra.mxu0 0
  %173 = vmatpush.bf16.msra.mxu0 0
  %174 = vmatpush.bf16.msra.mxu0 0
  %175 = vmatpush.bf16.msra.mxu0 0
  %176 = vmatpush.bf16.msra.mxu0 0
  %177 = vmatpush.bf16.msra.mxu0 %v133
  %178 = vmatmul.bf16.gmra.mxu0 %v155
  %v179 = vpop.f32.mrf.mxu0
  %v180 = vadd.f32 %v167, %v179
  %v181 = vpop.f32.mrf.mxu0
  %182 = vdwg.mxu0
  %183 = vmatpush.bf16.msra.mxu0 %v132
  %184 = vmatpush.bf16.msra.mxu0 %v130
  %185 = vmatpush.bf16.msra.mxu0 %v128
  %186 = vmatpush.bf16.msra.mxu0 %v126
  %187 = vmatpush.bf16.msra.mxu0 %v124
  %188 = vmatpush.bf16.msra.mxu0 %v122
  %189 = vmatpush.bf16.msra.mxu0 %v120
  %190 = vmatpush.bf16.msra.mxu0 %v118
  %191 = vmatmul.bf16.gmra.mxu0 %v61
  %v192 = vpop.f32.mrf.mxu0
  %v193 = vadd.f32 0.0, %v192
  %v194 = vpop.f32.mrf.mxu0
  %195 = vdwg.mxu0
  %196 = vmatpush.bf16.msra.mxu0 0
  %197 = vmatpush.bf16.msra.mxu0 0
  %198 = vmatpush.bf16.msra.mxu0 0
  %199 = vmatpush.bf16.msra.mxu0 0
  %200 = vmatpush.bf16.msra.mxu0 0
  %201 = vmatpush.bf16.msra.mxu0 0
  %202 = vmatpush.bf16.msra.mxu0 0
  %203 = vmatpush.bf16.msra.mxu0 %v134
  %204 = vmatmul.bf16.gmra.mxu0 %v155
  %v205 = vpop.f32.mrf.mxu0
  %v206 = vadd.f32 %v193, %v205
  %v207 = vpop.f32.mrf.mxu0
  %208 = vdwg.mxu0
  %v209 = vadd.f32 %v57, %v180
  %v210 = vadd.f32 %v58, %v206
  %v211 = vld [vmem:[%s0] sm:$0xfe]
  %v212 = vld [vmem:[%s0 + $0x8] sm:$0xfe]
  %v213 = vld [vmem:[%s0 + $0x10] sm:$0x1]
  %v214 = vld [vmem:[%s0 + $0x18] sm:$0x1]
  %v215 = vpack.c.bf16 %v213, %v211
  %v216 = vpack.c.bf16 %v214, %v212
  %v218 = vshrl.u32 %v215, 16
  %v220 = vshll.u32 %v215, 16
  %v222 = vrot.slane %v220, 1
  %v223 = vor.u32 %v218, %v222
  %v225 = vshrl.u32 %v216, 16
  %v227 = vshll.u32 %v216, 16
  %v229 = vrot.slane %v227, 1
  %v230 = vor.u32 %v225, %v229
  %v250 = vunpack.c.l.b16 %v33
  %v251 = vunpack.c.h.b16 %v33
  %v252 = vunpack.c.l.b16 %v34
  %v253 = vunpack.c.h.b16 %v34
  %v254 = vunpack.c.l.b16 %v35
  %v255 = vunpack.c.h.b16 %v35
  %v256 = vunpack.c.l.b16 %v36
  %v257 = vunpack.c.h.b16 %v36
  %v258 = vunpack.c.l.b16 %v37
  %v259 = vunpack.c.h.b16 %v37
  %v260 = vunpack.c.l.b16 %v38
  %v261 = vunpack.c.h.b16 %v38
  %v262 = vunpack.c.l.b16 %v39
  %v263 = vunpack.c.h.b16 %v39
  %v264 = vunpack.c.l.b16 %v40
  %v265 = vunpack.c.h.b16 %v40
  %v266 = vunpack.c.l.b16 %v41
  %v267 = vunpack.c.h.b16 %v41
  %v268 = vunpack.c.l.b16 %v42
  %v269 = vunpack.c.h.b16 %v42
  %v270 = vunpack.c.l.b16 %v43
  %v271 = vunpack.c.h.b16 %v43
  %v272 = vunpack.c.l.b16 %v44
  %v273 = vunpack.c.h.b16 %v44
  %v274 = vunpack.c.l.b16 %v45
  %v275 = vunpack.c.h.b16 %v45
  %v276 = vunpack.c.l.b16 %v46
  %v277 = vunpack.c.h.b16 %v46
  %v278 = vunpack.c.l.b16 %v47
  %v279 = vunpack.c.h.b16 %v47
  %v280 = vunpack.c.l.b16 %v48
  %v281 = vunpack.c.h.b16 %v48
  %v282 = vunpack.c.l.b16 %v49
  %v283 = vunpack.c.h.b16 %v49
  %v284 = vunpack.c.l.b16 %v50
  %v285 = vunpack.c.h.b16 %v50
  %v286 = vpack.c.b16 %v252, %v250
  %v287 = vpack.c.b16 %v253, %v251
  %v288 = vpack.c.b16 %v256, %v254
  %v289 = vpack.c.b16 %v257, %v255
  %v290 = vpack.c.b16 %v260, %v258
  %v291 = vpack.c.b16 %v261, %v259
  %v292 = vpack.c.b16 %v264, %v262
  %v293 = vpack.c.b16 %v265, %v263
  %v294 = vpack.c.b16 %v268, %v266
  %v295 = vpack.c.b16 %v269, %v267
  %v296 = vpack.c.b16 %v272, %v270
  %v297 = vpack.c.b16 %v273, %v271
  %v298 = vpack.c.b16 %v276, %v274
  %v299 = vpack.c.b16 %v277, %v275
  %v300 = vpack.c.b16 %v280, %v278
  %v301 = vpack.c.b16 %v281, %v279
  %v302 = vpack.c.b16 %v284, %v282
  %v303 = vpack.c.b16 %v285, %v283
  %v323 = vsel %vm153, %v230, 0
  %325 = vmatpush.bf16.msra.mxu0 %v300
  %326 = vmatpush.bf16.msra.mxu0 %v298
  %327 = vmatpush.bf16.msra.mxu0 %v296
  %328 = vmatpush.bf16.msra.mxu0 %v294
  %329 = vmatpush.bf16.msra.mxu0 %v292
  %330 = vmatpush.bf16.msra.mxu0 %v290
  %331 = vmatpush.bf16.msra.mxu0 %v288
  %332 = vmatpush.bf16.msra.mxu0 %v286
  %333 = vmatmul.bf16.gmra.mxu0 %v223
  %v334 = vpop.f32.mrf.mxu0
  %v335 = vadd.f32 0.0, %v334
  %v336 = vpop.f32.mrf.mxu0
  %337 = vdwg.mxu0
  %338 = vmatpush.bf16.msra.mxu0 0
  %339 = vmatpush.bf16.msra.mxu0 0
  %340 = vmatpush.bf16.msra.mxu0 0
  %341 = vmatpush.bf16.msra.mxu0 0
  %342 = vmatpush.bf16.msra.mxu0 0
  %343 = vmatpush.bf16.msra.mxu0 0
  %344 = vmatpush.bf16.msra.mxu0 0
  %345 = vmatpush.bf16.msra.mxu0 %v302
  %346 = vmatmul.bf16.gmra.mxu0 %v323
  %v347 = vpop.f32.mrf.mxu0
  %v348 = vadd.f32 %v335, %v347
  %v349 = vpop.f32.mrf.mxu0
  %350 = vdwg.mxu0
  %351 = vmatpush.bf16.msra.mxu0 %v301
  %352 = vmatpush.bf16.msra.mxu0 %v299
  %353 = vmatpush.bf16.msra.mxu0 %v297
  %354 = vmatpush.bf16.msra.mxu0 %v295
  %355 = vmatpush.bf16.msra.mxu0 %v293
  %356 = vmatpush.bf16.msra.mxu0 %v291
  %357 = vmatpush.bf16.msra.mxu0 %v289
  %358 = vmatpush.bf16.msra.mxu0 %v287
  %359 = vmatmul.bf16.gmra.mxu0 %v223
  %v360 = vpop.f32.mrf.mxu0
  %v361 = vadd.f32 0.0, %v360
  %v362 = vpop.f32.mrf.mxu0
  %363 = vdwg.mxu0
  %364 = vmatpush.bf16.msra.mxu0 0
  %365 = vmatpush.bf16.msra.mxu0 0
  %366 = vmatpush.bf16.msra.mxu0 0
  %367 = vmatpush.bf16.msra.mxu0 0
  %368 = vmatpush.bf16.msra.mxu0 0
  %369 = vmatpush.bf16.msra.mxu0 0
  %370 = vmatpush.bf16.msra.mxu0 0
  %371 = vmatpush.bf16.msra.mxu0 %v303
  %372 = vmatmul.bf16.gmra.mxu0 %v323
  %v373 = vpop.f32.mrf.mxu0
  %v374 = vadd.f32 %v361, %v373
  %v375 = vpop.f32.mrf.mxu0
  %376 = vdwg.mxu0
  %v377 = vadd.f32 %v209, %v348
  %v378 = vadd.f32 %v210, %v374
  %v379 = vmax.f32 %v377, 0.0
  %v380 = vmax.f32 %v378, 0.0
  %v381 = vpack.c.bf16 %v380, %v379
  %382 = vst [vmem:[%s3] sm:$0xff] %v381
  %s383 = scalar_lea.vmem %s0, 32
  %v384 = vld [vmem:[%s383] sm:$0xff]
  %v385 = vld [vmem:[%s383 + $0x8] sm:$0xff]
  %v386 = vpack.c.bf16 %v384, %v384
  %v387 = vpack.c.bf16 %v385, %v385
  %v389 = vsel %vm153, %v387, 0
  %391 = vmatpush.bf16.msra.mxu0 %v131
  %392 = vmatpush.bf16.msra.mxu0 %v129
  %393 = vmatpush.bf16.msra.mxu0 %v127
  %394 = vmatpush.bf16.msra.mxu0 %v125
  %395 = vmatpush.bf16.msra.mxu0 %v123
  %396 = vmatpush.bf16.msra.mxu0 %v121
  %397 = vmatpush.bf16.msra.mxu0 %v119
  %398 = vmatpush.bf16.msra.mxu0 %v117
  %399 = vmatmul.bf16.gmra.mxu0 %v386
  %v400 = vpop.f32.mrf.mxu0
  %v401 = vadd.f32 0.0, %v400
  %v402 = vpop.f32.mrf.mxu0
  %403 = vdwg.mxu0
  %404 = vmatpush.bf16.msra.mxu0 0
  %405 = vmatpush.bf16.msra.mxu0 0
  %406 = vmatpush.bf16.msra.mxu0 0
  %407 = vmatpush.bf16.msra.mxu0 0
  %408 = vmatpush.bf16.msra.mxu0 0
  %409 = vmatpush.bf16.msra.mxu0 0
  %410 = vmatpush.bf16.msra.mxu0 0
  %411 = vmatpush.bf16.msra.mxu0 %v133
  %412 = vmatmul.bf16.gmra.mxu0 %v389
  %v413 = vpop.f32.mrf.mxu0
  %v414 = vadd.f32 %v401, %v413
  %v415 = vpop.f32.mrf.mxu0
  %416 = vdwg.mxu0
  %417 = vmatpush.bf16.msra.mxu0 %v132
  %418 = vmatpush.bf16.msra.mxu0 %v130
  %419 = vmatpush.bf16.msra.mxu0 %v128
  %420 = vmatpush.bf16.msra.mxu0 %v126
  %421 = vmatpush.bf16.msra.mxu0 %v124
  %422 = vmatpush.bf16.msra.mxu0 %v122
  %423 = vmatpush.bf16.msra.mxu0 %v120
  %424 = vmatpush.bf16.msra.mxu0 %v118
  %425 = vmatmul.bf16.gmra.mxu0 %v386
  %v426 = vpop.f32.mrf.mxu0
  %v427 = vadd.f32 0.0, %v426
  %v428 = vpop.f32.mrf.mxu0
  %429 = vdwg.mxu0
  %430 = vmatpush.bf16.msra.mxu0 0
  %431 = vmatpush.bf16.msra.mxu0 0
  %432 = vmatpush.bf16.msra.mxu0 0
  %433 = vmatpush.bf16.msra.mxu0 0
  %434 = vmatpush.bf16.msra.mxu0 0
  %435 = vmatpush.bf16.msra.mxu0 0
  %436 = vmatpush.bf16.msra.mxu0 0
  %437 = vmatpush.bf16.msra.mxu0 %v134
  %438 = vmatmul.bf16.gmra.mxu0 %v389
  %v439 = vpop.f32.mrf.mxu0
  %v440 = vadd.f32 %v427, %v439
  %v441 = vpop.f32.mrf.mxu0
  %442 = vdwg.mxu0
  %v443 = vadd.f32 %v57, %v414
  %v444 = vadd.f32 %v58, %v440
  %v445 = vld [vmem:[%s383] sm:$0xfe]
  %v446 = vld [vmem:[%s383 + $0x8] sm:$0xfe]
  %v447 = vld [vmem:[%s383 + $0x10] sm:$0x1]
  %v448 = vld [vmem:[%s383 + $0x18] sm:$0x1]
  %v449 = vpack.c.bf16 %v447, %v445
  %v450 = vpack.c.bf16 %v448, %v446
  %v452 = vshrl.u32 %v449, 16
  %v454 = vshll.u32 %v449, 16
  %v456 = vrot.slane %v454, 1
  %v457 = vor.u32 %v452, %v456
  %v459 = vshrl.u32 %v450, 16
  %v461 = vshll.u32 %v450, 16
  %v463 = vrot.slane %v461, 1
  %v464 = vor.u32 %v459, %v463
  %v467 = vsel %vm153, %v464, 0
  %469 = vmatpush.bf16.msra.mxu0 %v300
  %470 = vmatpush.bf16.msra.mxu0 %v298
  %471 = vmatpush.bf16.msra.mxu0 %v296
  %472 = vmatpush.bf16.msra.mxu0 %v294
  %473 = vmatpush.bf16.msra.mxu0 %v292
  %474 = vmatpush.bf16.msra.mxu0 %v290
  %475 = vmatpush.bf16.msra.mxu0 %v288
  %476 = vmatpush.bf16.msra.mxu0 %v286
  %477 = vmatmul.bf16.gmra.mxu0 %v457
  %v478 = vpop.f32.mrf.mxu0
  %v479 = vadd.f32 0.0, %v478
  %v480 = vpop.f32.mrf.mxu0
  %481 = vdwg.mxu0
  %482 = vmatpush.bf16.msra.mxu0 0
  %483 = vmatpush.bf16.msra.mxu0 0
  %484 = vmatpush.bf16.msra.mxu0 0
  %485 = vmatpush.bf16.msra.mxu0 0
  %486 = vmatpush.bf16.msra.mxu0 0
  %487 = vmatpush.bf16.msra.mxu0 0
  %488 = vmatpush.bf16.msra.mxu0 0
  %489 = vmatpush.bf16.msra.mxu0 %v302
  %490 = vmatmul.bf16.gmra.mxu0 %v467
  %v491 = vpop.f32.mrf.mxu0
  %v492 = vadd.f32 %v479, %v491
  %v493 = vpop.f32.mrf.mxu0
  %494 = vdwg.mxu0
  %495 = vmatpush.bf16.msra.mxu0 %v301
  %496 = vmatpush.bf16.msra.mxu0 %v299
  %497 = vmatpush.bf16.msra.mxu0 %v297
  %498 = vmatpush.bf16.msra.mxu0 %v295
  %499 = vmatpush.bf16.msra.mxu0 %v293
  %500 = vmatpush.bf16.msra.mxu0 %v291
  %501 = vmatpush.bf16.msra.mxu0 %v289
  %502 = vmatpush.bf16.msra.mxu0 %v287
  %503 = vmatmul.bf16.gmra.mxu0 %v457
  %v504 = vpop.f32.mrf.mxu0
  %v505 = vadd.f32 0.0, %v504
  %v506 = vpop.f32.mrf.mxu0
  %507 = vdwg.mxu0
  %508 = vmatpush.bf16.msra.mxu0 0
  %509 = vmatpush.bf16.msra.mxu0 0
  %510 = vmatpush.bf16.msra.mxu0 0
  %511 = vmatpush.bf16.msra.mxu0 0
  %512 = vmatpush.bf16.msra.mxu0 0
  %513 = vmatpush.bf16.msra.mxu0 0
  %514 = vmatpush.bf16.msra.mxu0 0
  %515 = vmatpush.bf16.msra.mxu0 %v303
  %516 = vmatmul.bf16.gmra.mxu0 %v467
  %v517 = vpop.f32.mrf.mxu0
  %v518 = vadd.f32 %v505, %v517
  %v519 = vpop.f32.mrf.mxu0
  %520 = vdwg.mxu0
  %v521 = vadd.f32 %v443, %v492
  %v522 = vadd.f32 %v444, %v518
  %v523 = vmax.f32 %v521, 0.0
  %v524 = vmax.f32 %v522, 0.0
  %v525 = vpack.c.bf16 %v524, %v523
  %s526 = scalar_lea.vmem %s3, 8
  %527 = vst [vmem:[%s526] sm:$0xff] %v525
  // Predicated region
  $region14: #{forward.5} parent=0 // pred_check
    _
  $region15: #{forward.5} parent=0 // pred_check_branch
    %529 = sbr.rel (0) target = $region17
  $region16: #{forward.5} parent=0 // pred_region
    _
  $region17: #{forward.5} parent=0 // pred_fallthru
    _
  // Predicated region
  $region18: #{forward.5} parent=0 // pred_check
    _
  $region19: #{forward.5} parent=0 // pred_check_branch
    %531 = sbr.rel (0) target = $region21
  $region20: #{forward.5} parent=0 // pred_region
    _
  $region21: #{forward.5} parent=0 // pred_fallthru
    _

// kernel: forward.6
$region0: #{forward.6}
  #allocation0 [shape = 'u32[]', space=smem, size = 0x4, offset = 0x4, fixed_abs, tag = 'smem constant byte address 0x4 - core index']
  #allocation1 [shape = 'u32[72,128]{1,0:T(1,128)}', space=vmem, size = 0x9000, scoped, tag = 'internal scratch']
  %s0 = inlined_call_operand.vmem [shape: bf16[2,5,640], index: 0, kind: input, shape index: {}]
  %s1 = inlined_call_operand.vmem [shape: bf16[1280,160], index: 1, kind: input, shape index: {}]
  %s2 = inlined_call_operand.vmem [shape: f32[1,160], index: 2, kind: input, shape index: {}]
  %s3 = inlined_call_operand.vmem [shape: bf16[2,4,160], index: 3, kind: output, shape index: {}]
  %s4 = sld [smem:[#allocation0]]
  $region22: #{forward.6} parent=0
    _
  %s6 = ssub.s32 1, %s4
  %s7 = scalar_select 0, %s6, %s4
  // Predicated region
  $region2: #{forward.6} parent=0 // pred_check
    _
  $region3: #{forward.6} parent=0 // pred_check_branch
    %9 = sbr.rel (0) target = $region5
  $region4: #{forward.6} parent=0 // pred_region
    _
  $region5: #{forward.6} parent=0 // pred_fallthru
    _
  // Predicated region
  $region6: #{forward.6} parent=0 // pred_check
    _
  $region7: #{forward.6} parent=0 // pred_check_branch
    %11 = sbr.rel (0) target = $region9
  $region8: #{forward.6} parent=0 // pred_region
    _
  $region9: #{forward.6} parent=0 // pred_fallthru
    _
  // Predicated region
  $region10: #{forward.6} parent=0 // pred_check
    _
  $region11: #{forward.6} parent=0 // pred_check_branch
    %13 = sbr.rel (0) target = $region13
  $region12: #{forward.6} parent=0 // pred_region
    _
  $region13: #{forward.6} parent=0 // pred_fallthru
    _
  %v14 = vld [vmem:[%s1] sm:$0xff]
  %v15 = vld [vmem:[%s1 + $0x8] sm:$0xff]
  %v16 = vld [vmem:[%s1 + $0x10] sm:$0xff]
  %v17 = vld [vmem:[%s1 + $0x18] sm:$0xff]
  %v18 = vld [vmem:[%s1 + $0x20] sm:$0xff]
  %v19 = vld [vmem:[%s1 + $0x28] sm:$0xff]
  %v20 = vld [vmem:[%s1 + $0x30] sm:$0xff]
  %v21 = vld [vmem:[%s1 + $0x38] sm:$0xff]
  %v22 = vld [vmem:[%s1 + $0x40] sm:$0xff]
  %v23 = vld [vmem:[%s1 + $0x48] sm:$0xff]
  %v24 = vld [vmem:[%s1 + $0x50] sm:$0xff]
  %v25 = vld [vmem:[%s1 + $0x58] sm:$0xff]
  %v26 = vld [vmem:[%s1 + $0x60] sm:$0xff]
  %v27 = vld [vmem:[%s1 + $0x68] sm:$0xff]
  %v28 = vld [vmem:[%s1 + $0x70] sm:$0xff]
  %v29 = vld [vmem:[%s1 + $0x78] sm:$0xff]
  %v30 = vld [vmem:[%s1 + $0x80] sm:$0xff]
  %v31 = vld [vmem:[%s1 + $0x88] sm:$0xff]
  %v32 = vld [vmem:[%s1 + $0x90] sm:$0xff]
  %v33 = vld [vmem:[%s1 + $0x98] sm:$0xff]
  %v34 = vld [vmem:[%s1 + $0xa0] sm:$0xff]
  %v35 = vld [vmem:[%s1 + $0xa8] sm:$0xff]
  %v36 = vld [vmem:[%s1 + $0xb0] sm:$0xff]
  %v37 = vld [vmem:[%s1 + $0xb8] sm:$0xff]
  %v38 = vld [vmem:[%s1 + $0xc0] sm:$0xff]
  %v39 = vld [vmem:[%s1 + $0xc8] sm:$0xff]
  %v40 = vld [vmem:[%s1 + $0xd0] sm:$0xff]
  %v41 = vld [vmem:[%s1 + $0xd8] sm:$0xff]
  %v42 = vld [vmem:[%s1 + $0xe0] sm:$0xff]
  %v43 = vld [vmem:[%s1 + $0xe8] sm:$0xff]
  %v44 = vld [vmem:[%s1 + $0xf0] sm:$0xff]
  %v45 = vld [vmem:[%s1 + $0xf8] sm:$0xff]
  %v46 = vld [vmem:[%s1 + $0x100] sm:$0xff]
  %v47 = vld [vmem:[%s1 + $0x108] sm:$0xff]
  %v48 = vld [vmem:[%s1 + $0x110] sm:$0xff]
  %v49 = vld [vmem:[%s1 + $0x118] sm:$0xff]
  %v50 = vld [vmem:[%s1 + $0x120] sm:$0xff]
  %v51 = vld [vmem:[%s1 + $0x128] sm:$0xff]
  %v52 = vld [vmem:[%s1 + $0x130] sm:$0xff]
  %v53 = vld [vmem:[%s1 + $0x138] sm:$0xff]
  %v54 = vld [vmem:[%s1 + $0x140] sm:$0xff]
  %v55 = vld [vmem:[%s1 + $0x148] sm:$0xff]
  %v56 = vld [vmem:[%s1 + $0x150] sm:$0xff]
  %v57 = vld [vmem:[%s1 + $0x158] sm:$0xff]
  %v58 = vld [vmem:[%s1 + $0x160] sm:$0xff]
  %v59 = vld [vmem:[%s1 + $0x168] sm:$0xff]
  %v60 = vld [vmem:[%s1 + $0x170] sm:$0xff]
  %v61 = vld [vmem:[%s1 + $0x178] sm:$0xff]
  %v62 = vld [vmem:[%s1 + $0x180] sm:$0xff]
  %v63 = vld [vmem:[%s1 + $0x188] sm:$0xff]
  %v64 = vld [vmem:[%s1 + $0x190] sm:$0xff]
  %v65 = vld [vmem:[%s1 + $0x198] sm:$0xff]
  %v66 = vld [vmem:[%s1 + $0x1a0] sm:$0xff]
  %v67 = vld [vmem:[%s1 + $0x1a8] sm:$0xff]
  %v68 = vld [vmem:[%s1 + $0x1b0] sm:$0xff]
  %v69 = vld [vmem:[%s1 + $0x1b8] sm:$0xff]
  %v70 = vld [vmem:[%s1 + $0x1c0] sm:$0xff]
  %v71 = vld [vmem:[%s1 + $0x1c8] sm:$0xff]
  %v72 = vld [vmem:[%s1 + $0x1d0] sm:$0xff]
  %v73 = vld [vmem:[%s1 + $0x1d8] sm:$0xff]
  %v74 = vld [vmem:[%s1 + $0x1e0] sm:$0xff]
  %v75 = vld [vmem:[%s1 + $0x1e8] sm:$0xff]
  %v76 = vld [vmem:[%s1 + $0x1f0] sm:$0xff]
  %v77 = vld [vmem:[%s1 + $0x1f8] sm:$0xff]
  %v78 = vld [vmem:[%s1 + $0x200] sm:$0xff]
  %v79 = vld [vmem:[%s1 + $0x208] sm:$0xff]
  %v80 = vld [vmem:[%s1 + $0x210] sm:$0xff]
  %v81 = vld [vmem:[%s1 + $0x218] sm:$0xff]
  %v82 = vld [vmem:[%s1 + $0x220] sm:$0xff]
  %v83 = vld [vmem:[%s1 + $0x228] sm:$0xff]
  %v84 = vld [vmem:[%s1 + $0x230] sm:$0xff]
  %v85 = vld [vmem:[%s1 + $0x238] sm:$0xff]
  %v86 = vld [vmem:[%s1 + $0x240] sm:$0xff]
  %v87 = vld [vmem:[%s1 + $0x248] sm:$0xff]
  %v88 = vld [vmem:[%s1 + $0x250] sm:$0xff]
  %v89 = vld [vmem:[%s1 + $0x258] sm:$0xff]
  %v90 = vld [vmem:[%s1 + $0x260] sm:$0xff]
  %v91 = vld [vmem:[%s1 + $0x268] sm:$0xff]
  %v92 = vld [vmem:[%s1 + $0x270] sm:$0xff]
  %v93 = vld [vmem:[%s1 + $0x278] sm:$0xff]
  %v94 = vld [vmem:[%s1 + $0x280] sm:$0xff]
  %v95 = vld [vmem:[%s1 + $0x288] sm:$0xff]
  %v96 = vld [vmem:[%s1 + $0x290] sm:$0xff]
  %v97 = vld [vmem:[%s1 + $0x298] sm:$0xff]
  %v98 = vld [vmem:[%s1 + $0x2a0] sm:$0xff]
  %v99 = vld [vmem:[%s1 + $0x2a8] sm:$0xff]
  %v100 = vld [vmem:[%s1 + $0x2b0] sm:$0xff]
  %v101 = vld [vmem:[%s1 + $0x2b8] sm:$0xff]
  %v102 = vld [vmem:[%s1 + $0x2c0] sm:$0xff]
  %v103 = vld [vmem:[%s1 + $0x2c8] sm:$0xff]
  %v104 = vld [vmem:[%s1 + $0x2d0] sm:$0xff]
  %v105 = vld [vmem:[%s1 + $0x2d8] sm:$0xff]
  %v106 = vld [vmem:[%s1 + $0x2e0] sm:$0xff]
  %v107 = vld [vmem:[%s1 + $0x2e8] sm:$0xff]
  %v108 = vld [vmem:[%s1 + $0x2f0] sm:$0xff]
  %v109 = vld [vmem:[%s1 + $0x2f8] sm:$0xff]
  %v110 = vld [vmem:[%s1 + $0x300] sm:$0xff]
  %v111 = vld [vmem:[%s1 + $0x308] sm:$0xff]
  %v112 = vld [vmem:[%s1 + $0x310] sm:$0xff]
  %v113 = vld [vmem:[%s1 + $0x318] sm:$0xff]
  %v114 = vld [vmem:[%s1 + $0x320] sm:$0xff]
  %v115 = vld [vmem:[%s1 + $0x328] sm:$0xff]
  %v116 = vld [vmem:[%s1 + $0x330] sm:$0xff]
  %v117 = vld [vmem:[%s1 + $0x338] sm:$0xff]
  %v118 = vld [vmem:[%s1 + $0x340] sm:$0xff]
  %v119 = vld [vmem:[%s1 + $0x348] sm:$0xff]
  %v120 = vld [vmem:[%s1 + $0x350] sm:$0xff]
  %v121 = vld [vmem:[%s1 + $0x358] sm:$0xff]
  %v122 = vld [vmem:[%s1 + $0x360] sm:$0xff]
  %v123 = vld [vmem:[%s1 + $0x368] sm:$0xff]
  %v124 = vld [vmem:[%s1 + $0x370] sm:$0xff]
  %v125 = vld [vmem:[%s1 + $0x378] sm:$0xff]
  %v126 = vld [vmem:[%s1 + $0x380] sm:$0xff]
  %v127 = vld [vmem:[%s1 + $0x388] sm:$0xff]
  %v128 = vld [vmem:[%s1 + $0x390] sm:$0xff]
  %v129 = vld [vmem:[%s1 + $0x398] sm:$0xff]
  %v130 = vld [vmem:[%s1 + $0x3a0] sm:$0xff]
  %v131 = vld [vmem:[%s1 + $0x3a8] sm:$0xff]
  %v132 = vld [vmem:[%s1 + $0x3b0] sm:$0xff]
  %v133 = vld [vmem:[%s1 + $0x3b8] sm:$0xff]
  %v134 = vld [vmem:[%s1 + $0x3c0] sm:$0xff]
  %v135 = vld [vmem:[%s1 + $0x3c8] sm:$0xff]
  %v136 = vld [vmem:[%s1 + $0x3d0] sm:$0xff]
  %v137 = vld [vmem:[%s1 + $0x3d8] sm:$0xff]
  %v138 = vld [vmem:[%s1 + $0x3e0] sm:$0xff]
  %v139 = vld [vmem:[%s1 + $0x3e8] sm:$0xff]
  %v140 = vld [vmem:[%s1 + $0x3f0] sm:$0xff]
  %v141 = vld [vmem:[%s1 + $0x3f8] sm:$0xff]
  %v142 = vld [vmem:[%s1 + $0x400] sm:$0xff]
  %v143 = vld [vmem:[%s1 + $0x408] sm:$0xff]
  %v144 = vld [vmem:[%s1 + $0x410] sm:$0xff]
  %v145 = vld [vmem:[%s1 + $0x418] sm:$0xff]
  %v146 = vld [vmem:[%s1 + $0x420] sm:$0xff]
  %v147 = vld [vmem:[%s1 + $0x428] sm:$0xff]
  %v148 = vld [vmem:[%s1 + $0x430] sm:$0xff]
  %v149 = vld [vmem:[%s1 + $0x438] sm:$0xff]
  %v150 = vld [vmem:[%s1 + $0x440] sm:$0xff]
  %v151 = vld [vmem:[%s1 + $0x448] sm:$0xff]
  %v152 = vld [vmem:[%s1 + $0x450] sm:$0xff]
  %v153 = vld [vmem:[%s1 + $0x458] sm:$0xff]
  %v154 = vld [vmem:[%s1 + $0x460] sm:$0xff]
  %v155 = vld [vmem:[%s1 + $0x468] sm:$0xff]
  %v156 = vld [vmem:[%s1 + $0x470] sm:$0xff]
  %v157 = vld [vmem:[%s1 + $0x478] sm:$0xff]
  %v158 = vld [vmem:[%s1 + $0x480] sm:$0xff]
  %v159 = vld [vmem:[%s1 + $0x488] sm:$0xff]
  %v160 = vld [vmem:[%s1 + $0x490] sm:$0xff]
  %v161 = vld [vmem:[%s1 + $0x498] sm:$0xff]
  %v162 = vld [vmem:[%s1 + $0x4a0] sm:$0xff]
  %v163 = vld [vmem:[%s1 + $0x4a8] sm:$0xff]
  %v164 = vld [vmem:[%s1 + $0x4b0] sm:$0xff]
  %v165 = vld [vmem:[%s1 + $0x4b8] sm:$0xff]
  %v166 = vld [vmem:[%s1 + $0x4c0] sm:$0xff]
  %v167 = vld [vmem:[%s1 + $0x4c8] sm:$0xff]
  %v168 = vld [vmem:[%s1 + $0x4d0] sm:$0xff]
  %v169 = vld [vmem:[%s1 + $0x4d8] sm:$0xff]
  %v170 = vld [vmem:[%s1 + $0x4e0] sm:$0xff]
  %v171 = vld [vmem:[%s1 + $0x4e8] sm:$0xff]
  %v172 = vld [vmem:[%s1 + $0x4f0] sm:$0xff]
  %v173 = vld [vmem:[%s1 + $0x4f8] sm:$0xff]
  %v174 = vld [vmem:[%s2] sm:$0x3]
  %v176 = vperm.slane %v174, 0
  %v177 = vperm.slane %v174, 1
  %v180 = vadd.f32 %v176, 0.0
  %v181 = vadd.f32 %v177, 0.0
  %v182 = vld [vmem:[%s0] sm:$0x33]
  %v183 = vld [vmem:[%s0 + $0x8] sm:$0x33]
  %v184 = vld [vmem:[%s0 + $0x10] sm:$0x3]
  %v188 = vunpack.c.l.b16 %v182
  %v189 = vunpack.c.h.b16 %v182
  %v190 = vunpack.c.l.b16 %v183
  %v191 = vunpack.c.h.b16 %v183
  %v192 = vunpack.c.l.b16 %v184
  %v193 = vpack.c.b16 %v188, %v188
  %v194 = vpack.c.b16 %v189, %v189
  %v195 = vpack.c.b16 %v190, %v190
  %v196 = vpack.c.b16 %v191, %v191
  %v197 = vpack.c.b16 %v192, %v192
  %v283 = vunpack.c.l.b16 %v14
  %v284 = vunpack.c.h.b16 %v14
  %v285 = vunpack.c.l.b16 %v15
  %v286 = vunpack.c.h.b16 %v15
  %v287 = vunpack.c.l.b16 %v16
  %v288 = vunpack.c.h.b16 %v16
  %v289 = vunpack.c.l.b16 %v17
  %v290 = vunpack.c.h.b16 %v17
  %v291 = vunpack.c.l.b16 %v18
  %v292 = vunpack.c.h.b16 %v18
  %v293 = vunpack.c.l.b16 %v19
  %v294 = vunpack.c.h.b16 %v19
  %v295 = vunpack.c.l.b16 %v20
  %v296 = vunpack.c.h.b16 %v20
  %v297 = vunpack.c.l.b16 %v21
  %v298 = vunpack.c.h.b16 %v21
  %v299 = vunpack.c.l.b16 %v22
  %v300 = vunpack.c.h.b16 %v22
  %v301 = vunpack.c.l.b16 %v23
  %v302 = vunpack.c.h.b16 %v23
  %v303 = vunpack.c.l.b16 %v24
  %v304 = vunpack.c.h.b16 %v24
  %v305 = vunpack.c.l.b16 %v25
  %v306 = vunpack.c.h.b16 %v25
  %v307 = vunpack.c.l.b16 %v26
  %v308 = vunpack.c.h.b16 %v26
  %v309 = vunpack.c.l.b16 %v27
  %v310 = vunpack.c.h.b16 %v27
  %v311 = vunpack.c.l.b16 %v28
  %v312 = vunpack.c.h.b16 %v28
  %v313 = vunpack.c.l.b16 %v29
  %v314 = vunpack.c.h.b16 %v29
  %v315 = vunpack.c.l.b16 %v30
  %v316 = vunpack.c.h.b16 %v30
  %v317 = vunpack.c.l.b16 %v31
  %v318 = vunpack.c.h.b16 %v31
  %v319 = vunpack.c.l.b16 %v32
  %v320 = vunpack.c.h.b16 %v32
  %v321 = vunpack.c.l.b16 %v33
  %v322 = vunpack.c.h.b16 %v33
  %v323 = vunpack.c.l.b16 %v34
  %v324 = vunpack.c.h.b16 %v34
  %v325 = vunpack.c.l.b16 %v35
  %v326 = vunpack.c.h.b16 %v35
  %v327 = vunpack.c.l.b16 %v36
  %v328 = vunpack.c.h.b16 %v36
  %v329 = vunpack.c.l.b16 %v37
  %v330 = vunpack.c.h.b16 %v37
  %v331 = vunpack.c.l.b16 %v38
  %v332 = vunpack.c.h.b16 %v38
  %v333 = vunpack.c.l.b16 %v39
  %v334 = vunpack.c.h.b16 %v39
  %v335 = vunpack.c.l.b16 %v40
  %v336 = vunpack.c.h.b16 %v40
  %v337 = vunpack.c.l.b16 %v41
  %v338 = vunpack.c.h.b16 %v41
  %v339 = vunpack.c.l.b16 %v42
  %v340 = vunpack.c.h.b16 %v42
  %v341 = vunpack.c.l.b16 %v43
  %v342 = vunpack.c.h.b16 %v43
  %v343 = vunpack.c.l.b16 %v44
  %v344 = vunpack.c.h.b16 %v44
  %v345 = vunpack.c.l.b16 %v45
  %v346 = vunpack.c.h.b16 %v45
  %v347 = vunpack.c.l.b16 %v46
  %v348 = vunpack.c.h.b16 %v46
  %v349 = vunpack.c.l.b16 %v47
  %v350 = vunpack.c.h.b16 %v47
  %v351 = vunpack.c.l.b16 %v48
  %v352 = vunpack.c.h.b16 %v48
  %v353 = vunpack.c.l.b16 %v49
  %v354 = vunpack.c.h.b16 %v49
  %v355 = vunpack.c.l.b16 %v50
  %v356 = vunpack.c.h.b16 %v50
  %v357 = vunpack.c.l.b16 %v51
  %v358 = vunpack.c.h.b16 %v51
  %v359 = vunpack.c.l.b16 %v52
  %v360 = vunpack.c.h.b16 %v52
  %v361 = vunpack.c.l.b16 %v53
  %v362 = vunpack.c.h.b16 %v53
  %v363 = vunpack.c.l.b16 %v54
  %v364 = vunpack.c.h.b16 %v54
  %v365 = vunpack.c.l.b16 %v55
  %v366 = vunpack.c.h.b16 %v55
  %v367 = vunpack.c.l.b16 %v56
  %v368 = vunpack.c.h.b16 %v56
  %v369 = vunpack.c.l.b16 %v57
  %v370 = vunpack.c.h.b16 %v57
  %v371 = vunpack.c.l.b16 %v58
  %v372 = vunpack.c.h.b16 %v58
  %v373 = vunpack.c.l.b16 %v59
  %v374 = vunpack.c.h.b16 %v59
  %v375 = vunpack.c.l.b16 %v60
  %v376 = vunpack.c.h.b16 %v60
  %v377 = vunpack.c.l.b16 %v61
  %v378 = vunpack.c.h.b16 %v61
  %v379 = vunpack.c.l.b16 %v62
  %v380 = vunpack.c.h.b16 %v62
  %v381 = vunpack.c.l.b16 %v63
  %v382 = vunpack.c.h.b16 %v63
  %v383 = vunpack.c.l.b16 %v64
  %v384 = vunpack.c.h.b16 %v64
  %v385 = vunpack.c.l.b16 %v65
  %v386 = vunpack.c.h.b16 %v65
  %v387 = vunpack.c.l.b16 %v66
  %v388 = vunpack.c.h.b16 %v66
  %v389 = vunpack.c.l.b16 %v67
  %v390 = vunpack.c.h.b16 %v67
  %v391 = vunpack.c.l.b16 %v68
  %v392 = vunpack.c.h.b16 %v68
  %v393 = vunpack.c.l.b16 %v69
  %v394 = vunpack.c.h.b16 %v69
  %v395 = vunpack.c.l.b16 %v70
  %v396 = vunpack.c.h.b16 %v70
  %v397 = vunpack.c.l.b16 %v71
  %v398 = vunpack.c.h.b16 %v71
  %v399 = vunpack.c.l.b16 %v72
  %v400 = vunpack.c.h.b16 %v72
  %v401 = vunpack.c.l.b16 %v73
  %v402 = vunpack.c.h.b16 %v73
  %v403 = vunpack.c.l.b16 %v74
  %v404 = vunpack.c.h.b16 %v74
  %v405 = vunpack.c.l.b16 %v75
  %v406 = vunpack.c.h.b16 %v75
  %v407 = vunpack.c.l.b16 %v76
  %v408 = vunpack.c.h.b16 %v76
  %v409 = vunpack.c.l.b16 %v77
  %v410 = vunpack.c.h.b16 %v77
  %v411 = vunpack.c.l.b16 %v78
  %v412 = vunpack.c.h.b16 %v78
  %v413 = vunpack.c.l.b16 %v79
  %v414 = vunpack.c.h.b16 %v79
  %v415 = vunpack.c.l.b16 %v80
  %v416 = vunpack.c.h.b16 %v80
  %v417 = vunpack.c.l.b16 %v81
  %v418 = vunpack.c.h.b16 %v81
  %v419 = vunpack.c.l.b16 %v82
  %v420 = vunpack.c.h.b16 %v82
  %v421 = vunpack.c.l.b16 %v83
  %v422 = vunpack.c.h.b16 %v83
  %v423 = vunpack.c.l.b16 %v84
  %v424 = vunpack.c.h.b16 %v84
  %v425 = vunpack.c.l.b16 %v85
  %v426 = vunpack.c.h.b16 %v85
  %v427 = vunpack.c.l.b16 %v86
  %v428 = vunpack.c.h.b16 %v86
  %v429 = vunpack.c.l.b16 %v87
  %v430 = vunpack.c.h.b16 %v87
  %v431 = vunpack.c.l.b16 %v88
  %v432 = vunpack.c.h.b16 %v88
  %v433 = vunpack.c.l.b16 %v89
  %v434 = vunpack.c.h.b16 %v89
  %v435 = vunpack.c.l.b16 %v90
  %v436 = vunpack.c.h.b16 %v90
  %v437 = vunpack.c.l.b16 %v91
  %v438 = vunpack.c.h.b16 %v91
  %v439 = vunpack.c.l.b16 %v92
  %v440 = vunpack.c.h.b16 %v92
  %v441 = vunpack.c.l.b16 %v93
  %v442 = vunpack.c.h.b16 %v93
  %v443 = vpack.c.b16 %v285, %v283
  %v444 = vpack.c.b16 %v286, %v284
  %v445 = vpack.c.b16 %v289, %v287
  %v446 = vpack.c.b16 %v290, %v288
  %v447 = vpack.c.b16 %v293, %v291
  %v448 = vpack.c.b16 %v294, %v292
  %v449 = vpack.c.b16 %v297, %v295
  %v450 = vpack.c.b16 %v298, %v296
  %v451 = vpack.c.b16 %v301, %v299
  %v452 = vpack.c.b16 %v302, %v300
  %v453 = vpack.c.b16 %v305, %v303
  %v454 = vpack.c.b16 %v306, %v304
  %v455 = vpack.c.b16 %v309, %v307
  %v456 = vpack.c.b16 %v310, %v308
  %v457 = vpack.c.b16 %v313, %v311
  %v458 = vpack.c.b16 %v314, %v312
  %v459 = vpack.c.b16 %v317, %v315
  %v460 = vpack.c.b16 %v318, %v316
  %v461 = vpack.c.b16 %v321, %v319
  %v462 = vpack.c.b16 %v322, %v320
  %v463 = vpack.c.b16 %v325, %v323
  %v464 = vpack.c.b16 %v326, %v324
  %v465 = vpack.c.b16 %v329, %v327
  %v466 = vpack.c.b16 %v330, %v328
  %v467 = vpack.c.b16 %v333, %v331
  %v468 = vpack.c.b16 %v334, %v332
  %v469 = vpack.c.b16 %v337, %v335
  %v470 = vpack.c.b16 %v338, %v336
  %v471 = vpack.c.b16 %v341, %v339
  %v472 = vpack.c.b16 %v342, %v340
  %v473 = vpack.c.b16 %v345, %v343
  %v474 = vpack.c.b16 %v346, %v344
  %v475 = vpack.c.b16 %v349, %v347
  %v476 = vpack.c.b16 %v350, %v348
  %v477 = vpack.c.b16 %v353, %v351
  %v478 = vpack.c.b16 %v354, %v352
  %v479 = vpack.c.b16 %v357, %v355
  %v480 = vpack.c.b16 %v358, %v356
  %v481 = vpack.c.b16 %v361, %v359
  %v482 = vpack.c.b16 %v362, %v360
  %v483 = vpack.c.b16 %v365, %v363
  %v484 = vpack.c.b16 %v366, %v364
  %v485 = vpack.c.b16 %v369, %v367
  %v486 = vpack.c.b16 %v370, %v368
  %v487 = vpack.c.b16 %v373, %v371
  %v488 = vpack.c.b16 %v374, %v372
  %v489 = vpack.c.b16 %v377, %v375
  %v490 = vpack.c.b16 %v378, %v376
  %v491 = vpack.c.b16 %v381, %v379
  %v492 = vpack.c.b16 %v382, %v380
  %v493 = vpack.c.b16 %v385, %v383
  %v494 = vpack.c.b16 %v386, %v384
  %v495 = vpack.c.b16 %v389, %v387
  %v496 = vpack.c.b16 %v390, %v388
  %v497 = vpack.c.b16 %v393, %v391
  %v498 = vpack.c.b16 %v394, %v392
  %v499 = vpack.c.b16 %v397, %v395
  %v500 = vpack.c.b16 %v398, %v396
  %v501 = vpack.c.b16 %v401, %v399
  %v502 = vpack.c.b16 %v402, %v400
  %v503 = vpack.c.b16 %v405, %v403
  %v504 = vpack.c.b16 %v406, %v404
  %v505 = vpack.c.b16 %v409, %v407
  %v506 = vpack.c.b16 %v410, %v408
  %v507 = vpack.c.b16 %v413, %v411
  %v508 = vpack.c.b16 %v414, %v412
  %v509 = vpack.c.b16 %v417, %v415
  %v510 = vpack.c.b16 %v418, %v416
  %v511 = vpack.c.b16 %v421, %v419
  %v512 = vpack.c.b16 %v422, %v420
  %v513 = vpack.c.b16 %v425, %v423
  %v514 = vpack.c.b16 %v426, %v424
  %v515 = vpack.c.b16 %v429, %v427
  %v516 = vpack.c.b16 %v430, %v428
  %v517 = vpack.c.b16 %v433, %v431
  %v518 = vpack.c.b16 %v434, %v432
  %v519 = vpack.c.b16 %v437, %v435
  %v520 = vpack.c.b16 %v438, %v436
  %v521 = vpack.c.b16 %v441, %v439
  %v522 = vpack.c.b16 %v442, %v440
  %603 = vmatpush.bf16.msra.mxu0 %v457
  %604 = vmatpush.bf16.msra.mxu0 %v455
  %605 = vmatpush.bf16.msra.mxu0 %v453
  %606 = vmatpush.bf16.msra.mxu0 %v451
  %607 = vmatpush.bf16.msra.mxu0 %v449
  %608 = vmatpush.bf16.msra.mxu0 %v447
  %609 = vmatpush.bf16.msra.mxu0 %v445
  %610 = vmatpush.bf16.msra.mxu0 %v443
  %611 = vmatmul.bf16.gmra.mxu0 %v193
  %v612 = vpop.f32.mrf.mxu0
  %v613 = vadd.f32 0.0, %v612
  %v614 = vpop.f32.mrf.mxu0
  %615 = vdwg.mxu0
  %616 = vmatpush.bf16.msra.mxu0 %v473
  %617 = vmatpush.bf16.msra.mxu0 %v471
  %618 = vmatpush.bf16.msra.mxu0 %v469
  %619 = vmatpush.bf16.msra.mxu0 %v467
  %620 = vmatpush.bf16.msra.mxu0 %v465
  %621 = vmatpush.bf16.msra.mxu0 %v463
  %622 = vmatpush.bf16.msra.mxu0 %v461
  %623 = vmatpush.bf16.msra.mxu0 %v459
  %624 = vmatmul.bf16.gmra.mxu0 %v194
  %v625 = vpop.f32.mrf.mxu0
  %v626 = vadd.f32 %v613, %v625
  %v627 = vpop.f32.mrf.mxu0
  %628 = vdwg.mxu0
  %629 = vmatpush.bf16.msra.mxu0 %v489
  %630 = vmatpush.bf16.msra.mxu0 %v487
  %631 = vmatpush.bf16.msra.mxu0 %v485
  %632 = vmatpush.bf16.msra.mxu0 %v483
  %633 = vmatpush.bf16.msra.mxu0 %v481
  %634 = vmatpush.bf16.msra.mxu0 %v479
  %635 = vmatpush.bf16.msra.mxu0 %v477
  %636 = vmatpush.bf16.msra.mxu0 %v475
  %637 = vmatmul.bf16.gmra.mxu0 %v195
  %v638 = vpop.f32.mrf.mxu0
  %v639 = vadd.f32 %v626, %v638
  %v640 = vpop.f32.mrf.mxu0
  %641 = vdwg.mxu0
  %642 = vmatpush.bf16.msra.mxu0 %v505
  %643 = vmatpush.bf16.msra.mxu0 %v503
  %644 = vmatpush.bf16.msra.mxu0 %v501
  %645 = vmatpush.bf16.msra.mxu0 %v499
  %646 = vmatpush.bf16.msra.mxu0 %v497
  %647 = vmatpush.bf16.msra.mxu0 %v495
  %648 = vmatpush.bf16.msra.mxu0 %v493
  %649 = vmatpush.bf16.msra.mxu0 %v491
  %650 = vmatmul.bf16.gmra.mxu0 %v196
  %v651 = vpop.f32.mrf.mxu0
  %v652 = vadd.f32 %v639, %v651
  %v653 = vpop.f32.mrf.mxu0
  %654 = vdwg.mxu0
  %655 = vmatpush.bf16.msra.mxu0 %v521
  %656 = vmatpush.bf16.msra.mxu0 %v519
  %657 = vmatpush.bf16.msra.mxu0 %v517
  %658 = vmatpush.bf16.msra.mxu0 %v515
  %659 = vmatpush.bf16.msra.mxu0 %v513
  %660 = vmatpush.bf16.msra.mxu0 %v511
  %661 = vmatpush.bf16.msra.mxu0 %v509
  %662 = vmatpush.bf16.msra.mxu0 %v507
  %663 = vmatmul.bf16.gmra.mxu0 %v197
  %v664 = vpop.f32.mrf.mxu0
  %v665 = vadd.f32 %v652, %v664
  %v666 = vpop.f32.mrf.mxu0
  %667 = vdwg.mxu0
  %668 = vmatpush.bf16.msra.mxu0 %v458
  %669 = vmatpush.bf16.msra.mxu0 %v456
  %670 = vmatpush.bf16.msra.mxu0 %v454
  %671 = vmatpush.bf16.msra.mxu0 %v452
  %672 = vmatpush.bf16.msra.mxu0 %v450
  %673 = vmatpush.bf16.msra.mxu0 %v448
  %674 = vmatpush.bf16.msra.mxu0 %v446
  %675 = vmatpush.bf16.msra.mxu0 %v444
  %676 = vmatmul.bf16.gmra.mxu0 %v193
  %v677 = vpop.f32.mrf.mxu0
  %v678 = vadd.f32 0.0, %v677
  %v679 = vpop.f32.mrf.mxu0
  %680 = vdwg.mxu0
  %681 = vmatpush.bf16.msra.mxu0 %v474
  %682 = vmatpush.bf16.msra.mxu0 %v472
  %683 = vmatpush.bf16.msra.mxu0 %v470
  %684 = vmatpush.bf16.msra.mxu0 %v468
  %685 = vmatpush.bf16.msra.mxu0 %v466
  %686 = vmatpush.bf16.msra.mxu0 %v464
  %687 = vmatpush.bf16.msra.mxu0 %v462
  %688 = vmatpush.bf16.msra.mxu0 %v460
  %689 = vmatmul.bf16.gmra.mxu0 %v194
  %v690 = vpop.f32.mrf.mxu0
  %v691 = vadd.f32 %v678, %v690
  %v692 = vpop.f32.mrf.mxu0
  %693 = vdwg.mxu0
  %694 = vmatpush.bf16.msra.mxu0 %v490
  %695 = vmatpush.bf16.msra.mxu0 %v488
  %696 = vmatpush.bf16.msra.mxu0 %v486
  %697 = vmatpush.bf16.msra.mxu0 %v484
  %698 = vmatpush.bf16.msra.mxu0 %v482
  %699 = vmatpush.bf16.msra.mxu0 %v480
  %700 = vmatpush.bf16.msra.mxu0 %v478
  %701 = vmatpush.bf16.msra.mxu0 %v476
  %702 = vmatmul.bf16.gmra.mxu0 %v195
  %v703 = vpop.f32.mrf.mxu0
  %v704 = vadd.f32 %v691, %v703
  %v705 = vpop.f32.mrf.mxu0
  %706 = vdwg.mxu0
  %707 = vmatpush.bf16.msra.mxu0 %v506
  %708 = vmatpush.bf16.msra.mxu0 %v504
  %709 = vmatpush.bf16.msra.mxu0 %v502
  %710 = vmatpush.bf16.msra.mxu0 %v500
  %711 = vmatpush.bf16.msra.mxu0 %v498
  %712 = vmatpush.bf16.msra.mxu0 %v496
  %713 = vmatpush.bf16.msra.mxu0 %v494
  %714 = vmatpush.bf16.msra.mxu0 %v492
  %715 = vmatmul.bf16.gmra.mxu0 %v196
  %v716 = vpop.f32.mrf.mxu0
  %v717 = vadd.f32 %v704, %v716
  %v718 = vpop.f32.mrf.mxu0
  %719 = vdwg.mxu0
  %720 = vmatpush.bf16.msra.mxu0 %v522
  %721 = vmatpush.bf16.msra.mxu0 %v520
  %722 = vmatpush.bf16.msra.mxu0 %v518
  %723 = vmatpush.bf16.msra.mxu0 %v516
  %724 = vmatpush.bf16.msra.mxu0 %v514
  %725 = vmatpush.bf16.msra.mxu0 %v512
  %726 = vmatpush.bf16.msra.mxu0 %v510
  %727 = vmatpush.bf16.msra.mxu0 %v508
  %728 = vmatmul.bf16.gmra.mxu0 %v197
  %v729 = vpop.f32.mrf.mxu0
  %v730 = vadd.f32 %v717, %v729
  %v731 = vpop.f32.mrf.mxu0
  %732 = vdwg.mxu0
  %v733 = vadd.f32 %v180, %v665
  %v734 = vadd.f32 %v181, %v730
  %v735 = vld [vmem:[%s0] sm:$0x77]
  %v736 = vld [vmem:[%s0 + $0x8] sm:$0x77]
  %v737 = vld [vmem:[%s0 + $0x10] sm:$0x7]
  %v741 = vunpack.c.l.b16 %v735
  %v742 = vunpack.c.h.b16 %v735
  %v743 = vunpack.c.l.b16 %v736
  %v744 = vunpack.c.h.b16 %v736
  %v745 = vunpack.c.l.b16 %v737
  %v746 = vpack.c.b16 %v741, %v741
  %v747 = vpack.c.b16 %v742, %v742
  %v748 = vpack.c.b16 %v743, %v743
  %v749 = vpack.c.b16 %v744, %v744
  %v750 = vpack.c.b16 %v745, %v745
  %v752 = vshrl.u32 %v746, 16
  %v754 = vshll.u32 %v746, 16
  %v756 = vrot.slane %v754, 1
  %v757 = vor.u32 %v752, %v756
  %v759 = vshrl.u32 %v747, 16
  %v761 = vshll.u32 %v747, 16
  %v763 = vrot.slane %v761, 1
  %v764 = vor.u32 %v759, %v763
  %v766 = vshrl.u32 %v748, 16
  %v768 = vshll.u32 %v748, 16
  %v770 = vrot.slane %v768, 1
  %v771 = vor.u32 %v766, %v770
  %v773 = vshrl.u32 %v749, 16
  %v775 = vshll.u32 %v749, 16
  %v777 = vrot.slane %v775, 1
  %v778 = vor.u32 %v773, %v777
  %v780 = vshrl.u32 %v750, 16
  %v782 = vshll.u32 %v750, 16
  %v784 = vrot.slane %v782, 1
  %v785 = vor.u32 %v780, %v784
  %v871 = vunpack.c.l.b16 %v94
  %v872 = vunpack.c.h.b16 %v94
  %v873 = vunpack.c.l.b16 %v95
  %v874 = vunpack.c.h.b16 %v95
  %v875 = vunpack.c.l.b16 %v96
  %v876 = vunpack.c.h.b16 %v96
  %v877 = vunpack.c.l.b16 %v97
  %v878 = vunpack.c.h.b16 %v97
  %v879 = vunpack.c.l.b16 %v98
  %v880 = vunpack.c.h.b16 %v98
  %v881 = vunpack.c.l.b16 %v99
  %v882 = vunpack.c.h.b16 %v99
  %v883 = vunpack.c.l.b16 %v100
  %v884 = vunpack.c.h.b16 %v100
  %v885 = vunpack.c.l.b16 %v101
  %v886 = vunpack.c.h.b16 %v101
  %v887 = vunpack.c.l.b16 %v102
  %v888 = vunpack.c.h.b16 %v102
  %v889 = vunpack.c.l.b16 %v103
  %v890 = vunpack.c.h.b16 %v103
  %v891 = vunpack.c.l.b16 %v104
  %v892 = vunpack.c.h.b16 %v104
  %v893 = vunpack.c.l.b16 %v105
  %v894 = vunpack.c.h.b16 %v105
  %v895 = vunpack.c.l.b16 %v106
  %v896 = vunpack.c.h.b16 %v106
  %v897 = vunpack.c.l.b16 %v107
  %v898 = vunpack.c.h.b16 %v107
  %v899 = vunpack.c.l.b16 %v108
  %v900 = vunpack.c.h.b16 %v108
  %v901 = vunpack.c.l.b16 %v109
  %v902 = vunpack.c.h.b16 %v109
  %v903 = vunpack.c.l.b16 %v110
  %v904 = vunpack.c.h.b16 %v110
  %v905 = vunpack.c.l.b16 %v111
  %v906 = vunpack.c.h.b16 %v111
  %v907 = vunpack.c.l.b16 %v112
  %v908 = vunpack.c.h.b16 %v112
  %v909 = vunpack.c.l.b16 %v113
  %v910 = vunpack.c.h.b16 %v113
  %v911 = vunpack.c.l.b16 %v114
  %v912 = vunpack.c.h.b16 %v114
  %v913 = vunpack.c.l.b16 %v115
  %v914 = vunpack.c.h.b16 %v115
  %v915 = vunpack.c.l.b16 %v116
  %v916 = vunpack.c.h.b16 %v116
  %v917 = vunpack.c.l.b16 %v117
  %v918 = vunpack.c.h.b16 %v117
  %v919 = vunpack.c.l.b16 %v118
  %v920 = vunpack.c.h.b16 %v118
  %v921 = vunpack.c.l.b16 %v119
  %v922 = vunpack.c.h.b16 %v119
  %v923 = vunpack.c.l.b16 %v120
  %v924 = vunpack.c.h.b16 %v120
  %v925 = vunpack.c.l.b16 %v121
  %v926 = vunpack.c.h.b16 %v121
  %v927 = vunpack.c.l.b16 %v122
  %v928 = vunpack.c.h.b16 %v122
  %v929 = vunpack.c.l.b16 %v123
  %v930 = vunpack.c.h.b16 %v123
  %v931 = vunpack.c.l.b16 %v124
  %v932 = vunpack.c.h.b16 %v124
  %v933 = vunpack.c.l.b16 %v125
  %v934 = vunpack.c.h.b16 %v125
  %v935 = vunpack.c.l.b16 %v126
  %v936 = vunpack.c.h.b16 %v126
  %v937 = vunpack.c.l.b16 %v127
  %v938 = vunpack.c.h.b16 %v127
  %v939 = vunpack.c.l.b16 %v128
  %v940 = vunpack.c.h.b16 %v128
  %v941 = vunpack.c.l.b16 %v129
  %v942 = vunpack.c.h.b16 %v129
  %v943 = vunpack.c.l.b16 %v130
  %v944 = vunpack.c.h.b16 %v130
  %v945 = vunpack.c.l.b16 %v131
  %v946 = vunpack.c.h.b16 %v131
  %v947 = vunpack.c.l.b16 %v132
  %v948 = vunpack.c.h.b16 %v132
  %v949 = vunpack.c.l.b16 %v133
  %v950 = vunpack.c.h.b16 %v133
  %v951 = vunpack.c.l.b16 %v134
  %v952 = vunpack.c.h.b16 %v134
  %v953 = vunpack.c.l.b16 %v135
  %v954 = vunpack.c.h.b16 %v135
  %v955 = vunpack.c.l.b16 %v136
  %v956 = vunpack.c.h.b16 %v136
  %v957 = vunpack.c.l.b16 %v137
  %v958 = vunpack.c.h.b16 %v137
  %v959 = vunpack.c.l.b16 %v138
  %v960 = vunpack.c.h.b16 %v138
  %v961 = vunpack.c.l.b16 %v139
  %v962 = vunpack.c.h.b16 %v139
  %v963 = vunpack.c.l.b16 %v140
  %v964 = vunpack.c.h.b16 %v140
  %v965 = vunpack.c.l.b16 %v141
  %v966 = vunpack.c.h.b16 %v141
  %v967 = vunpack.c.l.b16 %v142
  %v968 = vunpack.c.h.b16 %v142
  %v969 = vunpack.c.l.b16 %v143
  %v970 = vunpack.c.h.b16 %v143
  %v971 = vunpack.c.l.b16 %v144
  %v972 = vunpack.c.h.b16 %v144
  %v973 = vunpack.c.l.b16 %v145
  %v974 = vunpack.c.h.b16 %v145
  %v975 = vunpack.c.l.b16 %v146
  %v976 = vunpack.c.h.b16 %v146
  %v977 = vunpack.c.l.b16 %v147
  %v978 = vunpack.c.h.b16 %v147
  %v979 = vunpack.c.l.b16 %v148
  %v980 = vunpack.c.h.b16 %v148
  %v981 = vunpack.c.l.b16 %v149
  %v982 = vunpack.c.h.b16 %v149
  %v983 = vunpack.c.l.b16 %v150
  %v984 = vunpack.c.h.b16 %v150
  %v985 = vunpack.c.l.b16 %v151
  %v986 = vunpack.c.h.b16 %v151
  %v987 = vunpack.c.l.b16 %v152
  %v988 = vunpack.c.h.b16 %v152
  %v989 = vunpack.c.l.b16 %v153
  %v990 = vunpack.c.h.b16 %v153
  %v991 = vunpack.c.l.b16 %v154
  %v992 = vunpack.c.h.b16 %v154
  %v993 = vunpack.c.l.b16 %v155
  %v994 = vunpack.c.h.b16 %v155
  %v995 = vunpack.c.l.b16 %v156
  %v996 = vunpack.c.h.b16 %v156
  %v997 = vunpack.c.l.b16 %v157
  %v998 = vunpack.c.h.b16 %v157
  %v999 = vunpack.c.l.b16 %v158
  %v1000 = vunpack.c.h.b16 %v158
  %v1001 = vunpack.c.l.b16 %v159
  %v1002 = vunpack.c.h.b16 %v159
  %v1003 = vunpack.c.l.b16 %v160
  %v1004 = vunpack.c.h.b16 %v160
  %v1005 = vunpack.c.l.b16 %v161
  %v1006 = vunpack.c.h.b16 %v161
  %v1007 = vunpack.c.l.b16 %v162
  %v1008 = vunpack.c.h.b16 %v162
  %v1009 = vunpack.c.l.b16 %v163
  %v1010 = vunpack.c.h.b16 %v163
  %v1011 = vunpack.c.l.b16 %v164
  %v1012 = vunpack.c.h.b16 %v164
  %v1013 = vunpack.c.l.b16 %v165
  %v1014 = vunpack.c.h.b16 %v165
  %v1015 = vunpack.c.l.b16 %v166
  %v1016 = vunpack.c.h.b16 %v166
  %v1017 = vunpack.c.l.b16 %v167
  %v1018 = vunpack.c.h.b16 %v167
  %v1019 = vunpack.c.l.b16 %v168
  %v1020 = vunpack.c.h.b16 %v168
  %v1021 = vunpack.c.l.b16 %v169
  %v1022 = vunpack.c.h.b16 %v169
  %v1023 = vunpack.c.l.b16 %v170
  %v1024 = vunpack.c.h.b16 %v170
  %v1025 = vunpack.c.l.b16 %v171
  %v1026 = vunpack.c.h.b16 %v171
  %v1027 = vunpack.c.l.b16 %v172
  %v1028 = vunpack.c.h.b16 %v172
  %v1029 = vunpack.c.l.b16 %v173
  %v1030 = vunpack.c.h.b16 %v173
  %v1031 = vpack.c.b16 %v873, %v871
  %v1032 = vpack.c.b16 %v874, %v872
  %v1033 = vpack.c.b16 %v877, %v875
  %v1034 = vpack.c.b16 %v878, %v876
  %v1035 = vpack.c.b16 %v881, %v879
  %v1036 = vpack.c.b16 %v882, %v880
  %v1037 = vpack.c.b16 %v885, %v883
  %v1038 = vpack.c.b16 %v886, %v884
  %v1039 = vpack.c.b16 %v889, %v887
  %v1040 = vpack.c.b16 %v890, %v888
  %v1041 = vpack.c.b16 %v893, %v891
  %v1042 = vpack.c.b16 %v894, %v892
  %v1043 = vpack.c.b16 %v897, %v895
  %v1044 = vpack.c.b16 %v898, %v896
  %v1045 = vpack.c.b16 %v901, %v899
  %v1046 = vpack.c.b16 %v902, %v900
  %v1047 = vpack.c.b16 %v905, %v903
  %v1048 = vpack.c.b16 %v906, %v904
  %v1049 = vpack.c.b16 %v909, %v907
  %v1050 = vpack.c.b16 %v910, %v908
  %v1051 = vpack.c.b16 %v913, %v911
  %v1052 = vpack.c.b16 %v914, %v912
  %v1053 = vpack.c.b16 %v917, %v915
  %v1054 = vpack.c.b16 %v918, %v916
  %v1055 = vpack.c.b16 %v921, %v919
  %v1056 = vpack.c.b16 %v922, %v920
  %v1057 = vpack.c.b16 %v925, %v923
  %v1058 = vpack.c.b16 %v926, %v924
  %v1059 = vpack.c.b16 %v929, %v927
  %v1060 = vpack.c.b16 %v930, %v928
  %v1061 = vpack.c.b16 %v933, %v931
  %v1062 = vpack.c.b16 %v934, %v932
  %v1063 = vpack.c.b16 %v937, %v935
  %v1064 = vpack.c.b16 %v938, %v936
  %v1065 = vpack.c.b16 %v941, %v939
  %v1066 = vpack.c.b16 %v942, %v940
  %v1067 = vpack.c.b16 %v945, %v943
  %v1068 = vpack.c.b16 %v946, %v944
  %v1069 = vpack.c.b16 %v949, %v947
  %v1070 = vpack.c.b16 %v950, %v948
  %v1071 = vpack.c.b16 %v953, %v951
  %v1072 = vpack.c.b16 %v954, %v952
  %v1073 = vpack.c.b16 %v957, %v955
  %v1074 = vpack.c.b16 %v958, %v956
  %v1075 = vpack.c.b16 %v961, %v959
  %v1076 = vpack.c.b16 %v962, %v960
  %v1077 = vpack.c.b16 %v965, %v963
  %v1078 = vpack.c.b16 %v966, %v964
  %v1079 = vpack.c.b16 %v969, %v967
  %v1080 = vpack.c.b16 %v970, %v968
  %v1081 = vpack.c.b16 %v973, %v971
  %v1082 = vpack.c.b16 %v974, %v972
  %v1083 = vpack.c.b16 %v977, %v975
  %v1084 = vpack.c.b16 %v978, %v976
  %v1085 = vpack.c.b16 %v981, %v979
  %v1086 = vpack.c.b16 %v982, %v980
  %v1087 = vpack.c.b16 %v985, %v983
  %v1088 = vpack.c.b16 %v986, %v984
  %v1089 = vpack.c.b16 %v989, %v987
  %v1090 = vpack.c.b16 %v990, %v988
  %v1091 = vpack.c.b16 %v993, %v991
  %v1092 = vpack.c.b16 %v994, %v992
  %v1093 = vpack.c.b16 %v997, %v995
  %v1094 = vpack.c.b16 %v998, %v996
  %v1095 = vpack.c.b16 %v1001, %v999
  %v1096 = vpack.c.b16 %v1002, %v1000
  %v1097 = vpack.c.b16 %v1005, %v1003
  %v1098 = vpack.c.b16 %v1006, %v1004
  %v1099 = vpack.c.b16 %v1009, %v1007
  %v1100 = vpack.c.b16 %v1010, %v1008
  %v1101 = vpack.c.b16 %v1013, %v1011
  %v1102 = vpack.c.b16 %v1014, %v1012
  %v1103 = vpack.c.b16 %v1017, %v1015
  %v1104 = vpack.c.b16 %v1018, %v1016
  %v1105 = vpack.c.b16 %v1021, %v1019
  %v1106 = vpack.c.b16 %v1022, %v1020
  %v1107 = vpack.c.b16 %v1025, %v1023
  %v1108 = vpack.c.b16 %v1026, %v1024
  %v1109 = vpack.c.b16 %v1029, %v1027
  %v1110 = vpack.c.b16 %v1030, %v1028
  %1191 = vmatpush.bf16.msra.mxu0 %v1045
  %1192 = vmatpush.bf16.msra.mxu0 %v1043
  %1193 = vmatpush.bf16.msra.mxu0 %v1041
  %1194 = vmatpush.bf16.msra.mxu0 %v1039
  %1195 = vmatpush.bf16.msra.mxu0 %v1037
  %1196 = vmatpush.bf16.msra.mxu0 %v1035
  %1197 = vmatpush.bf16.msra.mxu0 %v1033
  %1198 = vmatpush.bf16.msra.mxu0 %v1031
  %1199 = vmatmul.bf16.gmra.mxu0 %v757
  %v1200 = vpop.f32.mrf.mxu0
  %v1201 = vadd.f32 0.0, %v1200
  %v1202 = vpop.f32.mrf.mxu0
  %1203 = vdwg.mxu0
  %1204 = vmatpush.bf16.msra.mxu0 %v1061
  %1205 = vmatpush.bf16.msra.mxu0 %v1059
  %1206 = vmatpush.bf16.msra.mxu0 %v1057
  %1207 = vmatpush.bf16.msra.mxu0 %v1055
  %1208 = vmatpush.bf16.msra.mxu0 %v1053
  %1209 = vmatpush.bf16.msra.mxu0 %v1051
  %1210 = vmatpush.bf16.msra.mxu0 %v1049
  %1211 = vmatpush.bf16.msra.mxu0 %v1047
  %1212 = vmatmul.bf16.gmra.mxu0 %v764
  %v1213 = vpop.f32.mrf.mxu0
  %v1214 = vadd.f32 %v1201, %v1213
  %v1215 = vpop.f32.mrf.mxu0
  %1216 = vdwg.mxu0
  %1217 = vmatpush.bf16.msra.mxu0 %v1077
  %1218 = vmatpush.bf16.msra.mxu0 %v1075
  %1219 = vmatpush.bf16.msra.mxu0 %v1073
  %1220 = vmatpush.bf16.msra.mxu0 %v1071
  %1221 = vmatpush.bf16.msra.mxu0 %v1069
  %1222 = vmatpush.bf16.msra.mxu0 %v1067
  %1223 = vmatpush.bf16.msra.mxu0 %v1065
  %1224 = vmatpush.bf16.msra.mxu0 %v1063
  %1225 = vmatmul.bf16.gmra.mxu0 %v771
  %v1226 = vpop.f32.mrf.mxu0
  %v1227 = vadd.f32 %v1214, %v1226
  %v1228 = vpop.f32.mrf.mxu0
  %1229 = vdwg.mxu0
  %1230 = vmatpush.bf16.msra.mxu0 %v1093
  %1231 = vmatpush.bf16.msra.mxu0 %v1091
  %1232 = vmatpush.bf16.msra.mxu0 %v1089
  %1233 = vmatpush.bf16.msra.mxu0 %v1087
  %1234 = vmatpush.bf16.msra.mxu0 %v1085
  %1235 = vmatpush.bf16.msra.mxu0 %v1083
  %1236 = vmatpush.bf16.msra.mxu0 %v1081
  %1237 = vmatpush.bf16.msra.mxu0 %v1079
  %1238 = vmatmul.bf16.gmra.mxu0 %v778
  %v1239 = vpop.f32.mrf.mxu0
  %v1240 = vadd.f32 %v1227, %v1239
  %v1241 = vpop.f32.mrf.mxu0
  %1242 = vdwg.mxu0
  %1243 = vmatpush.bf16.msra.mxu0 %v1109
  %1244 = vmatpush.bf16.msra.mxu0 %v1107
  %1245 = vmatpush.bf16.msra.mxu0 %v1105
  %1246 = vmatpush.bf16.msra.mxu0 %v1103
  %1247 = vmatpush.bf16.msra.mxu0 %v1101
  %1248 = vmatpush.bf16.msra.mxu0 %v1099
  %1249 = vmatpush.bf16.msra.mxu0 %v1097
  %1250 = vmatpush.bf16.msra.mxu0 %v1095
  %1251 = vmatmul.bf16.gmra.mxu0 %v785
  %v1252 = vpop.f32.mrf.mxu0
  %v1253 = vadd.f32 %v1240, %v1252
  %v1254 = vpop.f32.mrf.mxu0
  %1255 = vdwg.mxu0
  %1256 = vmatpush.bf16.msra.mxu0 %v1046
  %1257 = vmatpush.bf16.msra.mxu0 %v1044
  %1258 = vmatpush.bf16.msra.mxu0 %v1042
  %1259 = vmatpush.bf16.msra.mxu0 %v1040
  %1260 = vmatpush.bf16.msra.mxu0 %v1038
  %1261 = vmatpush.bf16.msra.mxu0 %v1036
  %1262 = vmatpush.bf16.msra.mxu0 %v1034
  %1263 = vmatpush.bf16.msra.mxu0 %v1032
  %1264 = vmatmul.bf16.gmra.mxu0 %v757
  %v1265 = vpop.f32.mrf.mxu0
  %v1266 = vadd.f32 0.0, %v1265
  %v1267 = vpop.f32.mrf.mxu0
  %1268 = vdwg.mxu0
  %1269 = vmatpush.bf16.msra.mxu0 %v1062
  %1270 = vmatpush.bf16.msra.mxu0 %v1060
  %1271 = vmatpush.bf16.msra.mxu0 %v1058
  %1272 = vmatpush.bf16.msra.mxu0 %v1056
  %1273 = vmatpush.bf16.msra.mxu0 %v1054
  %1274 = vmatpush.bf16.msra.mxu0 %v1052
  %1275 = vmatpush.bf16.msra.mxu0 %v1050
  %1276 = vmatpush.bf16.msra.mxu0 %v1048
  %1277 = vmatmul.bf16.gmra.mxu0 %v764
  %v1278 = vpop.f32.mrf.mxu0
  %v1279 = vadd.f32 %v1266, %v1278
  %v1280 = vpop.f32.mrf.mxu0
  %1281 = vdwg.mxu0
  %1282 = vmatpush.bf16.msra.mxu0 %v1078
  %1283 = vmatpush.bf16.msra.mxu0 %v1076
  %1284 = vmatpush.bf16.msra.mxu0 %v1074
  %1285 = vmatpush.bf16.msra.mxu0 %v1072
  %1286 = vmatpush.bf16.msra.mxu0 %v1070
  %1287 = vmatpush.bf16.msra.mxu0 %v1068
  %1288 = vmatpush.bf16.msra.mxu0 %v1066
  %1289 = vmatpush.bf16.msra.mxu0 %v1064
  %1290 = vmatmul.bf16.gmra.mxu0 %v771
  %v1291 = vpop.f32.mrf.mxu0
  %v1292 = vadd.f32 %v1279, %v1291
  %v1293 = vpop.f32.mrf.mxu0
  %1294 = vdwg.mxu0
  %1295 = vmatpush.bf16.msra.mxu0 %v1094
  %1296 = vmatpush.bf16.msra.mxu0 %v1092
  %1297 = vmatpush.bf16.msra.mxu0 %v1090
  %1298 = vmatpush.bf16.msra.mxu0 %v1088
  %1299 = vmatpush.bf16.msra.mxu0 %v1086
  %1300 = vmatpush.bf16.msra.mxu0 %v1084
  %1301 = vmatpush.bf16.msra.mxu0 %v1082
  %1302 = vmatpush.bf16.msra.mxu0 %v1080
  %1303 = vmatmul.bf16.gmra.mxu0 %v778
  %v1304 = vpop.f32.mrf.mxu0
  %v1305 = vadd.f32 %v1292, %v1304
  %v1306 = vpop.f32.mrf.mxu0
  %1307 = vdwg.mxu0
  %1308 = vmatpush.bf16.msra.mxu0 %v1110
  %1309 = vmatpush.bf16.msra.mxu0 %v1108
  %1310 = vmatpush.bf16.msra.mxu0 %v1106
  %1311 = vmatpush.bf16.msra.mxu0 %v1104
  %1312 = vmatpush.bf16.msra.mxu0 %v1102
  %1313 = vmatpush.bf16.msra.mxu0 %v1100
  %1314 = vmatpush.bf16.msra.mxu0 %v1098
  %1315 = vmatpush.bf16.msra.mxu0 %v1096
  %1316 = vmatmul.bf16.gmra.mxu0 %v785
  %v1317 = vpop.f32.mrf.mxu0
  %v1318 = vadd.f32 %v1305, %v1317
  %v1319 = vpop.f32.mrf.mxu0
  %1320 = vdwg.mxu0
  %v1321 = vadd.f32 %v733, %v1253
  %v1322 = vadd.f32 %v734, %v1318
  %v1323 = vmax.f32 %v1321, 0.0
  %v1324 = vmax.f32 %v1322, 0.0
  %v1325 = vpack.c.bf16 %v1324, %v1323
  %v1327 = vrot.slane %v1325, 2
  %vm1328 = vcmask 1041408
  %v1331 = vsel %vm1328, %v1325, %v1327
  %vm1333 = vcmask 257026
  %vm1334 = vmor %vm1333, %vm1328
  %1335 = vst.msk [vmem:[%s3] sm:$0xf] %vm1334, %v1331
  %s1336 = scalar_lea.vmem %s0, 20
  %v1337 = vld [vmem:[%s1336] sm:$0x33]
  %v1338 = vld [vmem:[%s1336 + $0x8] sm:$0x33]
  %v1339 = vld [vmem:[%s1336 + $0x10] sm:$0x3]
  %v1343 = vunpack.c.l.b16 %v1337
  %v1344 = vunpack.c.h.b16 %v1337
  %v1345 = vunpack.c.l.b16 %v1338
  %v1346 = vunpack.c.h.b16 %v1338
  %v1347 = vunpack.c.l.b16 %v1339
  %v1348 = vpack.c.b16 %v1343, %v1343
  %v1349 = vpack.c.b16 %v1344, %v1344
  %v1350 = vpack.c.b16 %v1345, %v1345
  %v1351 = vpack.c.b16 %v1346, %v1346
  %v1352 = vpack.c.b16 %v1347, %v1347
  %1358 = vmatpush.bf16.msra.mxu0 %v457
  %1359 = vmatpush.bf16.msra.mxu0 %v455
  %1360 = vmatpush.bf16.msra.mxu0 %v453
  %1361 = vmatpush.bf16.msra.mxu0 %v451
  %1362 = vmatpush.bf16.msra.mxu0 %v449
  %1363 = vmatpush.bf16.msra.mxu0 %v447
  %1364 = vmatpush.bf16.msra.mxu0 %v445
  %1365 = vmatpush.bf16.msra.mxu0 %v443
  %1366 = vmatmul.bf16.gmra.mxu0 %v1348
  %v1367 = vpop.f32.mrf.mxu0
  %v1368 = vadd.f32 0.0, %v1367
  %v1369 = vpop.f32.mrf.mxu0
  %1370 = vdwg.mxu0
  %1371 = vmatpush.bf16.msra.mxu0 %v473
  %1372 = vmatpush.bf16.msra.mxu0 %v471
  %1373 = vmatpush.bf16.msra.mxu0 %v469
  %1374 = vmatpush.bf16.msra.mxu0 %v467
  %1375 = vmatpush.bf16.msra.mxu0 %v465
  %1376 = vmatpush.bf16.msra.mxu0 %v463
  %1377 = vmatpush.bf16.msra.mxu0 %v461
  %1378 = vmatpush.bf16.msra.mxu0 %v459
  %1379 = vmatmul.bf16.gmra.mxu0 %v1349
  %v1380 = vpop.f32.mrf.mxu0
  %v1381 = vadd.f32 %v1368, %v1380
  %v1382 = vpop.f32.mrf.mxu0
  %1383 = vdwg.mxu0
  %1384 = vmatpush.bf16.msra.mxu0 %v489
  %1385 = vmatpush.bf16.msra.mxu0 %v487
  %1386 = vmatpush.bf16.msra.mxu0 %v485
  %1387 = vmatpush.bf16.msra.mxu0 %v483
  %1388 = vmatpush.bf16.msra.mxu0 %v481
  %1389 = vmatpush.bf16.msra.mxu0 %v479
  %1390 = vmatpush.bf16.msra.mxu0 %v477
  %1391 = vmatpush.bf16.msra.mxu0 %v475
  %1392 = vmatmul.bf16.gmra.mxu0 %v1350
  %v1393 = vpop.f32.mrf.mxu0
  %v1394 = vadd.f32 %v1381, %v1393
  %v1395 = vpop.f32.mrf.mxu0
  %1396 = vdwg.mxu0
  %1397 = vmatpush.bf16.msra.mxu0 %v505
  %1398 = vmatpush.bf16.msra.mxu0 %v503
  %1399 = vmatpush.bf16.msra.mxu0 %v501
  %1400 = vmatpush.bf16.msra.mxu0 %v499
  %1401 = vmatpush.bf16.msra.mxu0 %v497
  %1402 = vmatpush.bf16.msra.mxu0 %v495
  %1403 = vmatpush.bf16.msra.mxu0 %v493
  %1404 = vmatpush.bf16.msra.mxu0 %v491
  %1405 = vmatmul.bf16.gmra.mxu0 %v1351
  %v1406 = vpop.f32.mrf.mxu0
  %v1407 = vadd.f32 %v1394, %v1406
  %v1408 = vpop.f32.mrf.mxu0
  %1409 = vdwg.mxu0
  %1410 = vmatpush.bf16.msra.mxu0 %v521
  %1411 = vmatpush.bf16.msra.mxu0 %v519
  %1412 = vmatpush.bf16.msra.mxu0 %v517
  %1413 = vmatpush.bf16.msra.mxu0 %v515
  %1414 = vmatpush.bf16.msra.mxu0 %v513
  %1415 = vmatpush.bf16.msra.mxu0 %v511
  %1416 = vmatpush.bf16.msra.mxu0 %v509
  %1417 = vmatpush.bf16.msra.mxu0 %v507
  %1418 = vmatmul.bf16.gmra.mxu0 %v1352
  %v1419 = vpop.f32.mrf.mxu0
  %v1420 = vadd.f32 %v1407, %v1419
  %v1421 = vpop.f32.mrf.mxu0
  %1422 = vdwg.mxu0
  %1423 = vmatpush.bf16.msra.mxu0 %v458
  %1424 = vmatpush.bf16.msra.mxu0 %v456
  %1425 = vmatpush.bf16.msra.mxu0 %v454
  %1426 = vmatpush.bf16.msra.mxu0 %v452
  %1427 = vmatpush.bf16.msra.mxu0 %v450
  %1428 = vmatpush.bf16.msra.mxu0 %v448
  %1429 = vmatpush.bf16.msra.mxu0 %v446
  %1430 = vmatpush.bf16.msra.mxu0 %v444
  %1431 = vmatmul.bf16.gmra.mxu0 %v1348
  %v1432 = vpop.f32.mrf.mxu0
  %v1433 = vadd.f32 0.0, %v1432
  %v1434 = vpop.f32.mrf.mxu0
  %1435 = vdwg.mxu0
  %1436 = vmatpush.bf16.msra.mxu0 %v474
  %1437 = vmatpush.bf16.msra.mxu0 %v472
  %1438 = vmatpush.bf16.msra.mxu0 %v470
  %1439 = vmatpush.bf16.msra.mxu0 %v468
  %1440 = vmatpush.bf16.msra.mxu0 %v466
  %1441 = vmatpush.bf16.msra.mxu0 %v464
  %1442 = vmatpush.bf16.msra.mxu0 %v462
  %1443 = vmatpush.bf16.msra.mxu0 %v460
  %1444 = vmatmul.bf16.gmra.mxu0 %v1349
  %v1445 = vpop.f32.mrf.mxu0
  %v1446 = vadd.f32 %v1433, %v1445
  %v1447 = vpop.f32.mrf.mxu0
  %1448 = vdwg.mxu0
  %1449 = vmatpush.bf16.msra.mxu0 %v490
  %1450 = vmatpush.bf16.msra.mxu0 %v488
  %1451 = vmatpush.bf16.msra.mxu0 %v486
  %1452 = vmatpush.bf16.msra.mxu0 %v484
  %1453 = vmatpush.bf16.msra.mxu0 %v482
  %1454 = vmatpush.bf16.msra.mxu0 %v480
  %1455 = vmatpush.bf16.msra.mxu0 %v478
  %1456 = vmatpush.bf16.msra.mxu0 %v476
  %1457 = vmatmul.bf16.gmra.mxu0 %v1350
  %v1458 = vpop.f32.mrf.mxu0
  %v1459 = vadd.f32 %v1446, %v1458
  %v1460 = vpop.f32.mrf.mxu0
  %1461 = vdwg.mxu0
  %1462 = vmatpush.bf16.msra.mxu0 %v506
  %1463 = vmatpush.bf16.msra.mxu0 %v504
  %1464 = vmatpush.bf16.msra.mxu0 %v502
  %1465 = vmatpush.bf16.msra.mxu0 %v500
  %1466 = vmatpush.bf16.msra.mxu0 %v498
  %1467 = vmatpush.bf16.msra.mxu0 %v496
  %1468 = vmatpush.bf16.msra.mxu0 %v494
  %1469 = vmatpush.bf16.msra.mxu0 %v492
  %1470 = vmatmul.bf16.gmra.mxu0 %v1351
  %v1471 = vpop.f32.mrf.mxu0
  %v1472 = vadd.f32 %v1459, %v1471
  %v1473 = vpop.f32.mrf.mxu0
  %1474 = vdwg.mxu0
  %1475 = vmatpush.bf16.msra.mxu0 %v522
  %1476 = vmatpush.bf16.msra.mxu0 %v520
  %1477 = vmatpush.bf16.msra.mxu0 %v518
  %1478 = vmatpush.bf16.msra.mxu0 %v516
  %1479 = vmatpush.bf16.msra.mxu0 %v514
  %1480 = vmatpush.bf16.msra.mxu0 %v512
  %1481 = vmatpush.bf16.msra.mxu0 %v510
  %1482 = vmatpush.bf16.msra.mxu0 %v508
  %1483 = vmatmul.bf16.gmra.mxu0 %v1352
  %v1484 = vpop.f32.mrf.mxu0
  %v1485 = vadd.f32 %v1472, %v1484
  %v1486 = vpop.f32.mrf.mxu0
  %1487 = vdwg.mxu0
  %v1488 = vadd.f32 %v180, %v1420
  %v1489 = vadd.f32 %v181, %v1485
  %v1490 = vld [vmem:[%s1336] sm:$0x77]
  %v1491 = vld [vmem:[%s1336 + $0x8] sm:$0x77]
  %v1492 = vld [vmem:[%s1336 + $0x10] sm:$0x7]
  %v1496 = vunpack.c.l.b16 %v1490
  %v1497 = vunpack.c.h.b16 %v1490
  %v1498 = vunpack.c.l.b16 %v1491
  %v1499 = vunpack.c.h.b16 %v1491
  %v1500 = vunpack.c.l.b16 %v1492
  %v1501 = vpack.c.b16 %v1496, %v1496
  %v1502 = vpack.c.b16 %v1497, %v1497
  %v1503 = vpack.c.b16 %v1498, %v1498
  %v1504 = vpack.c.b16 %v1499, %v1499
  %v1505 = vpack.c.b16 %v1500, %v1500
  %v1507 = vshrl.u32 %v1501, 16
  %v1509 = vshll.u32 %v1501, 16
  %v1511 = vrot.slane %v1509, 1
  %v1512 = vor.u32 %v1507, %v1511
  %v1514 = vshrl.u32 %v1502, 16
  %v1516 = vshll.u32 %v1502, 16
  %v1518 = vrot.slane %v1516, 1
  %v1519 = vor.u32 %v1514, %v1518
  %v1521 = vshrl.u32 %v1503, 16
  %v1523 = vshll.u32 %v1503, 16
  %v1525 = vrot.slane %v1523, 1
  %v1526 = vor.u32 %v1521, %v1525
  %v1528 = vshrl.u32 %v1504, 16
  %v1530 = vshll.u32 %v1504, 16
  %v1532 = vrot.slane %v1530, 1
  %v1533 = vor.u32 %v1528, %v1532
  %v1535 = vshrl.u32 %v1505, 16
  %v1537 = vshll.u32 %v1505, 16
  %v1539 = vrot.slane %v1537, 1
  %v1540 = vor.u32 %v1535, %v1539
  %1546 = vmatpush.bf16.msra.mxu0 %v1045
  %1547 = vmatpush.bf16.msra.mxu0 %v1043
  %1548 = vmatpush.bf16.msra.mxu0 %v1041
  %1549 = vmatpush.bf16.msra.mxu0 %v1039
  %1550 = vmatpush.bf16.msra.mxu0 %v1037
  %1551 = vmatpush.bf16.msra.mxu0 %v1035
  %1552 = vmatpush.bf16.msra.mxu0 %v1033
  %1553 = vmatpush.bf16.msra.mxu0 %v1031
  %1554 = vmatmul.bf16.gmra.mxu0 %v1512
  %v1555 = vpop.f32.mrf.mxu0
  %v1556 = vadd.f32 0.0, %v1555
  %v1557 = vpop.f32.mrf.mxu0
  %1558 = vdwg.mxu0
  %1559 = vmatpush.bf16.msra.mxu0 %v1061
  %1560 = vmatpush.bf16.msra.mxu0 %v1059
  %1561 = vmatpush.bf16.msra.mxu0 %v1057
  %1562 = vmatpush.bf16.msra.mxu0 %v1055
  %1563 = vmatpush.bf16.msra.mxu0 %v1053
  %1564 = vmatpush.bf16.msra.mxu0 %v1051
  %1565 = vmatpush.bf16.msra.mxu0 %v1049
  %1566 = vmatpush.bf16.msra.mxu0 %v1047
  %1567 = vmatmul.bf16.gmra.mxu0 %v1519
  %v1568 = vpop.f32.mrf.mxu0
  %v1569 = vadd.f32 %v1556, %v1568
  %v1570 = vpop.f32.mrf.mxu0
  %1571 = vdwg.mxu0
  %1572 = vmatpush.bf16.msra.mxu0 %v1077
  %1573 = vmatpush.bf16.msra.mxu0 %v1075
  %1574 = vmatpush.bf16.msra.mxu0 %v1073
  %1575 = vmatpush.bf16.msra.mxu0 %v1071
  %1576 = vmatpush.bf16.msra.mxu0 %v1069
  %1577 = vmatpush.bf16.msra.mxu0 %v1067
  %1578 = vmatpush.bf16.msra.mxu0 %v1065
  %1579 = vmatpush.bf16.msra.mxu0 %v1063
  %1580 = vmatmul.bf16.gmra.mxu0 %v1526
  %v1581 = vpop.f32.mrf.mxu0
  %v1582 = vadd.f32 %v1569, %v1581
  %v1583 = vpop.f32.mrf.mxu0
  %1584 = vdwg.mxu0
  %1585 = vmatpush.bf16.msra.mxu0 %v1093
  %1586 = vmatpush.bf16.msra.mxu0 %v1091
  %1587 = vmatpush.bf16.msra.mxu0 %v1089
  %1588 = vmatpush.bf16.msra.mxu0 %v1087
  %1589 = vmatpush.bf16.msra.mxu0 %v1085
  %1590 = vmatpush.bf16.msra.mxu0 %v1083
  %1591 = vmatpush.bf16.msra.mxu0 %v1081
  %1592 = vmatpush.bf16.msra.mxu0 %v1079
  %1593 = vmatmul.bf16.gmra.mxu0 %v1533
  %v1594 = vpop.f32.mrf.mxu0
  %v1595 = vadd.f32 %v1582, %v1594
  %v1596 = vpop.f32.mrf.mxu0
  %1597 = vdwg.mxu0
  %1598 = vmatpush.bf16.msra.mxu0 %v1109
  %1599 = vmatpush.bf16.msra.mxu0 %v1107
  %1600 = vmatpush.bf16.msra.mxu0 %v1105
  %1601 = vmatpush.bf16.msra.mxu0 %v1103
  %1602 = vmatpush.bf16.msra.mxu0 %v1101
  %1603 = vmatpush.bf16.msra.mxu0 %v1099
  %1604 = vmatpush.bf16.msra.mxu0 %v1097
  %1605 = vmatpush.bf16.msra.mxu0 %v1095
  %1606 = vmatmul.bf16.gmra.mxu0 %v1540
  %v1607 = vpop.f32.mrf.mxu0
  %v1608 = vadd.f32 %v1595, %v1607
  %v1609 = vpop.f32.mrf.mxu0
  %1610 = vdwg.mxu0
  %1611 = vmatpush.bf16.msra.mxu0 %v1046
  %1612 = vmatpush.bf16.msra.mxu0 %v1044
  %1613 = vmatpush.bf16.msra.mxu0 %v1042
  %1614 = vmatpush.bf16.msra.mxu0 %v1040
  %1615 = vmatpush.bf16.msra.mxu0 %v1038
  %1616 = vmatpush.bf16.msra.mxu0 %v1036
  %1617 = vmatpush.bf16.msra.mxu0 %v1034
  %1618 = vmatpush.bf16.msra.mxu0 %v1032
  %1619 = vmatmul.bf16.gmra.mxu0 %v1512
  %v1620 = vpop.f32.mrf.mxu0
  %v1621 = vadd.f32 0.0, %v1620
  %v1622 = vpop.f32.mrf.mxu0
  %1623 = vdwg.mxu0
  %1624 = vmatpush.bf16.msra.mxu0 %v1062
  %1625 = vmatpush.bf16.msra.mxu0 %v1060
  %1626 = vmatpush.bf16.msra.mxu0 %v1058
  %1627 = vmatpush.bf16.msra.mxu0 %v1056
  %1628 = vmatpush.bf16.msra.mxu0 %v1054
  %1629 = vmatpush.bf16.msra.mxu0 %v1052
  %1630 = vmatpush.bf16.msra.mxu0 %v1050
  %1631 = vmatpush.bf16.msra.mxu0 %v1048
  %1632 = vmatmul.bf16.gmra.mxu0 %v1519
  %v1633 = vpop.f32.mrf.mxu0
  %v1634 = vadd.f32 %v1621, %v1633
  %v1635 = vpop.f32.mrf.mxu0
  %1636 = vdwg.mxu0
  %1637 = vmatpush.bf16.msra.mxu0 %v1078
  %1638 = vmatpush.bf16.msra.mxu0 %v1076
  %1639 = vmatpush.bf16.msra.mxu0 %v1074
  %1640 = vmatpush.bf16.msra.mxu0 %v1072
  %1641 = vmatpush.bf16.msra.mxu0 %v1070
  %1642 = vmatpush.bf16.msra.mxu0 %v1068
  %1643 = vmatpush.bf16.msra.mxu0 %v1066
  %1644 = vmatpush.bf16.msra.mxu0 %v1064
  %1645 = vmatmul.bf16.gmra.mxu0 %v1526
  %v1646 = vpop.f32.mrf.mxu0
  %v1647 = vadd.f32 %v1634, %v1646
  %v1648 = vpop.f32.mrf.mxu0
  %1649 = vdwg.mxu0
  %1650 = vmatpush.bf16.msra.mxu0 %v1094
  %1651 = vmatpush.bf16.msra.mxu0 %v1092
  %1652 = vmatpush.bf16.msra.mxu0 %v1090
  %1653 = vmatpush.bf16.msra.mxu0 %v1088
  %1654 = vmatpush.bf16.msra.mxu0 %v1086
  %1655 = vmatpush.bf16.msra.mxu0 %v1084
  %1656 = vmatpush.bf16.msra.mxu0 %v1082
  %1657 = vmatpush.bf16.msra.mxu0 %v1080
  %1658 = vmatmul.bf16.gmra.mxu0 %v1533
  %v1659 = vpop.f32.mrf.mxu0
  %v1660 = vadd.f32 %v1647, %v1659
  %v1661 = vpop.f32.mrf.mxu0
  %1662 = vdwg.mxu0
  %1663 = vmatpush.bf16.msra.mxu0 %v1110
  %1664 = vmatpush.bf16.msra.mxu0 %v1108
  %1665 = vmatpush.bf16.msra.mxu0 %v1106
  %1666 = vmatpush.bf16.msra.mxu0 %v1104
  %1667 = vmatpush.bf16.msra.mxu0 %v1102
  %1668 = vmatpush.bf16.msra.mxu0 %v1100
  %1669 = vmatpush.bf16.msra.mxu0 %v1098
  %1670 = vmatpush.bf16.msra.mxu0 %v1096
  %1671 = vmatmul.bf16.gmra.mxu0 %v1540
  %v1672 = vpop.f32.mrf.mxu0
  %v1673 = vadd.f32 %v1660, %v1672
  %v1674 = vpop.f32.mrf.mxu0
  %1675 = vdwg.mxu0
  %v1676 = vadd.f32 %v1488, %v1608
  %v1677 = vadd.f32 %v1489, %v1673
  %v1678 = vmax.f32 %v1676, 0.0
  %v1679 = vmax.f32 %v1677, 0.0
  %v1680 = vpack.c.bf16 %v1679, %v1678
  %v1682 = vrot.slane %v1680, 2
  %v1685 = vsel %vm1328, %v1680, %v1682
  %s1687 = scalar_lea.vmem %s3, 4
  %1688 = vst.msk [vmem:[%s1687] sm:$0xf] %vm1334, %v1685
  // Predicated region
  $region14: #{forward.6} parent=0 // pred_check
    _
  $region15: #{forward.6} parent=0 // pred_check_branch
    %1690 = sbr.rel (0) target = $region17
  $region16: #{forward.6} parent=0 // pred_region
    _
  $region17: #{forward.6} parent=0 // pred_fallthru
    _
  // Predicated region
  $region18: #{forward.6} parent=0 // pred_check
    _
  $region19: #{forward.6} parent=0 // pred_check_branch
    %1692 = sbr.rel (0) target = $region21
  $region20: #{forward.6} parent=0 // pred_region
    _
  $region21: #{forward.6} parent=0 // pred_fallthru
    _

// kernel: forward.7
$region0: #{forward.7}
  #allocation0 [shape = 'u32[]', space=smem, size = 0x4, offset = 0x4, fixed_abs, tag = 'smem constant byte address 0x4 - core index']
  #allocation1 [shape = 'u32[72,128]{1,0:T(1,128)}', space=vmem, size = 0x9000, scoped, tag = 'internal scratch']
  %s0 = inlined_call_operand.vmem [shape: bf16[2,5,200], index: 0, kind: input, shape index: {}]
  %s1 = inlined_call_operand.vmem [shape: bf16[400,512], index: 1, kind: input, shape index: {}]
  %s2 = inlined_call_operand.vmem [shape: f32[1,512], index: 2, kind: input, shape index: {}]
  %s3 = inlined_call_operand.vmem [shape: bf16[2,4,512], index: 3, kind: output, shape index: {}]
  %s4 = sld [smem:[#allocation0]]
  $region22: #{forward.7} parent=0
    _
  %s6 = ssub.s32 1, %s4
  %s7 = scalar_select 0, %s6, %s4
  // Predicated region
  $region2: #{forward.7} parent=0 // pred_check
    _
  $region3: #{forward.7} parent=0 // pred_check_branch
    %9 = sbr.rel (0) target = $region5
  $region4: #{forward.7} parent=0 // pred_region
    _
  $region5: #{forward.7} parent=0 // pred_fallthru
    _
  // Predicated region
  $region6: #{forward.7} parent=0 // pred_check
    _
  $region7: #{forward.7} parent=0 // pred_check_branch
    %11 = sbr.rel (0) target = $region9
  $region8: #{forward.7} parent=0 // pred_region
    _
  $region9: #{forward.7} parent=0 // pred_fallthru
    _
  // Predicated region
  $region10: #{forward.7} parent=0 // pred_check
    _
  $region11: #{forward.7} parent=0 // pred_check_branch
    %13 = sbr.rel (0) target = $region13
  $region12: #{forward.7} parent=0 // pred_region
    _
  $region13: #{forward.7} parent=0 // pred_fallthru
    _
  %v15 = vld [vmem:[%s1] sm:$0xff]
  %v16 = vld [vmem:[%s1 + $0x8] sm:$0xff]
  %v17 = vld [vmem:[%s1 + $0x10] sm:$0xff]
  %v18 = vld [vmem:[%s1 + $0x18] sm:$0xff]
  %v19 = vld [vmem:[%s1 + $0x20] sm:$0xff]
  %v20 = vld [vmem:[%s1 + $0x28] sm:$0xff]
  %v21 = vld [vmem:[%s1 + $0x30] sm:$0xff]
  %v22 = vld [vmem:[%s1 + $0x38] sm:$0xff]
  %v23 = vld [vmem:[%s1 + $0x40] sm:$0xff]
  %v24 = vld [vmem:[%s1 + $0x48] sm:$0xff]
  %v25 = vld [vmem:[%s1 + $0x50] sm:$0xff]
  %v26 = vld [vmem:[%s1 + $0x58] sm:$0xff]
  %v27 = vld [vmem:[%s1 + $0x60] sm:$0xff]
  %v28 = vld [vmem:[%s1 + $0x68] sm:$0xff]
  %v29 = vld [vmem:[%s1 + $0x70] sm:$0xff]
  %v30 = vld [vmem:[%s1 + $0x78] sm:$0xff]
  %v31 = vld [vmem:[%s1 + $0x80] sm:$0xff]
  %v32 = vld [vmem:[%s1 + $0x88] sm:$0xff]
  %v33 = vld [vmem:[%s1 + $0x90] sm:$0xff]
  %v34 = vld [vmem:[%s1 + $0x98] sm:$0xff]
  %v35 = vld [vmem:[%s1 + $0xa0] sm:$0xff]
  %v36 = vld [vmem:[%s1 + $0xa8] sm:$0xff]
  %v37 = vld [vmem:[%s1 + $0xb0] sm:$0xff]
  %v38 = vld [vmem:[%s1 + $0xb8] sm:$0xff]
  %v39 = vld [vmem:[%s1 + $0xc0] sm:$0xff]
  %v40 = vld [vmem:[%s1 + $0xc8] sm:$0xff]
  %v41 = vld [vmem:[%s1 + $0xd0] sm:$0xff]
  %v42 = vld [vmem:[%s1 + $0xd8] sm:$0xff]
  %v43 = vld [vmem:[%s1 + $0xe0] sm:$0xff]
  %v44 = vld [vmem:[%s1 + $0xe8] sm:$0xff]
  %v45 = vld [vmem:[%s1 + $0xf0] sm:$0xff]
  %v46 = vld [vmem:[%s1 + $0xf8] sm:$0xff]
  %v47 = vld [vmem:[%s1 + $0x100] sm:$0xff]
  %v48 = vld [vmem:[%s1 + $0x108] sm:$0xff]
  %v49 = vld [vmem:[%s1 + $0x110] sm:$0xff]
  %v50 = vld [vmem:[%s1 + $0x118] sm:$0xff]
  %v51 = vld [vmem:[%s1 + $0x120] sm:$0xff]
  %v52 = vld [vmem:[%s1 + $0x128] sm:$0xff]
  %v53 = vld [vmem:[%s1 + $0x130] sm:$0xff]
  %v54 = vld [vmem:[%s1 + $0x138] sm:$0xff]
  %v55 = vld [vmem:[%s1 + $0x140] sm:$0xff]
  %v56 = vld [vmem:[%s1 + $0x148] sm:$0xff]
  %v57 = vld [vmem:[%s1 + $0x150] sm:$0xff]
  %v58 = vld [vmem:[%s1 + $0x158] sm:$0xff]
  %v59 = vld [vmem:[%s1 + $0x160] sm:$0xff]
  %v60 = vld [vmem:[%s1 + $0x168] sm:$0xff]
  %v61 = vld [vmem:[%s1 + $0x170] sm:$0xff]
  %v62 = vld [vmem:[%s1 + $0x178] sm:$0xff]
  %v63 = vld [vmem:[%s1 + $0x180] sm:$0xff]
  %v64 = vld [vmem:[%s1 + $0x188] sm:$0xff]
  %v65 = vld [vmem:[%s1 + $0x190] sm:$0xff]
  %v66 = vld [vmem:[%s1 + $0x198] sm:$0xff]
  %v67 = vld [vmem:[%s1 + $0x1a0] sm:$0xff]
  %v68 = vld [vmem:[%s1 + $0x1a8] sm:$0xff]
  %v69 = vld [vmem:[%s1 + $0x1b0] sm:$0xff]
  %v70 = vld [vmem:[%s1 + $0x1b8] sm:$0xff]
  %v71 = vld [vmem:[%s1 + $0x1c0] sm:$0xff]
  %v72 = vld [vmem:[%s1 + $0x1c8] sm:$0xff]
  %v73 = vld [vmem:[%s1 + $0x1d0] sm:$0xff]
  %v74 = vld [vmem:[%s1 + $0x1d8] sm:$0xff]
  %v75 = vld [vmem:[%s1 + $0x1e0] sm:$0xff]
  %v76 = vld [vmem:[%s1 + $0x1e8] sm:$0xff]
  %v77 = vld [vmem:[%s1 + $0x1f0] sm:$0xff]
  %v78 = vld [vmem:[%s1 + $0x1f8] sm:$0xff]
  %v79 = vld [vmem:[%s1 + $0x200] sm:$0xff]
  %v80 = vld [vmem:[%s1 + $0x208] sm:$0xff]
  %v81 = vld [vmem:[%s1 + $0x210] sm:$0xff]
  %v82 = vld [vmem:[%s1 + $0x218] sm:$0xff]
  %v83 = vld [vmem:[%s1 + $0x220] sm:$0xff]
  %v84 = vld [vmem:[%s1 + $0x228] sm:$0xff]
  %v85 = vld [vmem:[%s1 + $0x230] sm:$0xff]
  %v86 = vld [vmem:[%s1 + $0x238] sm:$0xff]
  %v87 = vld [vmem:[%s1 + $0x240] sm:$0xff]
  %v88 = vld [vmem:[%s1 + $0x248] sm:$0xff]
  %v89 = vld [vmem:[%s1 + $0x250] sm:$0xff]
  %v90 = vld [vmem:[%s1 + $0x258] sm:$0xff]
  %v91 = vld [vmem:[%s1 + $0x260] sm:$0xff]
  %v92 = vld [vmem:[%s1 + $0x268] sm:$0xff]
  %v93 = vld [vmem:[%s1 + $0x270] sm:$0xff]
  %v94 = vld [vmem:[%s1 + $0x278] sm:$0xff]
  %v95 = vld [vmem:[%s1 + $0x280] sm:$0xff]
  %v96 = vld [vmem:[%s1 + $0x288] sm:$0xff]
  %v97 = vld [vmem:[%s1 + $0x290] sm:$0xff]
  %v98 = vld [vmem:[%s1 + $0x298] sm:$0xff]
  %v99 = vld [vmem:[%s1 + $0x2a0] sm:$0xff]
  %v100 = vld [vmem:[%s1 + $0x2a8] sm:$0xff]
  %v101 = vld [vmem:[%s1 + $0x2b0] sm:$0xff]
  %v102 = vld [vmem:[%s1 + $0x2b8] sm:$0xff]
  %v103 = vld [vmem:[%s1 + $0x2c0] sm:$0xff]
  %v104 = vld [vmem:[%s1 + $0x2c8] sm:$0xff]
  %v105 = vld [vmem:[%s1 + $0x2d0] sm:$0xff]
  %v106 = vld [vmem:[%s1 + $0x2d8] sm:$0xff]
  %v107 = vld [vmem:[%s1 + $0x2e0] sm:$0xff]
  %v108 = vld [vmem:[%s1 + $0x2e8] sm:$0xff]
  %v109 = vld [vmem:[%s1 + $0x2f0] sm:$0xff]
  %v110 = vld [vmem:[%s1 + $0x2f8] sm:$0xff]
  %v111 = vld [vmem:[%s1 + $0x300] sm:$0xff]
  %v112 = vld [vmem:[%s1 + $0x308] sm:$0xff]
  %v113 = vld [vmem:[%s1 + $0x310] sm:$0xff]
  %v114 = vld [vmem:[%s1 + $0x318] sm:$0xff]
  %v115 = vld [vmem:[%s2] sm:$0xf]
  %v117 = vperm.slane %v115, 0
  %v118 = vperm.slane %v115, 1
  %v119 = vperm.slane %v115, 2
  %v120 = vperm.slane %v115, 3
  %v125 = vadd.f32 %v117, 0.0
  %v126 = vadd.f32 %v118, 0.0
  %v127 = vadd.f32 %v119, 0.0
  %v128 = vadd.f32 %v120, 0.0
  %v129 = vld [vmem:[%s0] sm:$0x33]
  %v131 = vunpack.c.l.b16 %v129
  %v132 = vunpack.c.h.b16 %v129
  %v133 = vpack.c.b16 %v131, %v131
  %v134 = vpack.c.b16 %v132, %v132
  %v186 = vunpack.c.l.b16 %v15
  %v187 = vunpack.c.h.b16 %v15
  %v188 = vunpack.c.l.b16 %v16
  %v189 = vunpack.c.h.b16 %v16
  %v190 = vunpack.c.l.b16 %v17
  %v191 = vunpack.c.h.b16 %v17
  %v192 = vunpack.c.l.b16 %v18
  %v193 = vunpack.c.h.b16 %v18
  %v194 = vunpack.c.l.b16 %v19
  %v195 = vunpack.c.h.b16 %v19
  %v196 = vunpack.c.l.b16 %v20
  %v197 = vunpack.c.h.b16 %v20
  %v198 = vunpack.c.l.b16 %v21
  %v199 = vunpack.c.h.b16 %v21
  %v200 = vunpack.c.l.b16 %v22
  %v201 = vunpack.c.h.b16 %v22
  %v202 = vunpack.c.l.b16 %v23
  %v203 = vunpack.c.h.b16 %v23
  %v204 = vunpack.c.l.b16 %v24
  %v205 = vunpack.c.h.b16 %v24
  %v206 = vunpack.c.l.b16 %v25
  %v207 = vunpack.c.h.b16 %v25
  %v208 = vunpack.c.l.b16 %v26
  %v209 = vunpack.c.h.b16 %v26
  %v210 = vunpack.c.l.b16 %v27
  %v211 = vunpack.c.h.b16 %v27
  %v212 = vunpack.c.l.b16 %v28
  %v213 = vunpack.c.h.b16 %v28
  %v214 = vunpack.c.l.b16 %v29
  %v215 = vunpack.c.h.b16 %v29
  %v216 = vunpack.c.l.b16 %v30
  %v217 = vunpack.c.h.b16 %v30
  %v218 = vunpack.c.l.b16 %v31
  %v219 = vunpack.c.h.b16 %v31
  %v220 = vunpack.c.l.b16 %v32
  %v221 = vunpack.c.h.b16 %v32
  %v222 = vunpack.c.l.b16 %v33
  %v223 = vunpack.c.h.b16 %v33
  %v224 = vunpack.c.l.b16 %v34
  %v225 = vunpack.c.h.b16 %v34
  %v226 = vunpack.c.l.b16 %v35
  %v227 = vunpack.c.h.b16 %v35
  %v228 = vunpack.c.l.b16 %v36
  %v229 = vunpack.c.h.b16 %v36
  %v230 = vunpack.c.l.b16 %v37
  %v231 = vunpack.c.h.b16 %v37
  %v232 = vunpack.c.l.b16 %v38
  %v233 = vunpack.c.h.b16 %v38
  %v234 = vunpack.c.l.b16 %v39
  %v235 = vunpack.c.h.b16 %v39
  %v236 = vunpack.c.l.b16 %v40
  %v237 = vunpack.c.h.b16 %v40
  %v238 = vunpack.c.l.b16 %v41
  %v239 = vunpack.c.h.b16 %v41
  %v240 = vunpack.c.l.b16 %v42
  %v241 = vunpack.c.h.b16 %v42
  %v242 = vunpack.c.l.b16 %v43
  %v243 = vunpack.c.h.b16 %v43
  %v244 = vunpack.c.l.b16 %v44
  %v245 = vunpack.c.h.b16 %v44
  %v246 = vunpack.c.l.b16 %v45
  %v247 = vunpack.c.h.b16 %v45
  %v248 = vunpack.c.l.b16 %v46
  %v249 = vunpack.c.h.b16 %v46
  %v250 = vunpack.c.l.b16 %v47
  %v251 = vunpack.c.h.b16 %v47
  %v252 = vunpack.c.l.b16 %v48
  %v253 = vunpack.c.h.b16 %v48
  %v254 = vunpack.c.l.b16 %v49
  %v255 = vunpack.c.h.b16 %v49
  %v256 = vunpack.c.l.b16 %v50
  %v257 = vunpack.c.h.b16 %v50
  %v258 = vunpack.c.l.b16 %v51
  %v259 = vunpack.c.h.b16 %v51
  %v260 = vunpack.c.l.b16 %v52
  %v261 = vunpack.c.h.b16 %v52
  %v262 = vunpack.c.l.b16 %v53
  %v263 = vunpack.c.h.b16 %v53
  %v264 = vunpack.c.l.b16 %v54
  %v265 = vunpack.c.h.b16 %v54
  %v266 = vunpack.c.l.b16 %v55
  %v267 = vunpack.c.h.b16 %v55
  %v268 = vunpack.c.l.b16 %v56
  %v269 = vunpack.c.h.b16 %v56
  %v270 = vunpack.c.l.b16 %v57
  %v271 = vunpack.c.h.b16 %v57
  %v272 = vunpack.c.l.b16 %v58
  %v273 = vunpack.c.h.b16 %v58
  %v274 = vunpack.c.l.b16 %v59
  %v275 = vunpack.c.h.b16 %v59
  %v276 = vunpack.c.l.b16 %v60
  %v277 = vunpack.c.h.b16 %v60
  %v278 = vunpack.c.l.b16 %v61
  %v279 = vunpack.c.h.b16 %v61
  %v280 = vunpack.c.l.b16 %v62
  %v281 = vunpack.c.h.b16 %v62
  %v282 = vunpack.c.l.b16 %v63
  %v283 = vunpack.c.h.b16 %v63
  %v284 = vunpack.c.l.b16 %v64
  %v285 = vunpack.c.h.b16 %v64
  %v286 = vpack.c.b16 %v190, %v186
  %v287 = vpack.c.b16 %v191, %v187
  %v288 = vpack.c.b16 %v192, %v188
  %v289 = vpack.c.b16 %v193, %v189
  %v290 = vpack.c.b16 %v198, %v194
  %v291 = vpack.c.b16 %v199, %v195
  %v292 = vpack.c.b16 %v200, %v196
  %v293 = vpack.c.b16 %v201, %v197
  %v294 = vpack.c.b16 %v206, %v202
  %v295 = vpack.c.b16 %v207, %v203
  %v296 = vpack.c.b16 %v208, %v204
  %v297 = vpack.c.b16 %v209, %v205
  %v298 = vpack.c.b16 %v214, %v210
  %v299 = vpack.c.b16 %v215, %v211
  %v300 = vpack.c.b16 %v216, %v212
  %v301 = vpack.c.b16 %v217, %v213
  %v302 = vpack.c.b16 %v222, %v218
  %v303 = vpack.c.b16 %v223, %v219
  %v304 = vpack.c.b16 %v224, %v220
  %v305 = vpack.c.b16 %v225, %v221
  %v306 = vpack.c.b16 %v230, %v226
  %v307 = vpack.c.b16 %v231, %v227
  %v308 = vpack.c.b16 %v232, %v228
  %v309 = vpack.c.b16 %v233, %v229
  %v310 = vpack.c.b16 %v238, %v234
  %v311 = vpack.c.b16 %v239, %v235
  %v312 = vpack.c.b16 %v240, %v236
  %v313 = vpack.c.b16 %v241, %v237
  %v314 = vpack.c.b16 %v246, %v242
  %v315 = vpack.c.b16 %v247, %v243
  %v316 = vpack.c.b16 %v248, %v244
  %v317 = vpack.c.b16 %v249, %v245
  %v318 = vpack.c.b16 %v254, %v250
  %v319 = vpack.c.b16 %v255, %v251
  %v320 = vpack.c.b16 %v256, %v252
  %v321 = vpack.c.b16 %v257, %v253
  %v322 = vpack.c.b16 %v262, %v258
  %v323 = vpack.c.b16 %v263, %v259
  %v324 = vpack.c.b16 %v264, %v260
  %v325 = vpack.c.b16 %v265, %v261
  %v326 = vpack.c.b16 %v270, %v266
  %v327 = vpack.c.b16 %v271, %v267
  %v328 = vpack.c.b16 %v272, %v268
  %v329 = vpack.c.b16 %v273, %v269
  %v330 = vpack.c.b16 %v278, %v274
  %v331 = vpack.c.b16 %v279, %v275
  %v332 = vpack.c.b16 %v280, %v276
  %v333 = vpack.c.b16 %v281, %v277
  %v334 = vpack.c.b16 %v282, %v282
  %v335 = vpack.c.b16 %v283, %v283
  %v336 = vpack.c.b16 %v284, %v284
  %v337 = vpack.c.b16 %v285, %v285
  %vm386 = vcmask 588800
  %v388 = vsel %vm386, %v134, 0
  %vm390 = vcmask 1043456
  %v392 = vsel %vm390, %v334, 0
  %v395 = vsel %vm390, %v335, 0
  %v398 = vsel %vm390, %v336, 0
  %v401 = vsel %vm390, %v337, 0
  %403 = vmatpush.bf16.msra.mxu0 %v314
  %404 = vmatpush.bf16.msra.mxu0 %v310
  %405 = vmatpush.bf16.msra.mxu0 %v306
  %406 = vmatpush.bf16.msra.mxu0 %v302
  %407 = vmatpush.bf16.msra.mxu0 %v298
  %408 = vmatpush.bf16.msra.mxu0 %v294
  %409 = vmatpush.bf16.msra.mxu0 %v290
  %410 = vmatpush.bf16.msra.mxu0 %v286
  %411 = vmatmul.bf16.gmra.mxu0 %v133
  %v412 = vpop.f32.mrf.mxu0
  %v413 = vadd.f32 0.0, %v412
  %v414 = vpop.f32.mrf.mxu0
  %415 = vdwg.mxu0
  %416 = vmatpush.bf16.msra.mxu0 0
  %417 = vmatpush.bf16.msra.mxu0 0
  %418 = vmatpush.bf16.msra.mxu0 0
  %419 = vmatpush.bf16.msra.mxu0 %v392
  %420 = vmatpush.bf16.msra.mxu0 %v330
  %421 = vmatpush.bf16.msra.mxu0 %v326
  %422 = vmatpush.bf16.msra.mxu0 %v322
  %423 = vmatpush.bf16.msra.mxu0 %v318
  %424 = vmatmul.bf16.gmra.mxu0 %v388
  %v425 = vpop.f32.mrf.mxu0
  %v426 = vadd.f32 %v413, %v425
  %v427 = vpop.f32.mrf.mxu0
  %428 = vdwg.mxu0
  %429 = vmatpush.bf16.msra.mxu0 %v315
  %430 = vmatpush.bf16.msra.mxu0 %v311
  %431 = vmatpush.bf16.msra.mxu0 %v307
  %432 = vmatpush.bf16.msra.mxu0 %v303
  %433 = vmatpush.bf16.msra.mxu0 %v299
  %434 = vmatpush.bf16.msra.mxu0 %v295
  %435 = vmatpush.bf16.msra.mxu0 %v291
  %436 = vmatpush.bf16.msra.mxu0 %v287
  %437 = vmatmul.bf16.gmra.mxu0 %v133
  %v438 = vpop.f32.mrf.mxu0
  %v439 = vadd.f32 0.0, %v438
  %v440 = vpop.f32.mrf.mxu0
  %441 = vdwg.mxu0
  %442 = vmatpush.bf16.msra.mxu0 0
  %443 = vmatpush.bf16.msra.mxu0 0
  %444 = vmatpush.bf16.msra.mxu0 0
  %445 = vmatpush.bf16.msra.mxu0 %v395
  %446 = vmatpush.bf16.msra.mxu0 %v331
  %447 = vmatpush.bf16.msra.mxu0 %v327
  %448 = vmatpush.bf16.msra.mxu0 %v323
  %449 = vmatpush.bf16.msra.mxu0 %v319
  %450 = vmatmul.bf16.gmra.mxu0 %v388
  %v451 = vpop.f32.mrf.mxu0
  %v452 = vadd.f32 %v439, %v451
  %v453 = vpop.f32.mrf.mxu0
  %454 = vdwg.mxu0
  %455 = vmatpush.bf16.msra.mxu0 %v316
  %456 = vmatpush.bf16.msra.mxu0 %v312
  %457 = vmatpush.bf16.msra.mxu0 %v308
  %458 = vmatpush.bf16.msra.mxu0 %v304
  %459 = vmatpush.bf16.msra.mxu0 %v300
  %460 = vmatpush.bf16.msra.mxu0 %v296
  %461 = vmatpush.bf16.msra.mxu0 %v292
  %462 = vmatpush.bf16.msra.mxu0 %v288
  %463 = vmatmul.bf16.gmra.mxu0 %v133
  %v464 = vpop.f32.mrf.mxu0
  %v465 = vadd.f32 0.0, %v464
  %v466 = vpop.f32.mrf.mxu0
  %467 = vdwg.mxu0
  %468 = vmatpush.bf16.msra.mxu0 0
  %469 = vmatpush.bf16.msra.mxu0 0
  %470 = vmatpush.bf16.msra.mxu0 0
  %471 = vmatpush.bf16.msra.mxu0 %v398
  %472 = vmatpush.bf16.msra.mxu0 %v332
  %473 = vmatpush.bf16.msra.mxu0 %v328
  %474 = vmatpush.bf16.msra.mxu0 %v324
  %475 = vmatpush.bf16.msra.mxu0 %v320
  %476 = vmatmul.bf16.gmra.mxu0 %v388
  %v477 = vpop.f32.mrf.mxu0
  %v478 = vadd.f32 %v465, %v477
  %v479 = vpop.f32.mrf.mxu0
  %480 = vdwg.mxu0
  %481 = vmatpush.bf16.msra.mxu0 %v317
  %482 = vmatpush.bf16.msra.mxu0 %v313
  %483 = vmatpush.bf16.msra.mxu0 %v309
  %484 = vmatpush.bf16.msra.mxu0 %v305
  %485 = vmatpush.bf16.msra.mxu0 %v301
  %486 = vmatpush.bf16.msra.mxu0 %v297
  %487 = vmatpush.bf16.msra.mxu0 %v293
  %488 = vmatpush.bf16.msra.mxu0 %v289
  %489 = vmatmul.bf16.gmra.mxu0 %v133
  %v490 = vpop.f32.mrf.mxu0
  %v491 = vadd.f32 0.0, %v490
  %v492 = vpop.f32.mrf.mxu0
  %493 = vdwg.mxu0
  %494 = vmatpush.bf16.msra.mxu0 0
  %495 = vmatpush.bf16.msra.mxu0 0
  %496 = vmatpush.bf16.msra.mxu0 0
  %497 = vmatpush.bf16.msra.mxu0 %v401
  %498 = vmatpush.bf16.msra.mxu0 %v333
  %499 = vmatpush.bf16.msra.mxu0 %v329
  %500 = vmatpush.bf16.msra.mxu0 %v325
  %501 = vmatpush.bf16.msra.mxu0 %v321
  %502 = vmatmul.bf16.gmra.mxu0 %v388
  %v503 = vpop.f32.mrf.mxu0
  %v504 = vadd.f32 %v491, %v503
  %v505 = vpop.f32.mrf.mxu0
  %506 = vdwg.mxu0
  %v507 = vadd.f32 %v125, %v426
  %v508 = vadd.f32 %v126, %v452
  %v509 = vadd.f32 %v127, %v478
  %v510 = vadd.f32 %v128, %v504
  %v511 = vld [vmem:[%s0] sm:$0x77]
  %v513 = vunpack.c.l.b16 %v511
  %v514 = vunpack.c.h.b16 %v511
  %v515 = vpack.c.b16 %v513, %v513
  %v516 = vpack.c.b16 %v514, %v514
  %v518 = vshrl.u32 %v515, 16
  %v520 = vshll.u32 %v515, 16
  %v522 = vrot.slane %v520, 1
  %v523 = vor.u32 %v518, %v522
  %v525 = vshrl.u32 %v516, 16
  %v527 = vshll.u32 %v516, 16
  %v529 = vrot.slane %v527, 1
  %v530 = vor.u32 %v525, %v529
  %v582 = vunpack.c.l.b16 %v65
  %v583 = vunpack.c.h.b16 %v65
  %v584 = vunpack.c.l.b16 %v66
  %v585 = vunpack.c.h.b16 %v66
  %v586 = vunpack.c.l.b16 %v67
  %v587 = vunpack.c.h.b16 %v67
  %v588 = vunpack.c.l.b16 %v68
  %v589 = vunpack.c.h.b16 %v68
  %v590 = vunpack.c.l.b16 %v69
  %v591 = vunpack.c.h.b16 %v69
  %v592 = vunpack.c.l.b16 %v70
  %v593 = vunpack.c.h.b16 %v70
  %v594 = vunpack.c.l.b16 %v71
  %v595 = vunpack.c.h.b16 %v71
  %v596 = vunpack.c.l.b16 %v72
  %v597 = vunpack.c.h.b16 %v72
  %v598 = vunpack.c.l.b16 %v73
  %v599 = vunpack.c.h.b16 %v73
  %v600 = vunpack.c.l.b16 %v74
  %v601 = vunpack.c.h.b16 %v74
  %v602 = vunpack.c.l.b16 %v75
  %v603 = vunpack.c.h.b16 %v75
  %v604 = vunpack.c.l.b16 %v76
  %v605 = vunpack.c.h.b16 %v76
  %v606 = vunpack.c.l.b16 %v77
  %v607 = vunpack.c.h.b16 %v77
  %v608 = vunpack.c.l.b16 %v78
  %v609 = vunpack.c.h.b16 %v78
  %v610 = vunpack.c.l.b16 %v79
  %v611 = vunpack.c.h.b16 %v79
  %v612 = vunpack.c.l.b16 %v80
  %v613 = vunpack.c.h.b16 %v80
  %v614 = vunpack.c.l.b16 %v81
  %v615 = vunpack.c.h.b16 %v81
  %v616 = vunpack.c.l.b16 %v82
  %v617 = vunpack.c.h.b16 %v82
  %v618 = vunpack.c.l.b16 %v83
  %v619 = vunpack.c.h.b16 %v83
  %v620 = vunpack.c.l.b16 %v84
  %v621 = vunpack.c.h.b16 %v84
  %v622 = vunpack.c.l.b16 %v85
  %v623 = vunpack.c.h.b16 %v85
  %v624 = vunpack.c.l.b16 %v86
  %v625 = vunpack.c.h.b16 %v86
  %v626 = vunpack.c.l.b16 %v87
  %v627 = vunpack.c.h.b16 %v87
  %v628 = vunpack.c.l.b16 %v88
  %v629 = vunpack.c.h.b16 %v88
  %v630 = vunpack.c.l.b16 %v89
  %v631 = vunpack.c.h.b16 %v89
  %v632 = vunpack.c.l.b16 %v90
  %v633 = vunpack.c.h.b16 %v90
  %v634 = vunpack.c.l.b16 %v91
  %v635 = vunpack.c.h.b16 %v91
  %v636 = vunpack.c.l.b16 %v92
  %v637 = vunpack.c.h.b16 %v92
  %v638 = vunpack.c.l.b16 %v93
  %v639 = vunpack.c.h.b16 %v93
  %v640 = vunpack.c.l.b16 %v94
  %v641 = vunpack.c.h.b16 %v94
  %v642 = vunpack.c.l.b16 %v95
  %v643 = vunpack.c.h.b16 %v95
  %v644 = vunpack.c.l.b16 %v96
  %v645 = vunpack.c.h.b16 %v96
  %v646 = vunpack.c.l.b16 %v97
  %v647 = vunpack.c.h.b16 %v97
  %v648 = vunpack.c.l.b16 %v98
  %v649 = vunpack.c.h.b16 %v98
  %v650 = vunpack.c.l.b16 %v99
  %v651 = vunpack.c.h.b16 %v99
  %v652 = vunpack.c.l.b16 %v100
  %v653 = vunpack.c.h.b16 %v100
  %v654 = vunpack.c.l.b16 %v101
  %v655 = vunpack.c.h.b16 %v101
  %v656 = vunpack.c.l.b16 %v102
  %v657 = vunpack.c.h.b16 %v102
  %v658 = vunpack.c.l.b16 %v103
  %v659 = vunpack.c.h.b16 %v103
  %v660 = vunpack.c.l.b16 %v104
  %v661 = vunpack.c.h.b16 %v104
  %v662 = vunpack.c.l.b16 %v105
  %v663 = vunpack.c.h.b16 %v105
  %v664 = vunpack.c.l.b16 %v106
  %v665 = vunpack.c.h.b16 %v106
  %v666 = vunpack.c.l.b16 %v107
  %v667 = vunpack.c.h.b16 %v107
  %v668 = vunpack.c.l.b16 %v108
  %v669 = vunpack.c.h.b16 %v108
  %v670 = vunpack.c.l.b16 %v109
  %v671 = vunpack.c.h.b16 %v109
  %v672 = vunpack.c.l.b16 %v110
  %v673 = vunpack.c.h.b16 %v110
  %v674 = vunpack.c.l.b16 %v111
  %v675 = vunpack.c.h.b16 %v111
  %v676 = vunpack.c.l.b16 %v112
  %v677 = vunpack.c.h.b16 %v112
  %v678 = vunpack.c.l.b16 %v113
  %v679 = vunpack.c.h.b16 %v113
  %v680 = vunpack.c.l.b16 %v114
  %v681 = vunpack.c.h.b16 %v114
  %v682 = vpack.c.b16 %v586, %v582
  %v683 = vpack.c.b16 %v587, %v583
  %v684 = vpack.c.b16 %v588, %v584
  %v685 = vpack.c.b16 %v589, %v585
  %v686 = vpack.c.b16 %v594, %v590
  %v687 = vpack.c.b16 %v595, %v591
  %v688 = vpack.c.b16 %v596, %v592
  %v689 = vpack.c.b16 %v597, %v593
  %v690 = vpack.c.b16 %v602, %v598
  %v691 = vpack.c.b16 %v603, %v599
  %v692 = vpack.c.b16 %v604, %v600
  %v693 = vpack.c.b16 %v605, %v601
  %v694 = vpack.c.b16 %v610, %v606
  %v695 = vpack.c.b16 %v611, %v607
  %v696 = vpack.c.b16 %v612, %v608
  %v697 = vpack.c.b16 %v613, %v609
  %v698 = vpack.c.b16 %v618, %v614
  %v699 = vpack.c.b16 %v619, %v615
  %v700 = vpack.c.b16 %v620, %v616
  %v701 = vpack.c.b16 %v621, %v617
  %v702 = vpack.c.b16 %v626, %v622
  %v703 = vpack.c.b16 %v627, %v623
  %v704 = vpack.c.b16 %v628, %v624
  %v705 = vpack.c.b16 %v629, %v625
  %v706 = vpack.c.b16 %v634, %v630
  %v707 = vpack.c.b16 %v635, %v631
  %v708 = vpack.c.b16 %v636, %v632
  %v709 = vpack.c.b16 %v637, %v633
  %v710 = vpack.c.b16 %v642, %v638
  %v711 = vpack.c.b16 %v643, %v639
  %v712 = vpack.c.b16 %v644, %v640
  %v713 = vpack.c.b16 %v645, %v641
  %v714 = vpack.c.b16 %v650, %v646
  %v715 = vpack.c.b16 %v651, %v647
  %v716 = vpack.c.b16 %v652, %v648
  %v717 = vpack.c.b16 %v653, %v649
  %v718 = vpack.c.b16 %v658, %v654
  %v719 = vpack.c.b16 %v659, %v655
  %v720 = vpack.c.b16 %v660, %v656
  %v721 = vpack.c.b16 %v661, %v657
  %v722 = vpack.c.b16 %v666, %v662
  %v723 = vpack.c.b16 %v667, %v663
  %v724 = vpack.c.b16 %v668, %v664
  %v725 = vpack.c.b16 %v669, %v665
  %v726 = vpack.c.b16 %v674, %v670
  %v727 = vpack.c.b16 %v675, %v671
  %v728 = vpack.c.b16 %v676, %v672
  %v729 = vpack.c.b16 %v677, %v673
  %v730 = vpack.c.b16 %v678, %v678
  %v731 = vpack.c.b16 %v679, %v679
  %v732 = vpack.c.b16 %v680, %v680
  %v733 = vpack.c.b16 %v681, %v681
  %v783 = vsel %vm386, %v530, 0
  %v786 = vsel %vm390, %v730, 0
  %v789 = vsel %vm390, %v731, 0
  %v792 = vsel %vm390, %v732, 0
  %v795 = vsel %vm390, %v733, 0
  %797 = vmatpush.bf16.msra.mxu0 %v710
  %798 = vmatpush.bf16.msra.mxu0 %v706
  %799 = vmatpush.bf16.msra.mxu0 %v702
  %800 = vmatpush.bf16.msra.mxu0 %v698
  %801 = vmatpush.bf16.msra.mxu0 %v694
  %802 = vmatpush.bf16.msra.mxu0 %v690
  %803 = vmatpush.bf16.msra.mxu0 %v686
  %804 = vmatpush.bf16.msra.mxu0 %v682
  %805 = vmatmul.bf16.gmra.mxu0 %v523
  %v806 = vpop.f32.mrf.mxu0
  %v807 = vadd.f32 0.0, %v806
  %v808 = vpop.f32.mrf.mxu0
  %809 = vdwg.mxu0
  %810 = vmatpush.bf16.msra.mxu0 0
  %811 = vmatpush.bf16.msra.mxu0 0
  %812 = vmatpush.bf16.msra.mxu0 0
  %813 = vmatpush.bf16.msra.mxu0 %v786
  %814 = vmatpush.bf16.msra.mxu0 %v726
  %815 = vmatpush.bf16.msra.mxu0 %v722
  %816 = vmatpush.bf16.msra.mxu0 %v718
  %817 = vmatpush.bf16.msra.mxu0 %v714
  %818 = vmatmul.bf16.gmra.mxu0 %v783
  %v819 = vpop.f32.mrf.mxu0
  %v820 = vadd.f32 %v807, %v819
  %v821 = vpop.f32.mrf.mxu0
  %822 = vdwg.mxu0
  %823 = vmatpush.bf16.msra.mxu0 %v711
  %824 = vmatpush.bf16.msra.mxu0 %v707
  %825 = vmatpush.bf16.msra.mxu0 %v703
  %826 = vmatpush.bf16.msra.mxu0 %v699
  %827 = vmatpush.bf16.msra.mxu0 %v695
  %828 = vmatpush.bf16.msra.mxu0 %v691
  %829 = vmatpush.bf16.msra.mxu0 %v687
  %830 = vmatpush.bf16.msra.mxu0 %v683
  %831 = vmatmul.bf16.gmra.mxu0 %v523
  %v832 = vpop.f32.mrf.mxu0
  %v833 = vadd.f32 0.0, %v832
  %v834 = vpop.f32.mrf.mxu0
  %835 = vdwg.mxu0
  %836 = vmatpush.bf16.msra.mxu0 0
  %837 = vmatpush.bf16.msra.mxu0 0
  %838 = vmatpush.bf16.msra.mxu0 0
  %839 = vmatpush.bf16.msra.mxu0 %v789
  %840 = vmatpush.bf16.msra.mxu0 %v727
  %841 = vmatpush.bf16.msra.mxu0 %v723
  %842 = vmatpush.bf16.msra.mxu0 %v719
  %843 = vmatpush.bf16.msra.mxu0 %v715
  %844 = vmatmul.bf16.gmra.mxu0 %v783
  %v845 = vpop.f32.mrf.mxu0
  %v846 = vadd.f32 %v833, %v845
  %v847 = vpop.f32.mrf.mxu0
  %848 = vdwg.mxu0
  %849 = vmatpush.bf16.msra.mxu0 %v712
  %850 = vmatpush.bf16.msra.mxu0 %v708
  %851 = vmatpush.bf16.msra.mxu0 %v704
  %852 = vmatpush.bf16.msra.mxu0 %v700
  %853 = vmatpush.bf16.msra.mxu0 %v696
  %854 = vmatpush.bf16.msra.mxu0 %v692
  %855 = vmatpush.bf16.msra.mxu0 %v688
  %856 = vmatpush.bf16.msra.mxu0 %v684
  %857 = vmatmul.bf16.gmra.mxu0 %v523
  %v858 = vpop.f32.mrf.mxu0
  %v859 = vadd.f32 0.0, %v858
  %v860 = vpop.f32.mrf.mxu0
  %861 = vdwg.mxu0
  %862 = vmatpush.bf16.msra.mxu0 0
  %863 = vmatpush.bf16.msra.mxu0 0
  %864 = vmatpush.bf16.msra.mxu0 0
  %865 = vmatpush.bf16.msra.mxu0 %v792
  %866 = vmatpush.bf16.msra.mxu0 %v728
  %867 = vmatpush.bf16.msra.mxu0 %v724
  %868 = vmatpush.bf16.msra.mxu0 %v720
  %869 = vmatpush.bf16.msra.mxu0 %v716
  %870 = vmatmul.bf16.gmra.mxu0 %v783
  %v871 = vpop.f32.mrf.mxu0
  %v872 = vadd.f32 %v859, %v871
  %v873 = vpop.f32.mrf.mxu0
  %874 = vdwg.mxu0
  %875 = vmatpush.bf16.msra.mxu0 %v713
  %876 = vmatpush.bf16.msra.mxu0 %v709
  %877 = vmatpush.bf16.msra.mxu0 %v705
  %878 = vmatpush.bf16.msra.mxu0 %v701
  %879 = vmatpush.bf16.msra.mxu0 %v697
  %880 = vmatpush.bf16.msra.mxu0 %v693
  %881 = vmatpush.bf16.msra.mxu0 %v689
  %882 = vmatpush.bf16.msra.mxu0 %v685
  %883 = vmatmul.bf16.gmra.mxu0 %v523
  %v884 = vpop.f32.mrf.mxu0
  %v885 = vadd.f32 0.0, %v884
  %v886 = vpop.f32.mrf.mxu0
  %887 = vdwg.mxu0
  %888 = vmatpush.bf16.msra.mxu0 0
  %889 = vmatpush.bf16.msra.mxu0 0
  %890 = vmatpush.bf16.msra.mxu0 0
  %891 = vmatpush.bf16.msra.mxu0 %v795
  %892 = vmatpush.bf16.msra.mxu0 %v729
  %893 = vmatpush.bf16.msra.mxu0 %v725
  %894 = vmatpush.bf16.msra.mxu0 %v721
  %895 = vmatpush.bf16.msra.mxu0 %v717
  %896 = vmatmul.bf16.gmra.mxu0 %v783
  %v897 = vpop.f32.mrf.mxu0
  %v898 = vadd.f32 %v885, %v897
  %v899 = vpop.f32.mrf.mxu0
  %900 = vdwg.mxu0
  %v901 = vadd.f32 %v507, %v820
  %v902 = vadd.f32 %v508, %v846
  %v903 = vadd.f32 %v509, %v872
  %v904 = vadd.f32 %v510, %v898
  %v905 = vmax.f32 %v901, 0.0
  %v906 = vmax.f32 %v902, 0.0
  %v907 = vmax.f32 %v903, 0.0
  %v908 = vmax.f32 %v904, 0.0
  %v909 = vpack.c.bf16 %v906, %v905
  %v910 = vpack.c.bf16 %v908, %v907
  %v913 = vrot.slane %v909, 2
  %v914 = vrot.slane %v910, 4
  %v915 = vrot.slane %v910, 6
  %vm916 = vcmask 1041408
  %v919 = vsel %vm916, %v909, %v913
  %vm920 = vcmask 1045508
  %v923 = vsel %vm920, %v914, %v915
  %v924 = vsel %vm390, %v919, %v923
  %926 = vst [vmem:[%s3] sm:$0xff] %v924
  %s927 = scalar_lea.vmem %s0, 8
  %v928 = vld [vmem:[%s927] sm:$0x33]
  %v930 = vunpack.c.l.b16 %v928
  %v931 = vunpack.c.h.b16 %v928
  %v932 = vpack.c.b16 %v930, %v930
  %v933 = vpack.c.b16 %v931, %v931
  %v936 = vsel %vm386, %v933, 0
  %938 = vmatpush.bf16.msra.mxu0 %v314
  %939 = vmatpush.bf16.msra.mxu0 %v310
  %940 = vmatpush.bf16.msra.mxu0 %v306
  %941 = vmatpush.bf16.msra.mxu0 %v302
  %942 = vmatpush.bf16.msra.mxu0 %v298
  %943 = vmatpush.bf16.msra.mxu0 %v294
  %944 = vmatpush.bf16.msra.mxu0 %v290
  %945 = vmatpush.bf16.msra.mxu0 %v286
  %946 = vmatmul.bf16.gmra.mxu0 %v932
  %v947 = vpop.f32.mrf.mxu0
  %v948 = vadd.f32 0.0, %v947
  %v949 = vpop.f32.mrf.mxu0
  %950 = vdwg.mxu0
  %951 = vmatpush.bf16.msra.mxu0 0
  %952 = vmatpush.bf16.msra.mxu0 0
  %953 = vmatpush.bf16.msra.mxu0 0
  %954 = vmatpush.bf16.msra.mxu0 %v392
  %955 = vmatpush.bf16.msra.mxu0 %v330
  %956 = vmatpush.bf16.msra.mxu0 %v326
  %957 = vmatpush.bf16.msra.mxu0 %v322
  %958 = vmatpush.bf16.msra.mxu0 %v318
  %959 = vmatmul.bf16.gmra.mxu0 %v936
  %v960 = vpop.f32.mrf.mxu0
  %v961 = vadd.f32 %v948, %v960
  %v962 = vpop.f32.mrf.mxu0
  %963 = vdwg.mxu0
  %964 = vmatpush.bf16.msra.mxu0 %v315
  %965 = vmatpush.bf16.msra.mxu0 %v311
  %966 = vmatpush.bf16.msra.mxu0 %v307
  %967 = vmatpush.bf16.msra.mxu0 %v303
  %968 = vmatpush.bf16.msra.mxu0 %v299
  %969 = vmatpush.bf16.msra.mxu0 %v295
  %970 = vmatpush.bf16.msra.mxu0 %v291
  %971 = vmatpush.bf16.msra.mxu0 %v287
  %972 = vmatmul.bf16.gmra.mxu0 %v932
  %v973 = vpop.f32.mrf.mxu0
  %v974 = vadd.f32 0.0, %v973
  %v975 = vpop.f32.mrf.mxu0
  %976 = vdwg.mxu0
  %977 = vmatpush.bf16.msra.mxu0 0
  %978 = vmatpush.bf16.msra.mxu0 0
  %979 = vmatpush.bf16.msra.mxu0 0
  %980 = vmatpush.bf16.msra.mxu0 %v395
  %981 = vmatpush.bf16.msra.mxu0 %v331
  %982 = vmatpush.bf16.msra.mxu0 %v327
  %983 = vmatpush.bf16.msra.mxu0 %v323
  %984 = vmatpush.bf16.msra.mxu0 %v319
  %985 = vmatmul.bf16.gmra.mxu0 %v936
  %v986 = vpop.f32.mrf.mxu0
  %v987 = vadd.f32 %v974, %v986
  %v988 = vpop.f32.mrf.mxu0
  %989 = vdwg.mxu0
  %990 = vmatpush.bf16.msra.mxu0 %v316
  %991 = vmatpush.bf16.msra.mxu0 %v312
  %992 = vmatpush.bf16.msra.mxu0 %v308
  %993 = vmatpush.bf16.msra.mxu0 %v304
  %994 = vmatpush.bf16.msra.mxu0 %v300
  %995 = vmatpush.bf16.msra.mxu0 %v296
  %996 = vmatpush.bf16.msra.mxu0 %v292
  %997 = vmatpush.bf16.msra.mxu0 %v288
  %998 = vmatmul.bf16.gmra.mxu0 %v932
  %v999 = vpop.f32.mrf.mxu0
  %v1000 = vadd.f32 0.0, %v999
  %v1001 = vpop.f32.mrf.mxu0
  %1002 = vdwg.mxu0
  %1003 = vmatpush.bf16.msra.mxu0 0
  %1004 = vmatpush.bf16.msra.mxu0 0
  %1005 = vmatpush.bf16.msra.mxu0 0
  %1006 = vmatpush.bf16.msra.mxu0 %v398
  %1007 = vmatpush.bf16.msra.mxu0 %v332
  %1008 = vmatpush.bf16.msra.mxu0 %v328
  %1009 = vmatpush.bf16.msra.mxu0 %v324
  %1010 = vmatpush.bf16.msra.mxu0 %v320
  %1011 = vmatmul.bf16.gmra.mxu0 %v936
  %v1012 = vpop.f32.mrf.mxu0
  %v1013 = vadd.f32 %v1000, %v1012
  %v1014 = vpop.f32.mrf.mxu0
  %1015 = vdwg.mxu0
  %1016 = vmatpush.bf16.msra.mxu0 %v317
  %1017 = vmatpush.bf16.msra.mxu0 %v313
  %1018 = vmatpush.bf16.msra.mxu0 %v309
  %1019 = vmatpush.bf16.msra.mxu0 %v305
  %1020 = vmatpush.bf16.msra.mxu0 %v301
  %1021 = vmatpush.bf16.msra.mxu0 %v297
  %1022 = vmatpush.bf16.msra.mxu0 %v293
  %1023 = vmatpush.bf16.msra.mxu0 %v289
  %1024 = vmatmul.bf16.gmra.mxu0 %v932
  %v1025 = vpop.f32.mrf.mxu0
  %v1026 = vadd.f32 0.0, %v1025
  %v1027 = vpop.f32.mrf.mxu0
  %1028 = vdwg.mxu0
  %1029 = vmatpush.bf16.msra.mxu0 0
  %1030 = vmatpush.bf16.msra.mxu0 0
  %1031 = vmatpush.bf16.msra.mxu0 0
  %1032 = vmatpush.bf16.msra.mxu0 %v401
  %1033 = vmatpush.bf16.msra.mxu0 %v333
  %1034 = vmatpush.bf16.msra.mxu0 %v329
  %1035 = vmatpush.bf16.msra.mxu0 %v325
  %1036 = vmatpush.bf16.msra.mxu0 %v321
  %1037 = vmatmul.bf16.gmra.mxu0 %v936
  %v1038 = vpop.f32.mrf.mxu0
  %v1039 = vadd.f32 %v1026, %v1038
  %v1040 = vpop.f32.mrf.mxu0
  %1041 = vdwg.mxu0
  %v1042 = vadd.f32 %v125, %v961
  %v1043 = vadd.f32 %v126, %v987
  %v1044 = vadd.f32 %v127, %v1013
  %v1045 = vadd.f32 %v128, %v1039
  %v1046 = vld [vmem:[%s927] sm:$0x77]
  %v1048 = vunpack.c.l.b16 %v1046
  %v1049 = vunpack.c.h.b16 %v1046
  %v1050 = vpack.c.b16 %v1048, %v1048
  %v1051 = vpack.c.b16 %v1049, %v1049
  %v1053 = vshrl.u32 %v1050, 16
  %v1055 = vshll.u32 %v1050, 16
  %v1057 = vrot.slane %v1055, 1
  %v1058 = vor.u32 %v1053, %v1057
  %v1060 = vshrl.u32 %v1051, 16
  %v1062 = vshll.u32 %v1051, 16
  %v1064 = vrot.slane %v1062, 1
  %v1065 = vor.u32 %v1060, %v1064
  %v1068 = vsel %vm386, %v1065, 0
  %1070 = vmatpush.bf16.msra.mxu0 %v710
  %1071 = vmatpush.bf16.msra.mxu0 %v706
  %1072 = vmatpush.bf16.msra.mxu0 %v702
  %1073 = vmatpush.bf16.msra.mxu0 %v698
  %1074 = vmatpush.bf16.msra.mxu0 %v694
  %1075 = vmatpush.bf16.msra.mxu0 %v690
  %1076 = vmatpush.bf16.msra.mxu0 %v686
  %1077 = vmatpush.bf16.msra.mxu0 %v682
  %1078 = vmatmul.bf16.gmra.mxu0 %v1058
  %v1079 = vpop.f32.mrf.mxu0
  %v1080 = vadd.f32 0.0, %v1079
  %v1081 = vpop.f32.mrf.mxu0
  %1082 = vdwg.mxu0
  %1083 = vmatpush.bf16.msra.mxu0 0
  %1084 = vmatpush.bf16.msra.mxu0 0
  %1085 = vmatpush.bf16.msra.mxu0 0
  %1086 = vmatpush.bf16.msra.mxu0 %v786
  %1087 = vmatpush.bf16.msra.mxu0 %v726
  %1088 = vmatpush.bf16.msra.mxu0 %v722
  %1089 = vmatpush.bf16.msra.mxu0 %v718
  %1090 = vmatpush.bf16.msra.mxu0 %v714
  %1091 = vmatmul.bf16.gmra.mxu0 %v1068
  %v1092 = vpop.f32.mrf.mxu0
  %v1093 = vadd.f32 %v1080, %v1092
  %v1094 = vpop.f32.mrf.mxu0
  %1095 = vdwg.mxu0
  %1096 = vmatpush.bf16.msra.mxu0 %v711
  %1097 = vmatpush.bf16.msra.mxu0 %v707
  %1098 = vmatpush.bf16.msra.mxu0 %v703
  %1099 = vmatpush.bf16.msra.mxu0 %v699
  %1100 = vmatpush.bf16.msra.mxu0 %v695
  %1101 = vmatpush.bf16.msra.mxu0 %v691
  %1102 = vmatpush.bf16.msra.mxu0 %v687
  %1103 = vmatpush.bf16.msra.mxu0 %v683
  %1104 = vmatmul.bf16.gmra.mxu0 %v1058
  %v1105 = vpop.f32.mrf.mxu0
  %v1106 = vadd.f32 0.0, %v1105
  %v1107 = vpop.f32.mrf.mxu0
  %1108 = vdwg.mxu0
  %1109 = vmatpush.bf16.msra.mxu0 0
  %1110 = vmatpush.bf16.msra.mxu0 0
  %1111 = vmatpush.bf16.msra.mxu0 0
  %1112 = vmatpush.bf16.msra.mxu0 %v789
  %1113 = vmatpush.bf16.msra.mxu0 %v727
  %1114 = vmatpush.bf16.msra.mxu0 %v723
  %1115 = vmatpush.bf16.msra.mxu0 %v719
  %1116 = vmatpush.bf16.msra.mxu0 %v715
  %1117 = vmatmul.bf16.gmra.mxu0 %v1068
  %v1118 = vpop.f32.mrf.mxu0
  %v1119 = vadd.f32 %v1106, %v1118
  %v1120 = vpop.f32.mrf.mxu0
  %1121 = vdwg.mxu0
  %1122 = vmatpush.bf16.msra.mxu0 %v712
  %1123 = vmatpush.bf16.msra.mxu0 %v708
  %1124 = vmatpush.bf16.msra.mxu0 %v704
  %1125 = vmatpush.bf16.msra.mxu0 %v700
  %1126 = vmatpush.bf16.msra.mxu0 %v696
  %1127 = vmatpush.bf16.msra.mxu0 %v692
  %1128 = vmatpush.bf16.msra.mxu0 %v688
  %1129 = vmatpush.bf16.msra.mxu0 %v684
  %1130 = vmatmul.bf16.gmra.mxu0 %v1058
  %v1131 = vpop.f32.mrf.mxu0
  %v1132 = vadd.f32 0.0, %v1131
  %v1133 = vpop.f32.mrf.mxu0
  %1134 = vdwg.mxu0
  %1135 = vmatpush.bf16.msra.mxu0 0
  %1136 = vmatpush.bf16.msra.mxu0 0
  %1137 = vmatpush.bf16.msra.mxu0 0
  %1138 = vmatpush.bf16.msra.mxu0 %v792
  %1139 = vmatpush.bf16.msra.mxu0 %v728
  %1140 = vmatpush.bf16.msra.mxu0 %v724
  %1141 = vmatpush.bf16.msra.mxu0 %v720
  %1142 = vmatpush.bf16.msra.mxu0 %v716
  %1143 = vmatmul.bf16.gmra.mxu0 %v1068
  %v1144 = vpop.f32.mrf.mxu0
  %v1145 = vadd.f32 %v1132, %v1144
  %v1146 = vpop.f32.mrf.mxu0
  %1147 = vdwg.mxu0
  %1148 = vmatpush.bf16.msra.mxu0 %v713
  %1149 = vmatpush.bf16.msra.mxu0 %v709
  %1150 = vmatpush.bf16.msra.mxu0 %v705
  %1151 = vmatpush.bf16.msra.mxu0 %v701
  %1152 = vmatpush.bf16.msra.mxu0 %v697
  %1153 = vmatpush.bf16.msra.mxu0 %v693
  %1154 = vmatpush.bf16.msra.mxu0 %v689
  %1155 = vmatpush.bf16.msra.mxu0 %v685
  %1156 = vmatmul.bf16.gmra.mxu0 %v1058
  %v1157 = vpop.f32.mrf.mxu0
  %v1158 = vadd.f32 0.0, %v1157
  %v1159 = vpop.f32.mrf.mxu0
  %1160 = vdwg.mxu0
  %1161 = vmatpush.bf16.msra.mxu0 0
  %1162 = vmatpush.bf16.msra.mxu0 0
  %1163 = vmatpush.bf16.msra.mxu0 0
  %1164 = vmatpush.bf16.msra.mxu0 %v795
  %1165 = vmatpush.bf16.msra.mxu0 %v729
  %1166 = vmatpush.bf16.msra.mxu0 %v725
  %1167 = vmatpush.bf16.msra.mxu0 %v721
  %1168 = vmatpush.bf16.msra.mxu0 %v717
  %1169 = vmatmul.bf16.gmra.mxu0 %v1068
  %v1170 = vpop.f32.mrf.mxu0
  %v1171 = vadd.f32 %v1158, %v1170
  %v1172 = vpop.f32.mrf.mxu0
  %1173 = vdwg.mxu0
  %v1174 = vadd.f32 %v1042, %v1093
  %v1175 = vadd.f32 %v1043, %v1119
  %v1176 = vadd.f32 %v1044, %v1145
  %v1177 = vadd.f32 %v1045, %v1171
  %v1178 = vmax.f32 %v1174, 0.0
  %v1179 = vmax.f32 %v1175, 0.0
  %v1180 = vmax.f32 %v1176, 0.0
  %v1181 = vmax.f32 %v1177, 0.0
  %v1182 = vpack.c.bf16 %v1179, %v1178
  %v1183 = vpack.c.bf16 %v1181, %v1180
  %v1186 = vrot.slane %v1182, 2
  %v1187 = vrot.slane %v1183, 4
  %v1188 = vrot.slane %v1183, 6
  %v1191 = vsel %vm916, %v1182, %v1186
  %v1194 = vsel %vm920, %v1187, %v1188
  %v1195 = vsel %vm390, %v1191, %v1194
  %s1197 = scalar_lea.vmem %s3, 8
  %1198 = vst [vmem:[%s1197] sm:$0xff] %v1195
  // Predicated region
  $region14: #{forward.7} parent=0 // pred_check
    _
  $region15: #{forward.7} parent=0 // pred_check_branch
    %1200 = sbr.rel (0) target = $region17
  $region16: #{forward.7} parent=0 // pred_region
    _
  $region17: #{forward.7} parent=0 // pred_fallthru
    _
  // Predicated region
  $region18: #{forward.7} parent=0 // pred_check
    _
  $region19: #{forward.7} parent=0 // pred_check_branch
    %1202 = sbr.rel (0) target = $region21
  $region20: #{forward.7} parent=0 // pred_region
    _
  $region21: #{forward.7} parent=0 // pred_fallthru
    _

// kernel: forward.8
$region0: #{forward.8}
  #allocation0 [shape = 'u32[]', space=smem, size = 0x4, offset = 0x4, fixed_abs, tag = 'smem constant byte address 0x4 - core index']
  #allocation1 [shape = 'u32[72,128]{1,0:T(1,128)}', space=vmem, size = 0x9000, scoped, tag = 'internal scratch']
  %s0 = inlined_call_operand.vmem [shape: bf16[128,32], index: 0, kind: input, shape index: {}]
  %s1 = inlined_call_operand.vmem [shape: bf16[128,32], index: 1, kind: input, shape index: {}]
  %s2 = inlined_call_operand.vmem [shape: bf16[32,32], index: 2, kind: input, shape index: {}]
  %s3 = inlined_call_operand.vmem [shape: bf16[32,32], index: 3, kind: input, shape index: {}]
  %s4 = inlined_call_operand.vmem [shape: f32[1,32], index: 4, kind: input, shape index: {}]
  %s5 = inlined_call_operand.vmem [shape: bf16[128,64], index: 5, kind: output, shape index: {}]
  %s6 = sld [smem:[#allocation0]]
  $region30: #{forward.8} parent=0
    _
  %s8 = ssub.s32 1, %s6
  %s9 = scalar_select 0, %s8, %s6
  // Predicated region
  $region2: #{forward.8} parent=0 // pred_check
    _
  $region3: #{forward.8} parent=0 // pred_check_branch
    %11 = sbr.rel (0) target = $region5
  $region4: #{forward.8} parent=0 // pred_region
    _
  $region5: #{forward.8} parent=0 // pred_fallthru
    _
  // Predicated region
  $region6: #{forward.8} parent=0 // pred_check
    _
  $region7: #{forward.8} parent=0 // pred_check_branch
    %13 = sbr.rel (0) target = $region9
  $region8: #{forward.8} parent=0 // pred_region
    _
  $region9: #{forward.8} parent=0 // pred_fallthru
    _
  // Predicated region
  $region10: #{forward.8} parent=0 // pred_check
    _
  $region11: #{forward.8} parent=0 // pred_check_branch
    %15 = sbr.rel (0) target = $region13
  $region12: #{forward.8} parent=0 // pred_region
    _
  $region13: #{forward.8} parent=0 // pred_fallthru
    _
  // Predicated region
  $region14: #{forward.8} parent=0 // pred_check
    _
  $region15: #{forward.8} parent=0 // pred_check_branch
    %17 = sbr.rel (0) target = $region17
  $region16: #{forward.8} parent=0 // pred_region
    _
  $region17: #{forward.8} parent=0 // pred_fallthru
    _
  // Predicated region
  $region18: #{forward.8} parent=0 // pred_check
    _
  $region19: #{forward.8} parent=0 // pred_check_branch
    %19 = sbr.rel (0) target = $region21
  $region20: #{forward.8} parent=0 // pred_region
    _
  $region21: #{forward.8} parent=0 // pred_fallthru
    _
  %v21 = vld [vmem:[%s0] sm:$0xf]
  %v22 = vld [vmem:[%s0 + $0x4] sm:$0xf]
  %v23 = vld [vmem:[%s0 + $0x8] sm:$0xf]
  %v24 = vld [vmem:[%s0 + $0xc] sm:$0xf]
  %v25 = vld [vmem:[%s0 + $0x10] sm:$0xf]
  %v26 = vld [vmem:[%s0 + $0x14] sm:$0xf]
  %v27 = vld [vmem:[%s0 + $0x18] sm:$0xf]
  %v28 = vld [vmem:[%s0 + $0x1c] sm:$0xf]
  %v29 = vld [vmem:[%s0 + $0x20] sm:$0xf]
  %v30 = vld [vmem:[%s0 + $0x24] sm:$0xf]
  %v31 = vld [vmem:[%s0 + $0x28] sm:$0xf]
  %v32 = vld [vmem:[%s0 + $0x2c] sm:$0xf]
  %v33 = vld [vmem:[%s0 + $0x30] sm:$0xf]
  %v34 = vld [vmem:[%s0 + $0x34] sm:$0xf]
  %v35 = vld [vmem:[%s0 + $0x38] sm:$0xf]
  %v36 = vld [vmem:[%s0 + $0x3c] sm:$0xf]
  %v37 = vld [vmem:[%s1] sm:$0xf]
  %v38 = vld [vmem:[%s1 + $0x4] sm:$0xf]
  %v39 = vld [vmem:[%s1 + $0x8] sm:$0xf]
  %v40 = vld [vmem:[%s1 + $0xc] sm:$0xf]
  %v41 = vld [vmem:[%s1 + $0x10] sm:$0xf]
  %v42 = vld [vmem:[%s1 + $0x14] sm:$0xf]
  %v43 = vld [vmem:[%s1 + $0x18] sm:$0xf]
  %v44 = vld [vmem:[%s1 + $0x1c] sm:$0xf]
  %v45 = vld [vmem:[%s1 + $0x20] sm:$0xf]
  %v46 = vld [vmem:[%s1 + $0x24] sm:$0xf]
  %v47 = vld [vmem:[%s1 + $0x28] sm:$0xf]
  %v48 = vld [vmem:[%s1 + $0x2c] sm:$0xf]
  %v49 = vld [vmem:[%s1 + $0x30] sm:$0xf]
  %v50 = vld [vmem:[%s1 + $0x34] sm:$0xf]
  %v51 = vld [vmem:[%s1 + $0x38] sm:$0xf]
  %v52 = vld [vmem:[%s1 + $0x3c] sm:$0xf]
  %v53 = vld [vmem:[%s2] sm:$0xf]
  %v54 = vld [vmem:[%s2 + $0x4] sm:$0xf]
  %v55 = vld [vmem:[%s2 + $0x8] sm:$0xf]
  %v56 = vld [vmem:[%s2 + $0xc] sm:$0xf]
  %v57 = vld [vmem:[%s3] sm:$0xf]
  %v58 = vld [vmem:[%s3 + $0x4] sm:$0xf]
  %v59 = vld [vmem:[%s3 + $0x8] sm:$0xf]
  %v60 = vld [vmem:[%s3 + $0xc] sm:$0xf]
  %v77 = vunpack.c.l.b16 %v37
  %v78 = vunpack.c.l.b16 %v38
  %v79 = vunpack.c.l.b16 %v39
  %v80 = vunpack.c.l.b16 %v40
  %v81 = vunpack.c.l.b16 %v41
  %v82 = vunpack.c.l.b16 %v42
  %v83 = vunpack.c.l.b16 %v43
  %v84 = vunpack.c.l.b16 %v44
  %v85 = vunpack.c.l.b16 %v45
  %v86 = vunpack.c.l.b16 %v46
  %v87 = vunpack.c.l.b16 %v47
  %v88 = vunpack.c.l.b16 %v48
  %v89 = vunpack.c.l.b16 %v49
  %v90 = vunpack.c.l.b16 %v50
  %v91 = vunpack.c.l.b16 %v51
  %v92 = vunpack.c.l.b16 %v52
  %v93 = vpack.c.b16 %v78, %v77
  %v94 = vpack.c.b16 %v80, %v79
  %v95 = vpack.c.b16 %v82, %v81
  %v96 = vpack.c.b16 %v84, %v83
  %v97 = vpack.c.b16 %v86, %v85
  %v98 = vpack.c.b16 %v88, %v87
  %v99 = vpack.c.b16 %v90, %v89
  %v100 = vpack.c.b16 %v92, %v91
  %v105 = vunpack.c.l.b16 %v57
  %v106 = vunpack.c.l.b16 %v58
  %v107 = vunpack.c.l.b16 %v59
  %v108 = vunpack.c.l.b16 %v60
  %v109 = vpack.c.b16 %v106, %v105
  %v110 = vpack.c.b16 %v108, %v107
  %vm113 = vcmask 261120
  %v115 = vsel %vm113, %v93, 0
  %v118 = vsel %vm113, %v94, 0
  %v121 = vsel %vm113, %v95, 0
  %v124 = vsel %vm113, %v96, 0
  %v127 = vsel %vm113, %v97, 0
  %v130 = vsel %vm113, %v98, 0
  %v133 = vsel %vm113, %v99, 0
  %v136 = vsel %vm113, %v100, 0
  %138 = vmatpush.bf16.msra.mxu0 0
  %139 = vmatpush.bf16.msra.mxu0 0
  %140 = vmatpush.bf16.msra.mxu0 0
  %141 = vmatpush.bf16.msra.mxu0 0
  %142 = vmatpush.bf16.msra.mxu0 0
  %143 = vmatpush.bf16.msra.mxu0 0
  %144 = vmatpush.bf16.msra.mxu0 %v110
  %145 = vmatpush.bf16.msra.mxu0 %v109
  %146 = vmatmul.bf16.gmra.mxu0 %v115
  %v147 = vpop.f32.mrf.mxu0
  %v148 = vadd.f32 0.0, %v147
  %v149 = vpop.f32.mrf.mxu0
  %v150 = vadd.f32 0.0, %v149
  %151 = vmatmul.bf16.gmra.mxu0 %v118
  %v152 = vpop.f32.mrf.mxu0
  %v153 = vadd.f32 0.0, %v152
  %v154 = vpop.f32.mrf.mxu0
  %v155 = vadd.f32 0.0, %v154
  %156 = vmatmul.bf16.gmra.mxu0 %v121
  %v157 = vpop.f32.mrf.mxu0
  %v158 = vadd.f32 0.0, %v157
  %v159 = vpop.f32.mrf.mxu0
  %v160 = vadd.f32 0.0, %v159
  %161 = vmatmul.bf16.gmra.mxu0 %v124
  %v162 = vpop.f32.mrf.mxu0
  %v163 = vadd.f32 0.0, %v162
  %v164 = vpop.f32.mrf.mxu0
  %v165 = vadd.f32 0.0, %v164
  %166 = vmatmul.bf16.gmra.mxu0 %v127
  %v167 = vpop.f32.mrf.mxu0
  %v168 = vadd.f32 0.0, %v167
  %v169 = vpop.f32.mrf.mxu0
  %v170 = vadd.f32 0.0, %v169
  %171 = vmatmul.bf16.gmra.mxu0 %v130
  %v172 = vpop.f32.mrf.mxu0
  %v173 = vadd.f32 0.0, %v172
  %v174 = vpop.f32.mrf.mxu0
  %v175 = vadd.f32 0.0, %v174
  %176 = vmatmul.bf16.gmra.mxu0 %v133
  %v177 = vpop.f32.mrf.mxu0
  %v178 = vadd.f32 0.0, %v177
  %v179 = vpop.f32.mrf.mxu0
  %v180 = vadd.f32 0.0, %v179
  %181 = vmatmul.bf16.gmra.mxu0 %v136
  %v182 = vpop.f32.mrf.mxu0
  %v183 = vadd.f32 0.0, %v182
  %v184 = vpop.f32.mrf.mxu0
  %v185 = vadd.f32 0.0, %v184
  %186 = vdwg.mxu0
  %v203 = vunpack.c.l.b16 %v21
  %v204 = vunpack.c.l.b16 %v22
  %v205 = vunpack.c.l.b16 %v23
  %v206 = vunpack.c.l.b16 %v24
  %v207 = vunpack.c.l.b16 %v25
  %v208 = vunpack.c.l.b16 %v26
  %v209 = vunpack.c.l.b16 %v27
  %v210 = vunpack.c.l.b16 %v28
  %v211 = vunpack.c.l.b16 %v29
  %v212 = vunpack.c.l.b16 %v30
  %v213 = vunpack.c.l.b16 %v31
  %v214 = vunpack.c.l.b16 %v32
  %v215 = vunpack.c.l.b16 %v33
  %v216 = vunpack.c.l.b16 %v34
  %v217 = vunpack.c.l.b16 %v35
  %v218 = vunpack.c.l.b16 %v36
  %v219 = vpack.c.b16 %v204, %v203
  %v220 = vpack.c.b16 %v206, %v205
  %v221 = vpack.c.b16 %v208, %v207
  %v222 = vpack.c.b16 %v210, %v209
  %v223 = vpack.c.b16 %v212, %v211
  %v224 = vpack.c.b16 %v214, %v213
  %v225 = vpack.c.b16 %v216, %v215
  %v226 = vpack.c.b16 %v218, %v217
  %v231 = vunpack.c.l.b16 %v53
  %v232 = vunpack.c.l.b16 %v54
  %v233 = vunpack.c.l.b16 %v55
  %v234 = vunpack.c.l.b16 %v56
  %v235 = vpack.c.b16 %v232, %v231
  %v236 = vpack.c.b16 %v234, %v233
  %v240 = vsel %vm113, %v219, 0
  %v243 = vsel %vm113, %v220, 0
  %v246 = vsel %vm113, %v221, 0
  %v249 = vsel %vm113, %v222, 0
  %v252 = vsel %vm113, %v223, 0
  %v255 = vsel %vm113, %v224, 0
  %v258 = vsel %vm113, %v225, 0
  %v261 = vsel %vm113, %v226, 0
  %263 = vmatpush.bf16.msra.mxu0 0
  %264 = vmatpush.bf16.msra.mxu0 0
  %265 = vmatpush.bf16.msra.mxu0 0
  %266 = vmatpush.bf16.msra.mxu0 0
  %267 = vmatpush.bf16.msra.mxu0 0
  %268 = vmatpush.bf16.msra.mxu0 0
  %269 = vmatpush.bf16.msra.mxu0 %v236
  %270 = vmatpush.bf16.msra.mxu0 %v235
  %271 = vmatmul.bf16.gmra.mxu0 %v240
  %v272 = vpop.f32.mrf.mxu0
  %v273 = vadd.f32 %v148, %v272
  %v274 = vpop.f32.mrf.mxu0
  %v275 = vadd.f32 %v150, %v274
  %276 = vmatmul.bf16.gmra.mxu0 %v243
  %v277 = vpop.f32.mrf.mxu0
  %v278 = vadd.f32 %v153, %v277
  %v279 = vpop.f32.mrf.mxu0
  %v280 = vadd.f32 %v155, %v279
  %281 = vmatmul.bf16.gmra.mxu0 %v246
  %v282 = vpop.f32.mrf.mxu0
  %v283 = vadd.f32 %v158, %v282
  %v284 = vpop.f32.mrf.mxu0
  %v285 = vadd.f32 %v160, %v284
  %286 = vmatmul.bf16.gmra.mxu0 %v249
  %v287 = vpop.f32.mrf.mxu0
  %v288 = vadd.f32 %v163, %v287
  %v289 = vpop.f32.mrf.mxu0
  %v290 = vadd.f32 %v165, %v289
  %291 = vmatmul.bf16.gmra.mxu0 %v252
  %v292 = vpop.f32.mrf.mxu0
  %v293 = vadd.f32 %v168, %v292
  %v294 = vpop.f32.mrf.mxu0
  %v295 = vadd.f32 %v170, %v294
  %296 = vmatmul.bf16.gmra.mxu0 %v255
  %v297 = vpop.f32.mrf.mxu0
  %v298 = vadd.f32 %v173, %v297
  %v299 = vpop.f32.mrf.mxu0
  %v300 = vadd.f32 %v175, %v299
  %301 = vmatmul.bf16.gmra.mxu0 %v258
  %v302 = vpop.f32.mrf.mxu0
  %v303 = vadd.f32 %v178, %v302
  %v304 = vpop.f32.mrf.mxu0
  %v305 = vadd.f32 %v180, %v304
  %306 = vmatmul.bf16.gmra.mxu0 %v261
  %v307 = vpop.f32.mrf.mxu0
  %v308 = vadd.f32 %v183, %v307
  %v309 = vpop.f32.mrf.mxu0
  %v310 = vadd.f32 %v185, %v309
  %311 = vdwg.mxu0
  %v312 = vmax.f32 %v273, 0.0
  %v313 = vmax.f32 %v275, 0.0
  %v314 = vmax.f32 %v278, 0.0
  %v315 = vmax.f32 %v280, 0.0
  %v316 = vmax.f32 %v283, 0.0
  %v317 = vmax.f32 %v285, 0.0
  %v318 = vmax.f32 %v288, 0.0
  %v319 = vmax.f32 %v290, 0.0
  %v320 = vmax.f32 %v293, 0.0
  %v321 = vmax.f32 %v295, 0.0
  %v322 = vmax.f32 %v298, 0.0
  %v323 = vmax.f32 %v300, 0.0
  %v324 = vmax.f32 %v303, 0.0
  %v325 = vmax.f32 %v305, 0.0
  %v326 = vmax.f32 %v308, 0.0
  %v327 = vmax.f32 %v310, 0.0
  %v328 = vld [vmem:[%s4] sm:$0x1]
  %v330 = vperm.slane %v328, 0
  %v332 = vmul.f32 %v312, %v330
  %v333 = vmul.f32 %v313, %v330
  %v334 = vmul.f32 %v314, %v330
  %v335 = vmul.f32 %v315, %v330
  %v336 = vmul.f32 %v316, %v330
  %v337 = vmul.f32 %v317, %v330
  %v338 = vmul.f32 %v318, %v330
  %v339 = vmul.f32 %v319, %v330
  %v340 = vmul.f32 %v320, %v330
  %v341 = vmul.f32 %v321, %v330
  %v342 = vmul.f32 %v322, %v330
  %v343 = vmul.f32 %v323, %v330
  %v344 = vmul.f32 %v324, %v330
  %v345 = vmul.f32 %v325, %v330
  %v346 = vmul.f32 %v326, %v330
  %v347 = vmul.f32 %v327, %v330
  %v348 = vsel %vm113, %v332, 0.0
  %349 = vadd.xlane.f32.xlu0 %v348
  %v350 = vpop.xlane.xlu0 %349
  %v351 = vsel %vm113, %v333, 0.0
  %352 = vadd.xlane.f32.xlu0 %v351
  %v353 = vpop.xlane.xlu0 %352
  %v354 = vsel %vm113, %v334, 0.0
  %355 = vadd.xlane.f32.xlu0 %v354
  %v356 = vpop.xlane.xlu0 %355
  %v357 = vsel %vm113, %v335, 0.0
  %358 = vadd.xlane.f32.xlu0 %v357
  %v359 = vpop.xlane.xlu0 %358
  %v360 = vsel %vm113, %v336, 0.0
  %361 = vadd.xlane.f32.xlu0 %v360
  %v362 = vpop.xlane.xlu0 %361
  %v363 = vsel %vm113, %v337, 0.0
  %364 = vadd.xlane.f32.xlu0 %v363
  %v365 = vpop.xlane.xlu0 %364
  %v366 = vsel %vm113, %v338, 0.0
  %367 = vadd.xlane.f32.xlu0 %v366
  %v368 = vpop.xlane.xlu0 %367
  %v369 = vsel %vm113, %v339, 0.0
  %370 = vadd.xlane.f32.xlu0 %v369
  %v371 = vpop.xlane.xlu0 %370
  %v372 = vsel %vm113, %v340, 0.0
  %373 = vadd.xlane.f32.xlu0 %v372
  %v374 = vpop.xlane.xlu0 %373
  %v375 = vsel %vm113, %v341, 0.0
  %376 = vadd.xlane.f32.xlu0 %v375
  %v377 = vpop.xlane.xlu0 %376
  %v378 = vsel %vm113, %v342, 0.0
  %379 = vadd.xlane.f32.xlu0 %v378
  %v380 = vpop.xlane.xlu0 %379
  %v381 = vsel %vm113, %v343, 0.0
  %382 = vadd.xlane.f32.xlu0 %v381
  %v383 = vpop.xlane.xlu0 %382
  %v384 = vsel %vm113, %v344, 0.0
  %385 = vadd.xlane.f32.xlu0 %v384
  %v386 = vpop.xlane.xlu0 %385
  %v387 = vsel %vm113, %v345, 0.0
  %388 = vadd.xlane.f32.xlu0 %v387
  %v389 = vpop.xlane.xlu0 %388
  %v390 = vsel %vm113, %v346, 0.0
  %391 = vadd.xlane.f32.xlu0 %v390
  %v392 = vpop.xlane.xlu0 %391
  %v393 = vsel %vm113, %v347, 0.0
  %394 = vadd.xlane.f32.xlu0 %v393
  %v395 = vpop.xlane.xlu0 %394
  %v396 = vxor.u32 %v350, 2147483648
  %v397 = vxor.u32 %v353, 2147483648
  %v398 = vxor.u32 %v356, 2147483648
  %v399 = vxor.u32 %v359, 2147483648
  %v400 = vxor.u32 %v362, 2147483648
  %v401 = vxor.u32 %v365, 2147483648
  %v402 = vxor.u32 %v368, 2147483648
  %v403 = vxor.u32 %v371, 2147483648
  %v404 = vxor.u32 %v374, 2147483648
  %v405 = vxor.u32 %v377, 2147483648
  %v406 = vxor.u32 %v380, 2147483648
  %v407 = vxor.u32 %v383, 2147483648
  %v408 = vxor.u32 %v386, 2147483648
  %v409 = vxor.u32 %v389, 2147483648
  %v410 = vxor.u32 %v392, 2147483648
  %v411 = vxor.u32 %v395, 2147483648
  %v412 = vmul.f32 %v396, 1.442695
  %v413 = vpow.pop %v412
  %v414 = vmul.f32 %v397, 1.442695
  %v415 = vpow.pop %v414
  %v416 = vmul.f32 %v398, 1.442695
  %v417 = vpow.pop %v416
  %v418 = vmul.f32 %v399, 1.442695
  %v419 = vpow.pop %v418
  %v420 = vmul.f32 %v400, 1.442695
  %v421 = vpow.pop %v420
  %v422 = vmul.f32 %v401, 1.442695
  %v423 = vpow.pop %v422
  %v424 = vmul.f32 %v402, 1.442695
  %v425 = vpow.pop %v424
  %v426 = vmul.f32 %v403, 1.442695
  %v427 = vpow.pop %v426
  %v428 = vmul.f32 %v404, 1.442695
  %v429 = vpow.pop %v428
  %v430 = vmul.f32 %v405, 1.442695
  %v431 = vpow.pop %v430
  %v432 = vmul.f32 %v406, 1.442695
  %v433 = vpow.pop %v432
  %v434 = vmul.f32 %v407, 1.442695
  %v435 = vpow.pop %v434
  %v436 = vmul.f32 %v408, 1.442695
  %v437 = vpow.pop %v436
  %v438 = vmul.f32 %v409, 1.442695
  %v439 = vpow.pop %v438
  %v440 = vmul.f32 %v410, 1.442695
  %v441 = vpow.pop %v440
  %v442 = vmul.f32 %v411, 1.442695
  %v443 = vpow.pop %v442
  %v444 = vadd.f32 %v413, 1.0
  %v445 = vadd.f32 %v415, 1.0
  %v446 = vadd.f32 %v417, 1.0
  %v447 = vadd.f32 %v419, 1.0
  %v448 = vadd.f32 %v421, 1.0
  %v449 = vadd.f32 %v423, 1.0
  %v450 = vadd.f32 %v425, 1.0
  %v451 = vadd.f32 %v427, 1.0
  %v452 = vadd.f32 %v429, 1.0
  %v453 = vadd.f32 %v431, 1.0
  %v454 = vadd.f32 %v433, 1.0
  %v455 = vadd.f32 %v435, 1.0
  %v456 = vadd.f32 %v437, 1.0
  %v457 = vadd.f32 %v439, 1.0
  %v458 = vadd.f32 %v441, 1.0
  %v459 = vadd.f32 %v443, 1.0
  %v460 = vrcp.pop %v444
  %v461 = vmul.f32 %v444, %v460
  %v462 = vsub.f32 1.0, %v461
  %v463 = vmul.f32 %v460, %v462
  %v464 = vadd.f32 %v460, %v463
  %vm465 = vweird.f32 %v444
  %vm466 = vweird.f32 %v460
  %vm467 = vmor %vm465, %vm466
  %v468 = vsel %vm467, %v460, %v464
  %v469 = vand.u32 2147483647, %v444
  %vm470 = vcmp.eq.f32.partialorder %v469, 8.507059e+37
  %v471 = vand.u32 %v444, 2147483648
  %v472 = vor.u32 1.1754944e-38, %v471
  %v473 = vsel %vm470, %v472, %v468
  %v474 = vmul.f32 1.0, %v473
  %v475 = vrcp.pop %v445
  %v476 = vmul.f32 %v445, %v475
  %v477 = vsub.f32 1.0, %v476
  %v478 = vmul.f32 %v475, %v477
  %v479 = vadd.f32 %v475, %v478
  %vm480 = vweird.f32 %v445
  %vm481 = vweird.f32 %v475
  %vm482 = vmor %vm480, %vm481
  %v483 = vsel %vm482, %v475, %v479
  %v484 = vand.u32 2147483647, %v445
  %vm485 = vcmp.eq.f32.partialorder %v484, 8.507059e+37
  %v486 = vand.u32 %v445, 2147483648
  %v487 = vor.u32 1.1754944e-38, %v486
  %v488 = vsel %vm485, %v487, %v483
  %v489 = vmul.f32 1.0, %v488
  %v490 = vrcp.pop %v446
  %v491 = vmul.f32 %v446, %v490
  %v492 = vsub.f32 1.0, %v491
  %v493 = vmul.f32 %v490, %v492
  %v494 = vadd.f32 %v490, %v493
  %vm495 = vweird.f32 %v446
  %vm496 = vweird.f32 %v490
  %vm497 = vmor %vm495, %vm496
  %v498 = vsel %vm497, %v490, %v494
  %v499 = vand.u32 2147483647, %v446
  %vm500 = vcmp.eq.f32.partialorder %v499, 8.507059e+37
  %v501 = vand.u32 %v446, 2147483648
  %v502 = vor.u32 1.1754944e-38, %v501
  %v503 = vsel %vm500, %v502, %v498
  %v504 = vmul.f32 1.0, %v503
  %v505 = vrcp.pop %v447
  %v506 = vmul.f32 %v447, %v505
  %v507 = vsub.f32 1.0, %v506
  %v508 = vmul.f32 %v505, %v507
  %v509 = vadd.f32 %v505, %v508
  %vm510 = vweird.f32 %v447
  %vm511 = vweird.f32 %v505
  %vm512 = vmor %vm510, %vm511
  %v513 = vsel %vm512, %v505, %v509
  %v514 = vand.u32 2147483647, %v447
  %vm515 = vcmp.eq.f32.partialorder %v514, 8.507059e+37
  %v516 = vand.u32 %v447, 2147483648
  %v517 = vor.u32 1.1754944e-38, %v516
  %v518 = vsel %vm515, %v517, %v513
  %v519 = vmul.f32 1.0, %v518
  %v520 = vrcp.pop %v448
  %v521 = vmul.f32 %v448, %v520
  %v522 = vsub.f32 1.0, %v521
  %v523 = vmul.f32 %v520, %v522
  %v524 = vadd.f32 %v520, %v523
  %vm525 = vweird.f32 %v448
  %vm526 = vweird.f32 %v520
  %vm527 = vmor %vm525, %vm526
  %v528 = vsel %vm527, %v520, %v524
  %v529 = vand.u32 2147483647, %v448
  %vm530 = vcmp.eq.f32.partialorder %v529, 8.507059e+37
  %v531 = vand.u32 %v448, 2147483648
  %v532 = vor.u32 1.1754944e-38, %v531
  %v533 = vsel %vm530, %v532, %v528
  %v534 = vmul.f32 1.0, %v533
  %v535 = vrcp.pop %v449
  %v536 = vmul.f32 %v449, %v535
  %v537 = vsub.f32 1.0, %v536
  %v538 = vmul.f32 %v535, %v537
  %v539 = vadd.f32 %v535, %v538
  %vm540 = vweird.f32 %v449
  %vm541 = vweird.f32 %v535
  %vm542 = vmor %vm540, %vm541
  %v543 = vsel %vm542, %v535, %v539
  %v544 = vand.u32 2147483647, %v449
  %vm545 = vcmp.eq.f32.partialorder %v544, 8.507059e+37
  %v546 = vand.u32 %v449, 2147483648
  %v547 = vor.u32 1.1754944e-38, %v546
  %v548 = vsel %vm545, %v547, %v543
  %v549 = vmul.f32 1.0, %v548
  %v550 = vrcp.pop %v450
  %v551 = vmul.f32 %v450, %v550
  %v552 = vsub.f32 1.0, %v551
  %v553 = vmul.f32 %v550, %v552
  %v554 = vadd.f32 %v550, %v553
  %vm555 = vweird.f32 %v450
  %vm556 = vweird.f32 %v550
  %vm557 = vmor %vm555, %vm556
  %v558 = vsel %vm557, %v550, %v554
  %v559 = vand.u32 2147483647, %v450
  %vm560 = vcmp.eq.f32.partialorder %v559, 8.507059e+37
  %v561 = vand.u32 %v450, 2147483648
  %v562 = vor.u32 1.1754944e-38, %v561
  %v563 = vsel %vm560, %v562, %v558
  %v564 = vmul.f32 1.0, %v563
  %v565 = vrcp.pop %v451
  %v566 = vmul.f32 %v451, %v565
  %v567 = vsub.f32 1.0, %v566
  %v568 = vmul.f32 %v565, %v567
  %v569 = vadd.f32 %v565, %v568
  %vm570 = vweird.f32 %v451
  %vm571 = vweird.f32 %v565
  %vm572 = vmor %vm570, %vm571
  %v573 = vsel %vm572, %v565, %v569
  %v574 = vand.u32 2147483647, %v451
  %vm575 = vcmp.eq.f32.partialorder %v574, 8.507059e+37
  %v576 = vand.u32 %v451, 2147483648
  %v577 = vor.u32 1.1754944e-38, %v576
  %v578 = vsel %vm575, %v577, %v573
  %v579 = vmul.f32 1.0, %v578
  %v580 = vrcp.pop %v452
  %v581 = vmul.f32 %v452, %v580
  %v582 = vsub.f32 1.0, %v581
  %v583 = vmul.f32 %v580, %v582
  %v584 = vadd.f32 %v580, %v583
  %vm585 = vweird.f32 %v452
  %vm586 = vweird.f32 %v580
  %vm587 = vmor %vm585, %vm586
  %v588 = vsel %vm587, %v580, %v584
  %v589 = vand.u32 2147483647, %v452
  %vm590 = vcmp.eq.f32.partialorder %v589, 8.507059e+37
  %v591 = vand.u32 %v452, 2147483648
  %v592 = vor.u32 1.1754944e-38, %v591
  %v593 = vsel %vm590, %v592, %v588
  %v594 = vmul.f32 1.0, %v593
  %v595 = vrcp.pop %v453
  %v596 = vmul.f32 %v453, %v595
  %v597 = vsub.f32 1.0, %v596
  %v598 = vmul.f32 %v595, %v597
  %v599 = vadd.f32 %v595, %v598
  %vm600 = vweird.f32 %v453
  %vm601 = vweird.f32 %v595
  %vm602 = vmor %vm600, %vm601
  %v603 = vsel %vm602, %v595, %v599
  %v604 = vand.u32 2147483647, %v453
  %vm605 = vcmp.eq.f32.partialorder %v604, 8.507059e+37
  %v606 = vand.u32 %v453, 2147483648
  %v607 = vor.u32 1.1754944e-38, %v606
  %v608 = vsel %vm605, %v607, %v603
  %v609 = vmul.f32 1.0, %v608
  %v610 = vrcp.pop %v454
  %v611 = vmul.f32 %v454, %v610
  %v612 = vsub.f32 1.0, %v611
  %v613 = vmul.f32 %v610, %v612
  %v614 = vadd.f32 %v610, %v613
  %vm615 = vweird.f32 %v454
  %vm616 = vweird.f32 %v610
  %vm617 = vmor %vm615, %vm616
  %v618 = vsel %vm617, %v610, %v614
  %v619 = vand.u32 2147483647, %v454
  %vm620 = vcmp.eq.f32.partialorder %v619, 8.507059e+37
  %v621 = vand.u32 %v454, 2147483648
  %v622 = vor.u32 1.1754944e-38, %v621
  %v623 = vsel %vm620, %v622, %v618
  %v624 = vmul.f32 1.0, %v623
  %v625 = vrcp.pop %v455
  %v626 = vmul.f32 %v455, %v625
  %v627 = vsub.f32 1.0, %v626
  %v628 = vmul.f32 %v625, %v627
  %v629 = vadd.f32 %v625, %v628
  %vm630 = vweird.f32 %v455
  %vm631 = vweird.f32 %v625
  %vm632 = vmor %vm630, %vm631
  %v633 = vsel %vm632, %v625, %v629
  %v634 = vand.u32 2147483647, %v455
  %vm635 = vcmp.eq.f32.partialorder %v634, 8.507059e+37
  %v636 = vand.u32 %v455, 2147483648
  %v637 = vor.u32 1.1754944e-38, %v636
  %v638 = vsel %vm635, %v637, %v633
  %v639 = vmul.f32 1.0, %v638
  %v640 = vrcp.pop %v456
  %v641 = vmul.f32 %v456, %v640
  %v642 = vsub.f32 1.0, %v641
  %v643 = vmul.f32 %v640, %v642
  %v644 = vadd.f32 %v640, %v643
  %vm645 = vweird.f32 %v456
  %vm646 = vweird.f32 %v640
  %vm647 = vmor %vm645, %vm646
  %v648 = vsel %vm647, %v640, %v644
  %v649 = vand.u32 2147483647, %v456
  %vm650 = vcmp.eq.f32.partialorder %v649, 8.507059e+37
  %v651 = vand.u32 %v456, 2147483648
  %v652 = vor.u32 1.1754944e-38, %v651
  %v653 = vsel %vm650, %v652, %v648
  %v654 = vmul.f32 1.0, %v653
  %v655 = vrcp.pop %v457
  %v656 = vmul.f32 %v457, %v655
  %v657 = vsub.f32 1.0, %v656
  %v658 = vmul.f32 %v655, %v657
  %v659 = vadd.f32 %v655, %v658
  %vm660 = vweird.f32 %v457
  %vm661 = vweird.f32 %v655
  %vm662 = vmor %vm660, %vm661
  %v663 = vsel %vm662, %v655, %v659
  %v664 = vand.u32 2147483647, %v457
  %vm665 = vcmp.eq.f32.partialorder %v664, 8.507059e+37
  %v666 = vand.u32 %v457, 2147483648
  %v667 = vor.u32 1.1754944e-38, %v666
  %v668 = vsel %vm665, %v667, %v663
  %v669 = vmul.f32 1.0, %v668
  %v670 = vrcp.pop %v458
  %v671 = vmul.f32 %v458, %v670
  %v672 = vsub.f32 1.0, %v671
  %v673 = vmul.f32 %v670, %v672
  %v674 = vadd.f32 %v670, %v673
  %vm675 = vweird.f32 %v458
  %vm676 = vweird.f32 %v670
  %vm677 = vmor %vm675, %vm676
  %v678 = vsel %vm677, %v670, %v674
  %v679 = vand.u32 2147483647, %v458
  %vm680 = vcmp.eq.f32.partialorder %v679, 8.507059e+37
  %v681 = vand.u32 %v458, 2147483648
  %v682 = vor.u32 1.1754944e-38, %v681
  %v683 = vsel %vm680, %v682, %v678
  %v684 = vmul.f32 1.0, %v683
  %v685 = vrcp.pop %v459
  %v686 = vmul.f32 %v459, %v685
  %v687 = vsub.f32 1.0, %v686
  %v688 = vmul.f32 %v685, %v687
  %v689 = vadd.f32 %v685, %v688
  %vm690 = vweird.f32 %v459
  %vm691 = vweird.f32 %v685
  %vm692 = vmor %vm690, %vm691
  %v693 = vsel %vm692, %v685, %v689
  %v694 = vand.u32 2147483647, %v459
  %vm695 = vcmp.eq.f32.partialorder %v694, 8.507059e+37
  %v696 = vand.u32 %v459, 2147483648
  %v697 = vor.u32 1.1754944e-38, %v696
  %v698 = vsel %vm695, %v697, %v693
  %v699 = vmul.f32 1.0, %v698
  %v700 = vunpack.c.l.bf16 %v37
  %v701 = vunpack.c.l.bf16 %v38
  %v702 = vunpack.c.l.bf16 %v39
  %v703 = vunpack.c.l.bf16 %v40
  %v704 = vunpack.c.l.bf16 %v41
  %v705 = vunpack.c.l.bf16 %v42
  %v706 = vunpack.c.l.bf16 %v43
  %v707 = vunpack.c.l.bf16 %v44
  %v708 = vunpack.c.l.bf16 %v45
  %v709 = vunpack.c.l.bf16 %v46
  %v710 = vunpack.c.l.bf16 %v47
  %v711 = vunpack.c.l.bf16 %v48
  %v712 = vunpack.c.l.bf16 %v49
  %v713 = vunpack.c.l.bf16 %v50
  %v714 = vunpack.c.l.bf16 %v51
  %v715 = vunpack.c.l.bf16 %v52
  %v716 = vmul.f32 %v474, %v700
  %v717 = vmul.f32 %v489, %v701
  %v718 = vmul.f32 %v504, %v702
  %v719 = vmul.f32 %v519, %v703
  %v720 = vmul.f32 %v534, %v704
  %v721 = vmul.f32 %v549, %v705
  %v722 = vmul.f32 %v564, %v706
  %v723 = vmul.f32 %v579, %v707
  %v724 = vmul.f32 %v594, %v708
  %v725 = vmul.f32 %v609, %v709
  %v726 = vmul.f32 %v624, %v710
  %v727 = vmul.f32 %v639, %v711
  %v728 = vmul.f32 %v654, %v712
  %v729 = vmul.f32 %v669, %v713
  %v730 = vmul.f32 %v684, %v714
  %v731 = vmul.f32 %v699, %v715
  %748 = vrot.lane.b32.xlu0 %v700, 32
  %v749 = vpop.permute.xlu0 %748
  %750 = vrot.lane.b32.xlu0 %v701, 32
  %v751 = vpop.permute.xlu0 %750
  %752 = vrot.lane.b32.xlu0 %v702, 32
  %v753 = vpop.permute.xlu0 %752
  %754 = vrot.lane.b32.xlu0 %v703, 32
  %v755 = vpop.permute.xlu0 %754
  %756 = vrot.lane.b32.xlu0 %v704, 32
  %v757 = vpop.permute.xlu0 %756
  %758 = vrot.lane.b32.xlu0 %v705, 32
  %v759 = vpop.permute.xlu0 %758
  %760 = vrot.lane.b32.xlu0 %v706, 32
  %v761 = vpop.permute.xlu0 %760
  %762 = vrot.lane.b32.xlu0 %v707, 32
  %v763 = vpop.permute.xlu0 %762
  %764 = vrot.lane.b32.xlu0 %v708, 32
  %v765 = vpop.permute.xlu0 %764
  %766 = vrot.lane.b32.xlu0 %v709, 32
  %v767 = vpop.permute.xlu0 %766
  %768 = vrot.lane.b32.xlu0 %v710, 32
  %v769 = vpop.permute.xlu0 %768
  %770 = vrot.lane.b32.xlu0 %v711, 32
  %v771 = vpop.permute.xlu0 %770
  %772 = vrot.lane.b32.xlu0 %v712, 32
  %v773 = vpop.permute.xlu0 %772
  %774 = vrot.lane.b32.xlu0 %v713, 32
  %v775 = vpop.permute.xlu0 %774
  %776 = vrot.lane.b32.xlu0 %v714, 32
  %v777 = vpop.permute.xlu0 %776
  %778 = vrot.lane.b32.xlu0 %v715, 32
  %v779 = vpop.permute.xlu0 %778
  %v796 = vsel %vm113, %v716, %v749
  %v797 = vsel %vm113, %v717, %v751
  %v798 = vsel %vm113, %v718, %v753
  %v799 = vsel %vm113, %v719, %v755
  %v800 = vsel %vm113, %v720, %v757
  %v801 = vsel %vm113, %v721, %v759
  %v802 = vsel %vm113, %v722, %v761
  %v803 = vsel %vm113, %v723, %v763
  %v804 = vsel %vm113, %v724, %v765
  %v805 = vsel %vm113, %v725, %v767
  %v806 = vsel %vm113, %v726, %v769
  %v807 = vsel %vm113, %v727, %v771
  %v808 = vsel %vm113, %v728, %v773
  %v809 = vsel %vm113, %v729, %v775
  %v810 = vsel %vm113, %v730, %v777
  %v811 = vsel %vm113, %v731, %v779
  %v812 = vpack.c.bf16 %v796, %v796
  %v813 = vpack.c.bf16 %v797, %v797
  %v814 = vpack.c.bf16 %v798, %v798
  %v815 = vpack.c.bf16 %v799, %v799
  %v816 = vpack.c.bf16 %v800, %v800
  %v817 = vpack.c.bf16 %v801, %v801
  %v818 = vpack.c.bf16 %v802, %v802
  %v819 = vpack.c.bf16 %v803, %v803
  %v820 = vpack.c.bf16 %v804, %v804
  %v821 = vpack.c.bf16 %v805, %v805
  %v822 = vpack.c.bf16 %v806, %v806
  %v823 = vpack.c.bf16 %v807, %v807
  %v824 = vpack.c.bf16 %v808, %v808
  %v825 = vpack.c.bf16 %v809, %v809
  %v826 = vpack.c.bf16 %v810, %v810
  %v827 = vpack.c.bf16 %v811, %v811
  %vm828 = vcmask 519168
  %829 = vst.msk [vmem:[%s5] sm:$0xf] %vm828, %v812
  %830 = vst.msk [vmem:[%s5 + $0x4] sm:$0xf] %vm828, %v813
  %831 = vst.msk [vmem:[%s5 + $0x8] sm:$0xf] %vm828, %v814
  %832 = vst.msk [vmem:[%s5 + $0xc] sm:$0xf] %vm828, %v815
  %833 = vst.msk [vmem:[%s5 + $0x10] sm:$0xf] %vm828, %v816
  %834 = vst.msk [vmem:[%s5 + $0x14] sm:$0xf] %vm828, %v817
  %835 = vst.msk [vmem:[%s5 + $0x18] sm:$0xf] %vm828, %v818
  %836 = vst.msk [vmem:[%s5 + $0x1c] sm:$0xf] %vm828, %v819
  %837 = vst.msk [vmem:[%s5 + $0x20] sm:$0xf] %vm828, %v820
  %838 = vst.msk [vmem:[%s5 + $0x24] sm:$0xf] %vm828, %v821
  %839 = vst.msk [vmem:[%s5 + $0x28] sm:$0xf] %vm828, %v822
  %840 = vst.msk [vmem:[%s5 + $0x2c] sm:$0xf] %vm828, %v823
  %841 = vst.msk [vmem:[%s5 + $0x30] sm:$0xf] %vm828, %v824
  %842 = vst.msk [vmem:[%s5 + $0x34] sm:$0xf] %vm828, %v825
  %843 = vst.msk [vmem:[%s5 + $0x38] sm:$0xf] %vm828, %v826
  %844 = vst.msk [vmem:[%s5 + $0x3c] sm:$0xf] %vm828, %v827
  // Predicated region
  $region22: #{forward.8} parent=0 // pred_check
    _
  $region23: #{forward.8} parent=0 // pred_check_branch
    %846 = sbr.rel (0) target = $region25
  $region24: #{forward.8} parent=0 // pred_region
    _
  $region25: #{forward.8} parent=0 // pred_fallthru
    _
  // Predicated region
  $region26: #{forward.8} parent=0 // pred_check
    _
  $region27: #{forward.8} parent=0 // pred_check_branch
    %848 = sbr.rel (0) target = $region29
  $region28: #{forward.8} parent=0 // pred_region
    _
  $region29: #{forward.8} parent=0 // pred_fallthru
    _

// kernel: forward.9
$region0: #{forward.9}
  #allocation0 [shape = 'u32[]', space=smem, size = 0x4, offset = 0x4, fixed_abs, tag = 'smem constant byte address 0x4 - core index']
  #allocation1 [shape = 'u32[72,128]{1,0:T(1,128)}', space=vmem, size = 0x9000, scoped, tag = 'internal scratch']
  %s0 = inlined_call_operand.vmem [shape: bf16[2,9,576], index: 0, kind: input, shape index: {}]
  %s1 = inlined_call_operand.vmem [shape: bf16[1152,128], index: 1, kind: input, shape index: {}]
  %s2 = inlined_call_operand.vmem [shape: f32[1,128], index: 2, kind: input, shape index: {}]
  %s3 = inlined_call_operand.vmem [shape: f32[2,8,128], index: 3, kind: output, shape index: {}]
  %s4 = sld [smem:[#allocation0]]
  $region22: #{forward.9} parent=0
    _
  %s6 = ssub.s32 1, %s4
  %s7 = scalar_select 0, %s6, %s4
  // Predicated region
  $region2: #{forward.9} parent=0 // pred_check
    _
  $region3: #{forward.9} parent=0 // pred_check_branch
    %9 = sbr.rel (0) target = $region5
  $region4: #{forward.9} parent=0 // pred_region
    _
  $region5: #{forward.9} parent=0 // pred_fallthru
    _
  // Predicated region
  $region6: #{forward.9} parent=0 // pred_check
    _
  $region7: #{forward.9} parent=0 // pred_check_branch
    %11 = sbr.rel (0) target = $region9
  $region8: #{forward.9} parent=0 // pred_region
    _
  $region9: #{forward.9} parent=0 // pred_fallthru
    _
  // Predicated region
  $region10: #{forward.9} parent=0 // pred_check
    _
  $region11: #{forward.9} parent=0 // pred_check_branch
    %13 = sbr.rel (0) target = $region13
  $region12: #{forward.9} parent=0 // pred_region
    _
  $region13: #{forward.9} parent=0 // pred_fallthru
    _
  %v15 = vld [vmem:[%s1] sm:$0xf]
  %v16 = vld [vmem:[%s1 + $0x4] sm:$0xf]
  %v17 = vld [vmem:[%s1 + $0x8] sm:$0xf]
  %v18 = vld [vmem:[%s1 + $0xc] sm:$0xf]
  %v19 = vld [vmem:[%s1 + $0x10] sm:$0xf]
  %v20 = vld [vmem:[%s1 + $0x14] sm:$0xf]
  %v21 = vld [vmem:[%s1 + $0x18] sm:$0xf]
  %v22 = vld [vmem:[%s1 + $0x1c] sm:$0xf]
  %v23 = vld [vmem:[%s1 + $0x20] sm:$0xf]
  %v24 = vld [vmem:[%s1 + $0x24] sm:$0xf]
  %v25 = vld [vmem:[%s1 + $0x28] sm:$0xf]
  %v26 = vld [vmem:[%s1 + $0x2c] sm:$0xf]
  %v27 = vld [vmem:[%s1 + $0x30] sm:$0xf]
  %v28 = vld [vmem:[%s1 + $0x34] sm:$0xf]
  %v29 = vld [vmem:[%s1 + $0x38] sm:$0xf]
  %v30 = vld [vmem:[%s1 + $0x3c] sm:$0xf]
  %v31 = vld [vmem:[%s1 + $0x40] sm:$0xf]
  %v32 = vld [vmem:[%s1 + $0x44] sm:$0xf]
  %v33 = vld [vmem:[%s1 + $0x48] sm:$0xf]
  %v34 = vld [vmem:[%s1 + $0x4c] sm:$0xf]
  %v35 = vld [vmem:[%s1 + $0x50] sm:$0xf]
  %v36 = vld [vmem:[%s1 + $0x54] sm:$0xf]
  %v37 = vld [vmem:[%s1 + $0x58] sm:$0xf]
  %v38 = vld [vmem:[%s1 + $0x5c] sm:$0xf]
  %v39 = vld [vmem:[%s1 + $0x60] sm:$0xf]
  %v40 = vld [vmem:[%s1 + $0x64] sm:$0xf]
  %v41 = vld [vmem:[%s1 + $0x68] sm:$0xf]
  %v42 = vld [vmem:[%s1 + $0x6c] sm:$0xf]
  %v43 = vld [vmem:[%s1 + $0x70] sm:$0xf]
  %v44 = vld [vmem:[%s1 + $0x74] sm:$0xf]
  %v45 = vld [vmem:[%s1 + $0x78] sm:$0xf]
  %v46 = vld [vmem:[%s1 + $0x7c] sm:$0xf]
  %v47 = vld [vmem:[%s1 + $0x80] sm:$0xf]
  %v48 = vld [vmem:[%s1 + $0x84] sm:$0xf]
  %v49 = vld [vmem:[%s1 + $0x88] sm:$0xf]
  %v50 = vld [vmem:[%s1 + $0x8c] sm:$0xf]
  %v51 = vld [vmem:[%s1 + $0x90] sm:$0xf]
  %v52 = vld [vmem:[%s1 + $0x94] sm:$0xf]
  %v53 = vld [vmem:[%s1 + $0x98] sm:$0xf]
  %v54 = vld [vmem:[%s1 + $0x9c] sm:$0xf]
  %v55 = vld [vmem:[%s1 + $0xa0] sm:$0xf]
  %v56 = vld [vmem:[%s1 + $0xa4] sm:$0xf]
  %v57 = vld [vmem:[%s1 + $0xa8] sm:$0xf]
  %v58 = vld [vmem:[%s1 + $0xac] sm:$0xf]
  %v59 = vld [vmem:[%s1 + $0xb0] sm:$0xf]
  %v60 = vld [vmem:[%s1 + $0xb4] sm:$0xf]
  %v61 = vld [vmem:[%s1 + $0xb8] sm:$0xf]
  %v62 = vld [vmem:[%s1 + $0xbc] sm:$0xf]
  %v63 = vld [vmem:[%s1 + $0xc0] sm:$0xf]
  %v64 = vld [vmem:[%s1 + $0xc4] sm:$0xf]
  %v65 = vld [vmem:[%s1 + $0xc8] sm:$0xf]
  %v66 = vld [vmem:[%s1 + $0xcc] sm:$0xf]
  %v67 = vld [vmem:[%s1 + $0xd0] sm:$0xf]
  %v68 = vld [vmem:[%s1 + $0xd4] sm:$0xf]
  %v69 = vld [vmem:[%s1 + $0xd8] sm:$0xf]
  %v70 = vld [vmem:[%s1 + $0xdc] sm:$0xf]
  %v71 = vld [vmem:[%s1 + $0xe0] sm:$0xf]
  %v72 = vld [vmem:[%s1 + $0xe4] sm:$0xf]
  %v73 = vld [vmem:[%s1 + $0xe8] sm:$0xf]
  %v74 = vld [vmem:[%s1 + $0xec] sm:$0xf]
  %v75 = vld [vmem:[%s1 + $0xf0] sm:$0xf]
  %v76 = vld [vmem:[%s1 + $0xf4] sm:$0xf]
  %v77 = vld [vmem:[%s1 + $0xf8] sm:$0xf]
  %v78 = vld [vmem:[%s1 + $0xfc] sm:$0xf]
  %v79 = vld [vmem:[%s1 + $0x100] sm:$0xf]
  %v80 = vld [vmem:[%s1 + $0x104] sm:$0xf]
  %v81 = vld [vmem:[%s1 + $0x108] sm:$0xf]
  %v82 = vld [vmem:[%s1 + $0x10c] sm:$0xf]
  %v83 = vld [vmem:[%s1 + $0x110] sm:$0xf]
  %v84 = vld [vmem:[%s1 + $0x114] sm:$0xf]
  %v85 = vld [vmem:[%s1 + $0x118] sm:$0xf]
  %v86 = vld [vmem:[%s1 + $0x11c] sm:$0xf]
  %v87 = vld [vmem:[%s1 + $0x120] sm:$0xf]
  %v88 = vld [vmem:[%s1 + $0x124] sm:$0xf]
  %v89 = vld [vmem:[%s1 + $0x128] sm:$0xf]
  %v90 = vld [vmem:[%s1 + $0x12c] sm:$0xf]
  %v91 = vld [vmem:[%s1 + $0x130] sm:$0xf]
  %v92 = vld [vmem:[%s1 + $0x134] sm:$0xf]
  %v93 = vld [vmem:[%s1 + $0x138] sm:$0xf]
  %v94 = vld [vmem:[%s1 + $0x13c] sm:$0xf]
  %v95 = vld [vmem:[%s1 + $0x140] sm:$0xf]
  %v96 = vld [vmem:[%s1 + $0x144] sm:$0xf]
  %v97 = vld [vmem:[%s1 + $0x148] sm:$0xf]
  %v98 = vld [vmem:[%s1 + $0x14c] sm:$0xf]
  %v99 = vld [vmem:[%s1 + $0x150] sm:$0xf]
  %v100 = vld [vmem:[%s1 + $0x154] sm:$0xf]
  %v101 = vld [vmem:[%s1 + $0x158] sm:$0xf]
  %v102 = vld [vmem:[%s1 + $0x15c] sm:$0xf]
  %v103 = vld [vmem:[%s1 + $0x160] sm:$0xf]
  %v104 = vld [vmem:[%s1 + $0x164] sm:$0xf]
  %v105 = vld [vmem:[%s1 + $0x168] sm:$0xf]
  %v106 = vld [vmem:[%s1 + $0x16c] sm:$0xf]
  %v107 = vld [vmem:[%s1 + $0x170] sm:$0xf]
  %v108 = vld [vmem:[%s1 + $0x174] sm:$0xf]
  %v109 = vld [vmem:[%s1 + $0x178] sm:$0xf]
  %v110 = vld [vmem:[%s1 + $0x17c] sm:$0xf]
  %v111 = vld [vmem:[%s1 + $0x180] sm:$0xf]
  %v112 = vld [vmem:[%s1 + $0x184] sm:$0xf]
  %v113 = vld [vmem:[%s1 + $0x188] sm:$0xf]
  %v114 = vld [vmem:[%s1 + $0x18c] sm:$0xf]
  %v115 = vld [vmem:[%s1 + $0x190] sm:$0xf]
  %v116 = vld [vmem:[%s1 + $0x194] sm:$0xf]
  %v117 = vld [vmem:[%s1 + $0x198] sm:$0xf]
  %v118 = vld [vmem:[%s1 + $0x19c] sm:$0xf]
  %v119 = vld [vmem:[%s1 + $0x1a0] sm:$0xf]
  %v120 = vld [vmem:[%s1 + $0x1a4] sm:$0xf]
  %v121 = vld [vmem:[%s1 + $0x1a8] sm:$0xf]
  %v122 = vld [vmem:[%s1 + $0x1ac] sm:$0xf]
  %v123 = vld [vmem:[%s1 + $0x1b0] sm:$0xf]
  %v124 = vld [vmem:[%s1 + $0x1b4] sm:$0xf]
  %v125 = vld [vmem:[%s1 + $0x1b8] sm:$0xf]
  %v126 = vld [vmem:[%s1 + $0x1bc] sm:$0xf]
  %v127 = vld [vmem:[%s1 + $0x1c0] sm:$0xf]
  %v128 = vld [vmem:[%s1 + $0x1c4] sm:$0xf]
  %v129 = vld [vmem:[%s1 + $0x1c8] sm:$0xf]
  %v130 = vld [vmem:[%s1 + $0x1cc] sm:$0xf]
  %v131 = vld [vmem:[%s1 + $0x1d0] sm:$0xf]
  %v132 = vld [vmem:[%s1 + $0x1d4] sm:$0xf]
  %v133 = vld [vmem:[%s1 + $0x1d8] sm:$0xf]
  %v134 = vld [vmem:[%s1 + $0x1dc] sm:$0xf]
  %v135 = vld [vmem:[%s1 + $0x1e0] sm:$0xf]
  %v136 = vld [vmem:[%s1 + $0x1e4] sm:$0xf]
  %v137 = vld [vmem:[%s1 + $0x1e8] sm:$0xf]
  %v138 = vld [vmem:[%s1 + $0x1ec] sm:$0xf]
  %v139 = vld [vmem:[%s1 + $0x1f0] sm:$0xf]
  %v140 = vld [vmem:[%s1 + $0x1f4] sm:$0xf]
  %v141 = vld [vmem:[%s1 + $0x1f8] sm:$0xf]
  %v142 = vld [vmem:[%s1 + $0x1fc] sm:$0xf]
  %v143 = vld [vmem:[%s1 + $0x200] sm:$0xf]
  %v144 = vld [vmem:[%s1 + $0x204] sm:$0xf]
  %v145 = vld [vmem:[%s1 + $0x208] sm:$0xf]
  %v146 = vld [vmem:[%s1 + $0x20c] sm:$0xf]
  %v147 = vld [vmem:[%s1 + $0x210] sm:$0xf]
  %v148 = vld [vmem:[%s1 + $0x214] sm:$0xf]
  %v149 = vld [vmem:[%s1 + $0x218] sm:$0xf]
  %v150 = vld [vmem:[%s1 + $0x21c] sm:$0xf]
  %v151 = vld [vmem:[%s1 + $0x220] sm:$0xf]
  %v152 = vld [vmem:[%s1 + $0x224] sm:$0xf]
  %v153 = vld [vmem:[%s1 + $0x228] sm:$0xf]
  %v154 = vld [vmem:[%s1 + $0x22c] sm:$0xf]
  %v155 = vld [vmem:[%s1 + $0x230] sm:$0xf]
  %v156 = vld [vmem:[%s1 + $0x234] sm:$0xf]
  %v157 = vld [vmem:[%s1 + $0x238] sm:$0xf]
  %v158 = vld [vmem:[%s1 + $0x23c] sm:$0xf]
  %v159 = vld [vmem:[%s2] sm:$0x1]
  %v161 = vperm.slane %v159, 0
  %v163 = vadd.f32 %v161, 0.0
  %v164 = vld [vmem:[%s0] sm:$0xff]
  %v165 = vld [vmem:[%s0 + $0x8] sm:$0xff]
  %v166 = vld [vmem:[%s0 + $0x10] sm:$0xf]
  %v170 = vunpack.c.l.b16 %v164
  %v171 = vunpack.c.h.b16 %v164
  %v172 = vunpack.c.l.b16 %v165
  %v173 = vunpack.c.h.b16 %v165
  %v174 = vunpack.c.l.b16 %v166
  %v175 = vpack.c.b16 %v170, %v170
  %v176 = vpack.c.b16 %v171, %v171
  %v177 = vpack.c.b16 %v172, %v172
  %v178 = vpack.c.b16 %v173, %v173
  %v179 = vpack.c.b16 %v174, %v174
  %v256 = vunpack.c.l.b16 %v15
  %v257 = vunpack.c.l.b16 %v16
  %v258 = vunpack.c.l.b16 %v17
  %v259 = vunpack.c.l.b16 %v18
  %v260 = vunpack.c.l.b16 %v19
  %v261 = vunpack.c.l.b16 %v20
  %v262 = vunpack.c.l.b16 %v21
  %v263 = vunpack.c.l.b16 %v22
  %v264 = vunpack.c.l.b16 %v23
  %v265 = vunpack.c.l.b16 %v24
  %v266 = vunpack.c.l.b16 %v25
  %v267 = vunpack.c.l.b16 %v26
  %v268 = vunpack.c.l.b16 %v27
  %v269 = vunpack.c.l.b16 %v28
  %v270 = vunpack.c.l.b16 %v29
  %v271 = vunpack.c.l.b16 %v30
  %v272 = vunpack.c.l.b16 %v31
  %v273 = vunpack.c.l.b16 %v32
  %v274 = vunpack.c.l.b16 %v33
  %v275 = vunpack.c.l.b16 %v34
  %v276 = vunpack.c.l.b16 %v35
  %v277 = vunpack.c.l.b16 %v36
  %v278 = vunpack.c.l.b16 %v37
  %v279 = vunpack.c.l.b16 %v38
  %v280 = vunpack.c.l.b16 %v39
  %v281 = vunpack.c.l.b16 %v40
  %v282 = vunpack.c.l.b16 %v41
  %v283 = vunpack.c.l.b16 %v42
  %v284 = vunpack.c.l.b16 %v43
  %v285 = vunpack.c.l.b16 %v44
  %v286 = vunpack.c.l.b16 %v45
  %v287 = vunpack.c.l.b16 %v46
  %v288 = vunpack.c.l.b16 %v47
  %v289 = vunpack.c.l.b16 %v48
  %v290 = vunpack.c.l.b16 %v49
  %v291 = vunpack.c.l.b16 %v50
  %v292 = vunpack.c.l.b16 %v51
  %v293 = vunpack.c.l.b16 %v52
  %v294 = vunpack.c.l.b16 %v53
  %v295 = vunpack.c.l.b16 %v54
  %v296 = vunpack.c.l.b16 %v55
  %v297 = vunpack.c.l.b16 %v56
  %v298 = vunpack.c.l.b16 %v57
  %v299 = vunpack.c.l.b16 %v58
  %v300 = vunpack.c.l.b16 %v59
  %v301 = vunpack.c.l.b16 %v60
  %v302 = vunpack.c.l.b16 %v61
  %v303 = vunpack.c.l.b16 %v62
  %v304 = vunpack.c.l.b16 %v63
  %v305 = vunpack.c.l.b16 %v64
  %v306 = vunpack.c.l.b16 %v65
  %v307 = vunpack.c.l.b16 %v66
  %v308 = vunpack.c.l.b16 %v67
  %v309 = vunpack.c.l.b16 %v68
  %v310 = vunpack.c.l.b16 %v69
  %v311 = vunpack.c.l.b16 %v70
  %v312 = vunpack.c.l.b16 %v71
  %v313 = vunpack.c.l.b16 %v72
  %v314 = vunpack.c.l.b16 %v73
  %v315 = vunpack.c.l.b16 %v74
  %v316 = vunpack.c.l.b16 %v75
  %v317 = vunpack.c.l.b16 %v76
  %v318 = vunpack.c.l.b16 %v77
  %v319 = vunpack.c.l.b16 %v78
  %v320 = vunpack.c.l.b16 %v79
  %v321 = vunpack.c.l.b16 %v80
  %v322 = vunpack.c.l.b16 %v81
  %v323 = vunpack.c.l.b16 %v82
  %v324 = vunpack.c.l.b16 %v83
  %v325 = vunpack.c.l.b16 %v84
  %v326 = vunpack.c.l.b16 %v85
  %v327 = vunpack.c.l.b16 %v86
  %v328 = vpack.c.b16 %v257, %v256
  %v329 = vpack.c.b16 %v259, %v258
  %v330 = vpack.c.b16 %v261, %v260
  %v331 = vpack.c.b16 %v263, %v262
  %v332 = vpack.c.b16 %v265, %v264
  %v333 = vpack.c.b16 %v267, %v266
  %v334 = vpack.c.b16 %v269, %v268
  %v335 = vpack.c.b16 %v271, %v270
  %v336 = vpack.c.b16 %v273, %v272
  %v337 = vpack.c.b16 %v275, %v274
  %v338 = vpack.c.b16 %v277, %v276
  %v339 = vpack.c.b16 %v279, %v278
  %v340 = vpack.c.b16 %v281, %v280
  %v341 = vpack.c.b16 %v283, %v282
  %v342 = vpack.c.b16 %v285, %v284
  %v343 = vpack.c.b16 %v287, %v286
  %v344 = vpack.c.b16 %v289, %v288
  %v345 = vpack.c.b16 %v291, %v290
  %v346 = vpack.c.b16 %v293, %v292
  %v347 = vpack.c.b16 %v295, %v294
  %v348 = vpack.c.b16 %v297, %v296
  %v349 = vpack.c.b16 %v299, %v298
  %v350 = vpack.c.b16 %v301, %v300
  %v351 = vpack.c.b16 %v303, %v302
  %v352 = vpack.c.b16 %v305, %v304
  %v353 = vpack.c.b16 %v307, %v306
  %v354 = vpack.c.b16 %v309, %v308
  %v355 = vpack.c.b16 %v311, %v310
  %v356 = vpack.c.b16 %v313, %v312
  %v357 = vpack.c.b16 %v315, %v314
  %v358 = vpack.c.b16 %v317, %v316
  %v359 = vpack.c.b16 %v319, %v318
  %v360 = vpack.c.b16 %v321, %v320
  %v361 = vpack.c.b16 %v323, %v322
  %v362 = vpack.c.b16 %v325, %v324
  %v363 = vpack.c.b16 %v327, %v326
  %vm400 = vcmask 523264
  %v402 = vsel %vm400, %v179, 0
  %404 = vmatpush.bf16.msra.mxu0 %v335
  %405 = vmatpush.bf16.msra.mxu0 %v334
  %406 = vmatpush.bf16.msra.mxu0 %v333
  %407 = vmatpush.bf16.msra.mxu0 %v332
  %408 = vmatpush.bf16.msra.mxu0 %v331
  %409 = vmatpush.bf16.msra.mxu0 %v330
  %410 = vmatpush.bf16.msra.mxu0 %v329
  %411 = vmatpush.bf16.msra.mxu0 %v328
  %412 = vmatmul.bf16.gmra.mxu0 %v175
  %v413 = vpop.f32.mrf.mxu0
  %v414 = vadd.f32 0.0, %v413
  %v415 = vpop.f32.mrf.mxu0
  %416 = vdwg.mxu0
  %417 = vmatpush.bf16.msra.mxu0 %v343
  %418 = vmatpush.bf16.msra.mxu0 %v342
  %419 = vmatpush.bf16.msra.mxu0 %v341
  %420 = vmatpush.bf16.msra.mxu0 %v340
  %421 = vmatpush.bf16.msra.mxu0 %v339
  %422 = vmatpush.bf16.msra.mxu0 %v338
  %423 = vmatpush.bf16.msra.mxu0 %v337
  %424 = vmatpush.bf16.msra.mxu0 %v336
  %425 = vmatmul.bf16.gmra.mxu0 %v176
  %v426 = vpop.f32.mrf.mxu0
  %v427 = vadd.f32 %v414, %v426
  %v428 = vpop.f32.mrf.mxu0
  %429 = vdwg.mxu0
  %430 = vmatpush.bf16.msra.mxu0 %v351
  %431 = vmatpush.bf16.msra.mxu0 %v350
  %432 = vmatpush.bf16.msra.mxu0 %v349
  %433 = vmatpush.bf16.msra.mxu0 %v348
  %434 = vmatpush.bf16.msra.mxu0 %v347
  %435 = vmatpush.bf16.msra.mxu0 %v346
  %436 = vmatpush.bf16.msra.mxu0 %v345
  %437 = vmatpush.bf16.msra.mxu0 %v344
  %438 = vmatmul.bf16.gmra.mxu0 %v177
  %v439 = vpop.f32.mrf.mxu0
  %v440 = vadd.f32 %v427, %v439
  %v441 = vpop.f32.mrf.mxu0
  %442 = vdwg.mxu0
  %443 = vmatpush.bf16.msra.mxu0 %v359
  %444 = vmatpush.bf16.msra.mxu0 %v358
  %445 = vmatpush.bf16.msra.mxu0 %v357
  %446 = vmatpush.bf16.msra.mxu0 %v356
  %447 = vmatpush.bf16.msra.mxu0 %v355
  %448 = vmatpush.bf16.msra.mxu0 %v354
  %449 = vmatpush.bf16.msra.mxu0 %v353
  %450 = vmatpush.bf16.msra.mxu0 %v352
  %451 = vmatmul.bf16.gmra.mxu0 %v178
  %v452 = vpop.f32.mrf.mxu0
  %v453 = vadd.f32 %v440, %v452
  %v454 = vpop.f32.mrf.mxu0
  %455 = vdwg.mxu0
  %456 = vmatpush.bf16.msra.mxu0 0
  %457 = vmatpush.bf16.msra.mxu0 0
  %458 = vmatpush.bf16.msra.mxu0 0
  %459 = vmatpush.bf16.msra.mxu0 0
  %460 = vmatpush.bf16.msra.mxu0 %v363
  %461 = vmatpush.bf16.msra.mxu0 %v362
  %462 = vmatpush.bf16.msra.mxu0 %v361
  %463 = vmatpush.bf16.msra.mxu0 %v360
  %464 = vmatmul.bf16.gmra.mxu0 %v402
  %v465 = vpop.f32.mrf.mxu0
  %v466 = vadd.f32 %v453, %v465
  %v467 = vpop.f32.mrf.mxu0
  %468 = vdwg.mxu0
  %v469 = vadd.f32 %v163, %v466
  %v470 = vld [vmem:[%s0] sm:$0xff]
  %v471 = vld [vmem:[%s0 + $0x8] sm:$0xff]
  %v472 = vld [vmem:[%s0 + $0x10] sm:$0xf]
  %v473 = vld [vmem:[%s0 + $0x14] sm:$0x11]
  %v474 = vld [vmem:[%s0 + $0x1c] sm:$0x11]
  %v475 = vld [vmem:[%s0 + $0x24] sm:$0x1]
  %v482 = vunpack.c.l.b16 %v470
  %v483 = vunpack.c.h.b16 %v470
  %v484 = vunpack.c.l.b16 %v471
  %v485 = vunpack.c.h.b16 %v471
  %v486 = vunpack.c.l.b16 %v472
  %v487 = vunpack.c.l.b16 %v473
  %v488 = vunpack.c.h.b16 %v473
  %v489 = vunpack.c.l.b16 %v474
  %v490 = vunpack.c.h.b16 %v474
  %v491 = vunpack.c.l.b16 %v475
  %v492 = vpack.c.b16 %v487, %v482
  %v493 = vpack.c.b16 %v488, %v483
  %v494 = vpack.c.b16 %v489, %v484
  %v495 = vpack.c.b16 %v490, %v485
  %v496 = vpack.c.b16 %v491, %v486
  %v498 = vshrl.u32 %v492, 16
  %v500 = vshll.u32 %v492, 16
  %v502 = vrot.slane %v500, 1
  %v503 = vor.u32 %v498, %v502
  %v505 = vshrl.u32 %v493, 16
  %v507 = vshll.u32 %v493, 16
  %v509 = vrot.slane %v507, 1
  %v510 = vor.u32 %v505, %v509
  %v512 = vshrl.u32 %v494, 16
  %v514 = vshll.u32 %v494, 16
  %v516 = vrot.slane %v514, 1
  %v517 = vor.u32 %v512, %v516
  %v519 = vshrl.u32 %v495, 16
  %v521 = vshll.u32 %v495, 16
  %v523 = vrot.slane %v521, 1
  %v524 = vor.u32 %v519, %v523
  %v526 = vshrl.u32 %v496, 16
  %v528 = vshll.u32 %v496, 16
  %v530 = vrot.slane %v528, 1
  %v531 = vor.u32 %v526, %v530
  %v608 = vunpack.c.l.b16 %v87
  %v609 = vunpack.c.l.b16 %v88
  %v610 = vunpack.c.l.b16 %v89
  %v611 = vunpack.c.l.b16 %v90
  %v612 = vunpack.c.l.b16 %v91
  %v613 = vunpack.c.l.b16 %v92
  %v614 = vunpack.c.l.b16 %v93
  %v615 = vunpack.c.l.b16 %v94
  %v616 = vunpack.c.l.b16 %v95
  %v617 = vunpack.c.l.b16 %v96
  %v618 = vunpack.c.l.b16 %v97
  %v619 = vunpack.c.l.b16 %v98
  %v620 = vunpack.c.l.b16 %v99
  %v621 = vunpack.c.l.b16 %v100
  %v622 = vunpack.c.l.b16 %v101
  %v623 = vunpack.c.l.b16 %v102
  %v624 = vunpack.c.l.b16 %v103
  %v625 = vunpack.c.l.b16 %v104
  %v626 = vunpack.c.l.b16 %v105
  %v627 = vunpack.c.l.b16 %v106
  %v628 = vunpack.c.l.b16 %v107
  %v629 = vunpack.c.l.b16 %v108
  %v630 = vunpack.c.l.b16 %v109
  %v631 = vunpack.c.l.b16 %v110
  %v632 = vunpack.c.l.b16 %v111
  %v633 = vunpack.c.l.b16 %v112
  %v634 = vunpack.c.l.b16 %v113
  %v635 = vunpack.c.l.b16 %v114
  %v636 = vunpack.c.l.b16 %v115
  %v637 = vunpack.c.l.b16 %v116
  %v638 = vunpack.c.l.b16 %v117
  %v639 = vunpack.c.l.b16 %v118
  %v640 = vunpack.c.l.b16 %v119
  %v641 = vunpack.c.l.b16 %v120
  %v642 = vunpack.c.l.b16 %v121
  %v643 = vunpack.c.l.b16 %v122
  %v644 = vunpack.c.l.b16 %v123
  %v645 = vunpack.c.l.b16 %v124
  %v646 = vunpack.c.l.b16 %v125
  %v647 = vunpack.c.l.b16 %v126
  %v648 = vunpack.c.l.b16 %v127
  %v649 = vunpack.c.l.b16 %v128
  %v650 = vunpack.c.l.b16 %v129
  %v651 = vunpack.c.l.b16 %v130
  %v652 = vunpack.c.l.b16 %v131
  %v653 = vunpack.c.l.b16 %v132
  %v654 = vunpack.c.l.b16 %v133
  %v655 = vunpack.c.l.b16 %v134
  %v656 = vunpack.c.l.b16 %v135
  %v657 = vunpack.c.l.b16 %v136
  %v658 = vunpack.c.l.b16 %v137
  %v659 = vunpack.c.l.b16 %v138
  %v660 = vunpack.c.l.b16 %v139
  %v661 = vunpack.c.l.b16 %v140
  %v662 = vunpack.c.l.b16 %v141
  %v663 = vunpack.c.l.b16 %v142
  %v664 = vunpack.c.l.b16 %v143
  %v665 = vunpack.c.l.b16 %v144
  %v666 = vunpack.c.l.b16 %v145
  %v667 = vunpack.c.l.b16 %v146
  %v668 = vunpack.c.l.b16 %v147
  %v669 = vunpack.c.l.b16 %v148
  %v670 = vunpack.c.l.b16 %v149
  %v671 = vunpack.c.l.b16 %v150
  %v672 = vunpack.c.l.b16 %v151
  %v673 = vunpack.c.l.b16 %v152
  %v674 = vunpack.c.l.b16 %v153
  %v675 = vunpack.c.l.b16 %v154
  %v676 = vunpack.c.l.b16 %v155
  %v677 = vunpack.c.l.b16 %v156
  %v678 = vunpack.c.l.b16 %v157
  %v679 = vunpack.c.l.b16 %v158
  %v680 = vpack.c.b16 %v609, %v608
  %v681 = vpack.c.b16 %v611, %v610
  %v682 = vpack.c.b16 %v613, %v612
  %v683 = vpack.c.b16 %v615, %v614
  %v684 = vpack.c.b16 %v617, %v616
  %v685 = vpack.c.b16 %v619, %v618
  %v686 = vpack.c.b16 %v621, %v620
  %v687 = vpack.c.b16 %v623, %v622
  %v688 = vpack.c.b16 %v625, %v624
  %v689 = vpack.c.b16 %v627, %v626
  %v690 = vpack.c.b16 %v629, %v628
  %v691 = vpack.c.b16 %v631, %v630
  %v692 = vpack.c.b16 %v633, %v632
  %v693 = vpack.c.b16 %v635, %v634
  %v694 = vpack.c.b16 %v637, %v636
  %v695 = vpack.c.b16 %v639, %v638
  %v696 = vpack.c.b16 %v641, %v640
  %v697 = vpack.c.b16 %v643, %v642
  %v698 = vpack.c.b16 %v645, %v644
  %v699 = vpack.c.b16 %v647, %v646
  %v700 = vpack.c.b16 %v649, %v648
  %v701 = vpack.c.b16 %v651, %v650
  %v702 = vpack.c.b16 %v653, %v652
  %v703 = vpack.c.b16 %v655, %v654
  %v704 = vpack.c.b16 %v657, %v656
  %v705 = vpack.c.b16 %v659, %v658
  %v706 = vpack.c.b16 %v661, %v660
  %v707 = vpack.c.b16 %v663, %v662
  %v708 = vpack.c.b16 %v665, %v664
  %v709 = vpack.c.b16 %v667, %v666
  %v710 = vpack.c.b16 %v669, %v668
  %v711 = vpack.c.b16 %v671, %v670
  %v712 = vpack.c.b16 %v673, %v672
  %v713 = vpack.c.b16 %v675, %v674
  %v714 = vpack.c.b16 %v677, %v676
  %v715 = vpack.c.b16 %v679, %v678
  %v753 = vsel %vm400, %v531, 0
  %755 = vmatpush.bf16.msra.mxu0 %v687
  %756 = vmatpush.bf16.msra.mxu0 %v686
  %757 = vmatpush.bf16.msra.mxu0 %v685
  %758 = vmatpush.bf16.msra.mxu0 %v684
  %759 = vmatpush.bf16.msra.mxu0 %v683
  %760 = vmatpush.bf16.msra.mxu0 %v682
  %761 = vmatpush.bf16.msra.mxu0 %v681
  %762 = vmatpush.bf16.msra.mxu0 %v680
  %763 = vmatmul.bf16.gmra.mxu0 %v503
  %v764 = vpop.f32.mrf.mxu0
  %v765 = vadd.f32 0.0, %v764
  %v766 = vpop.f32.mrf.mxu0
  %767 = vdwg.mxu0
  %768 = vmatpush.bf16.msra.mxu0 %v695
  %769 = vmatpush.bf16.msra.mxu0 %v694
  %770 = vmatpush.bf16.msra.mxu0 %v693
  %771 = vmatpush.bf16.msra.mxu0 %v692
  %772 = vmatpush.bf16.msra.mxu0 %v691
  %773 = vmatpush.bf16.msra.mxu0 %v690
  %774 = vmatpush.bf16.msra.mxu0 %v689
  %775 = vmatpush.bf16.msra.mxu0 %v688
  %776 = vmatmul.bf16.gmra.mxu0 %v510
  %v777 = vpop.f32.mrf.mxu0
  %v778 = vadd.f32 %v765, %v777
  %v779 = vpop.f32.mrf.mxu0
  %780 = vdwg.mxu0
  %781 = vmatpush.bf16.msra.mxu0 %v703
  %782 = vmatpush.bf16.msra.mxu0 %v702
  %783 = vmatpush.bf16.msra.mxu0 %v701
  %784 = vmatpush.bf16.msra.mxu0 %v700
  %785 = vmatpush.bf16.msra.mxu0 %v699
  %786 = vmatpush.bf16.msra.mxu0 %v698
  %787 = vmatpush.bf16.msra.mxu0 %v697
  %788 = vmatpush.bf16.msra.mxu0 %v696
  %789 = vmatmul.bf16.gmra.mxu0 %v517
  %v790 = vpop.f32.mrf.mxu0
  %v791 = vadd.f32 %v778, %v790
  %v792 = vpop.f32.mrf.mxu0
  %793 = vdwg.mxu0
  %794 = vmatpush.bf16.msra.mxu0 %v711
  %795 = vmatpush.bf16.msra.mxu0 %v710
  %796 = vmatpush.bf16.msra.mxu0 %v709
  %797 = vmatpush.bf16.msra.mxu0 %v708
  %798 = vmatpush.bf16.msra.mxu0 %v707
  %799 = vmatpush.bf16.msra.mxu0 %v706
  %800 = vmatpush.bf16.msra.mxu0 %v705
  %801 = vmatpush.bf16.msra.mxu0 %v704
  %802 = vmatmul.bf16.gmra.mxu0 %v524
  %v803 = vpop.f32.mrf.mxu0
  %v804 = vadd.f32 %v791, %v803
  %v805 = vpop.f32.mrf.mxu0
  %806 = vdwg.mxu0
  %807 = vmatpush.bf16.msra.mxu0 0
  %808 = vmatpush.bf16.msra.mxu0 0
  %809 = vmatpush.bf16.msra.mxu0 0
  %810 = vmatpush.bf16.msra.mxu0 0
  %811 = vmatpush.bf16.msra.mxu0 %v715
  %812 = vmatpush.bf16.msra.mxu0 %v714
  %813 = vmatpush.bf16.msra.mxu0 %v713
  %814 = vmatpush.bf16.msra.mxu0 %v712
  %815 = vmatmul.bf16.gmra.mxu0 %v753
  %v816 = vpop.f32.mrf.mxu0
  %v817 = vadd.f32 %v804, %v816
  %v818 = vpop.f32.mrf.mxu0
  %819 = vdwg.mxu0
  %v820 = vadd.f32 %v469, %v817
  %v821 = vmax.f32 %v820, 0.0
  %822 = vst [vmem:[%s3] sm:$0xff] %v821
  %s823 = scalar_lea.vmem %s0, 40
  %v824 = vld [vmem:[%s823] sm:$0xff]
  %v825 = vld [vmem:[%s823 + $0x8] sm:$0xff]
  %v826 = vld [vmem:[%s823 + $0x10] sm:$0xf]
  %v830 = vunpack.c.l.b16 %v824
  %v831 = vunpack.c.h.b16 %v824
  %v832 = vunpack.c.l.b16 %v825
  %v833 = vunpack.c.h.b16 %v825
  %v834 = vunpack.c.l.b16 %v826
  %v835 = vpack.c.b16 %v830, %v830
  %v836 = vpack.c.b16 %v831, %v831
  %v837 = vpack.c.b16 %v832, %v832
  %v838 = vpack.c.b16 %v833, %v833
  %v839 = vpack.c.b16 %v834, %v834
  %v845 = vsel %vm400, %v839, 0
  %847 = vmatpush.bf16.msra.mxu0 %v335
  %848 = vmatpush.bf16.msra.mxu0 %v334
  %849 = vmatpush.bf16.msra.mxu0 %v333
  %850 = vmatpush.bf16.msra.mxu0 %v332
  %851 = vmatpush.bf16.msra.mxu0 %v331
  %852 = vmatpush.bf16.msra.mxu0 %v330
  %853 = vmatpush.bf16.msra.mxu0 %v329
  %854 = vmatpush.bf16.msra.mxu0 %v328
  %855 = vmatmul.bf16.gmra.mxu0 %v835
  %v856 = vpop.f32.mrf.mxu0
  %v857 = vadd.f32 0.0, %v856
  %v858 = vpop.f32.mrf.mxu0
  %859 = vdwg.mxu0
  %860 = vmatpush.bf16.msra.mxu0 %v343
  %861 = vmatpush.bf16.msra.mxu0 %v342
  %862 = vmatpush.bf16.msra.mxu0 %v341
  %863 = vmatpush.bf16.msra.mxu0 %v340
  %864 = vmatpush.bf16.msra.mxu0 %v339
  %865 = vmatpush.bf16.msra.mxu0 %v338
  %866 = vmatpush.bf16.msra.mxu0 %v337
  %867 = vmatpush.bf16.msra.mxu0 %v336
  %868 = vmatmul.bf16.gmra.mxu0 %v836
  %v869 = vpop.f32.mrf.mxu0
  %v870 = vadd.f32 %v857, %v869
  %v871 = vpop.f32.mrf.mxu0
  %872 = vdwg.mxu0
  %873 = vmatpush.bf16.msra.mxu0 %v351
  %874 = vmatpush.bf16.msra.mxu0 %v350
  %875 = vmatpush.bf16.msra.mxu0 %v349
  %876 = vmatpush.bf16.msra.mxu0 %v348
  %877 = vmatpush.bf16.msra.mxu0 %v347
  %878 = vmatpush.bf16.msra.mxu0 %v346
  %879 = vmatpush.bf16.msra.mxu0 %v345
  %880 = vmatpush.bf16.msra.mxu0 %v344
  %881 = vmatmul.bf16.gmra.mxu0 %v837
  %v882 = vpop.f32.mrf.mxu0
  %v883 = vadd.f32 %v870, %v882
  %v884 = vpop.f32.mrf.mxu0
  %885 = vdwg.mxu0
  %886 = vmatpush.bf16.msra.mxu0 %v359
  %887 = vmatpush.bf16.msra.mxu0 %v358
  %888 = vmatpush.bf16.msra.mxu0 %v357
  %889 = vmatpush.bf16.msra.mxu0 %v356
  %890 = vmatpush.bf16.msra.mxu0 %v355
  %891 = vmatpush.bf16.msra.mxu0 %v354
  %892 = vmatpush.bf16.msra.mxu0 %v353
  %893 = vmatpush.bf16.msra.mxu0 %v352
  %894 = vmatmul.bf16.gmra.mxu0 %v838
  %v895 = vpop.f32.mrf.mxu0
  %v896 = vadd.f32 %v883, %v895
  %v897 = vpop.f32.mrf.mxu0
  %898 = vdwg.mxu0
  %899 = vmatpush.bf16.msra.mxu0 0
  %900 = vmatpush.bf16.msra.mxu0 0
  %901 = vmatpush.bf16.msra.mxu0 0
  %902 = vmatpush.bf16.msra.mxu0 0
  %903 = vmatpush.bf16.msra.mxu0 %v363
  %904 = vmatpush.bf16.msra.mxu0 %v362
  %905 = vmatpush.bf16.msra.mxu0 %v361
  %906 = vmatpush.bf16.msra.mxu0 %v360
  %907 = vmatmul.bf16.gmra.mxu0 %v845
  %v908 = vpop.f32.mrf.mxu0
  %v909 = vadd.f32 %v896, %v908
  %v910 = vpop.f32.mrf.mxu0
  %911 = vdwg.mxu0
  %v912 = vadd.f32 %v163, %v909
  %v913 = vld [vmem:[%s823] sm:$0xff]
  %v914 = vld [vmem:[%s823 + $0x8] sm:$0xff]
  %v915 = vld [vmem:[%s823 + $0x10] sm:$0xf]
  %v916 = vld [vmem:[%s823 + $0x14] sm:$0x11]
  %v917 = vld [vmem:[%s823 + $0x1c] sm:$0x11]
  %v918 = vld [vmem:[%s823 + $0x24] sm:$0x1]
  %v925 = vunpack.c.l.b16 %v913
  %v926 = vunpack.c.h.b16 %v913
  %v927 = vunpack.c.l.b16 %v914
  %v928 = vunpack.c.h.b16 %v914
  %v929 = vunpack.c.l.b16 %v915
  %v930 = vunpack.c.l.b16 %v916
  %v931 = vunpack.c.h.b16 %v916
  %v932 = vunpack.c.l.b16 %v917
  %v933 = vunpack.c.h.b16 %v917
  %v934 = vunpack.c.l.b16 %v918
  %v935 = vpack.c.b16 %v930, %v925
  %v936 = vpack.c.b16 %v931, %v926
  %v937 = vpack.c.b16 %v932, %v927
  %v938 = vpack.c.b16 %v933, %v928
  %v939 = vpack.c.b16 %v934, %v929
  %v941 = vshrl.u32 %v935, 16
  %v943 = vshll.u32 %v935, 16
  %v945 = vrot.slane %v943, 1
  %v946 = vor.u32 %v941, %v945
  %v948 = vshrl.u32 %v936, 16
  %v950 = vshll.u32 %v936, 16
  %v952 = vrot.slane %v950, 1
  %v953 = vor.u32 %v948, %v952
  %v955 = vshrl.u32 %v937, 16
  %v957 = vshll.u32 %v937, 16
  %v959 = vrot.slane %v957, 1
  %v960 = vor.u32 %v955, %v959
  %v962 = vshrl.u32 %v938, 16
  %v964 = vshll.u32 %v938, 16
  %v966 = vrot.slane %v964, 1
  %v967 = vor.u32 %v962, %v966
  %v969 = vshrl.u32 %v939, 16
  %v971 = vshll.u32 %v939, 16
  %v973 = vrot.slane %v971, 1
  %v974 = vor.u32 %v969, %v973
  %v980 = vsel %vm400, %v974, 0
  %982 = vmatpush.bf16.msra.mxu0 %v687
  %983 = vmatpush.bf16.msra.mxu0 %v686
  %984 = vmatpush.bf16.msra.mxu0 %v685
  %985 = vmatpush.bf16.msra.mxu0 %v684
  %986 = vmatpush.bf16.msra.mxu0 %v683
  %987 = vmatpush.bf16.msra.mxu0 %v682
  %988 = vmatpush.bf16.msra.mxu0 %v681
  %989 = vmatpush.bf16.msra.mxu0 %v680
  %990 = vmatmul.bf16.gmra.mxu0 %v946
  %v991 = vpop.f32.mrf.mxu0
  %v992 = vadd.f32 0.0, %v991
  %v993 = vpop.f32.mrf.mxu0
  %994 = vdwg.mxu0
  %995 = vmatpush.bf16.msra.mxu0 %v695
  %996 = vmatpush.bf16.msra.mxu0 %v694
  %997 = vmatpush.bf16.msra.mxu0 %v693
  %998 = vmatpush.bf16.msra.mxu0 %v692
  %999 = vmatpush.bf16.msra.mxu0 %v691
  %1000 = vmatpush.bf16.msra.mxu0 %v690
  %1001 = vmatpush.bf16.msra.mxu0 %v689
  %1002 = vmatpush.bf16.msra.mxu0 %v688
  %1003 = vmatmul.bf16.gmra.mxu0 %v953
  %v1004 = vpop.f32.mrf.mxu0
  %v1005 = vadd.f32 %v992, %v1004
  %v1006 = vpop.f32.mrf.mxu0
  %1007 = vdwg.mxu0
  %1008 = vmatpush.bf16.msra.mxu0 %v703
  %1009 = vmatpush.bf16.msra.mxu0 %v702
  %1010 = vmatpush.bf16.msra.mxu0 %v701
  %1011 = vmatpush.bf16.msra.mxu0 %v700
  %1012 = vmatpush.bf16.msra.mxu0 %v699
  %1013 = vmatpush.bf16.msra.mxu0 %v698
  %1014 = vmatpush.bf16.msra.mxu0 %v697
  %1015 = vmatpush.bf16.msra.mxu0 %v696
  %1016 = vmatmul.bf16.gmra.mxu0 %v960
  %v1017 = vpop.f32.mrf.mxu0
  %v1018 = vadd.f32 %v1005, %v1017
  %v1019 = vpop.f32.mrf.mxu0
  %1020 = vdwg.mxu0
  %1021 = vmatpush.bf16.msra.mxu0 %v711
  %1022 = vmatpush.bf16.msra.mxu0 %v710
  %1023 = vmatpush.bf16.msra.mxu0 %v709
  %1024 = vmatpush.bf16.msra.mxu0 %v708
  %1025 = vmatpush.bf16.msra.mxu0 %v707
  %1026 = vmatpush.bf16.msra.mxu0 %v706
  %1027 = vmatpush.bf16.msra.mxu0 %v705
  %1028 = vmatpush.bf16.msra.mxu0 %v704
  %1029 = vmatmul.bf16.gmra.mxu0 %v967
  %v1030 = vpop.f32.mrf.mxu0
  %v1031 = vadd.f32 %v1018, %v1030
  %v1032 = vpop.f32.mrf.mxu0
  %1033 = vdwg.mxu0
  %1034 = vmatpush.bf16.msra.mxu0 0
  %1035 = vmatpush.bf16.msra.mxu0 0
  %1036 = vmatpush.bf16.msra.mxu0 0
  %1037 = vmatpush.bf16.msra.mxu0 0
  %1038 = vmatpush.bf16.msra.mxu0 %v715
  %1039 = vmatpush.bf16.msra.mxu0 %v714
  %1040 = vmatpush.bf16.msra.mxu0 %v713
  %1041 = vmatpush.bf16.msra.mxu0 %v712
  %1042 = vmatmul.bf16.gmra.mxu0 %v980
  %v1043 = vpop.f32.mrf.mxu0
  %v1044 = vadd.f32 %v1031, %v1043
  %v1045 = vpop.f32.mrf.mxu0
  %1046 = vdwg.mxu0
  %v1047 = vadd.f32 %v912, %v1044
  %v1048 = vmax.f32 %v1047, 0.0
  %s1049 = scalar_lea.vmem %s3, 8
  %1050 = vst [vmem:[%s1049] sm:$0xff] %v1048
  // Predicated region
  $region14: #{forward.9} parent=0 // pred_check
    _
  $region15: #{forward.9} parent=0 // pred_check_branch
    %1052 = sbr.rel (0) target = $region17
  $region16: #{forward.9} parent=0 // pred_region
    _
  $region17: #{forward.9} parent=0 // pred_fallthru
    _
  // Predicated region
  $region18: #{forward.9} parent=0 // pred_check
    _
  $region19: #{forward.9} parent=0 // pred_check_branch
    %1054 = sbr.rel (0) target = $region21
  $region20: #{forward.9} parent=0 // pred_region
    _
  $region21: #{forward.9} parent=0 // pred_fallthru
    _

</llo_original>
